<compile_context>
chip_gen: v7x
topology: tpu7x:2x2x1
jax: 0.10.0
libtpu: 0.0.40
codegen_flags: <defaults>
</compile_context>

<pallas_src>
import jax
import jax.numpy as jnp
from jax.experimental import pallas as pl
from jax.experimental.pallas import tpu as pltpu

EPS = 1e-5
LANE = 128


def _round_up(x, m):
    return (x + m - 1) // m * m


def down_block_kernel(x_ref, w1_ref, g1_ref, b1_ref, w2_ref, g2_ref, b2_ref,
                      o_ref, pad1_ref, col1_ref, pad2_ref, col2_ref):
    # x_ref  : (N, Hp, 2, Wp, 2*Cp)  NHWC input with the 2x2 pool window folded
    #                                into the (row-pair, lane-pair) axes.
    # w*_ref : (9*C, Co)             conv weights, 3x3 taps flattened into K.
    # g*/b*  : (1, Co)               batch-norm affine params (zero padded).
    # o_ref  : (M, Co)               M = N*Hp*Wp, lane-dense output slab.
    N, Hp, _, Wp, two_cp = x_ref.shape
    Cp = two_cp // 2
    Co = o_ref.shape[-1]
    M = N * Hp * Wp
    inv_m = 1.0 / M

    # ---------------- MaxPool2d(kernel_size=2) ----------------
    x = x_ref[...]
    xa = jnp.maximum(x[:, :, 0], x[:, :, 1])             # max over the H pair
    pooled = jnp.maximum(xa[..., :Cp], xa[..., Cp:])      # max over the W pair
    # pooled: (N, Hp, Wp, Cp)

    def conv_bn_relu(inp, pad_ref, col_ref, w_ref, g_ref, b_ref, C):
        # ---- zero only the 1-pixel halo, write the interior exactly once ----
        pad_ref[:, 0:1, :, :] = jnp.zeros((N, 1, Wp + 2, C), jnp.float32)
        pad_ref[:, Hp + 1:Hp + 2, :, :] = jnp.zeros((N, 1, Wp + 2, C), jnp.float32)
        pad_ref[:, 1:Hp + 1, 0:1, :] = jnp.zeros((N, Hp, 1, C), jnp.float32)
        pad_ref[:, 1:Hp + 1, Wp + 1:Wp + 2, :] = jnp.zeros((N, Hp, 1, C), jnp.float32)
        pad_ref[:, 1:Hp + 1, 1:Wp + 1, :] = inp

        # ---- im2col: one lane-aligned C(=128k)-wide column block per tap ----
        for t in range(9):
            dh, dw = t // 3, t % 3
            patch = pad_ref[:, dh:dh + Hp, dw:dw + Wp, :]       # (N, Hp, Wp, C)
            col_ref[:, t * C:(t + 1) * C] = patch.reshape(M, C)

        # ---- single MXU matmul: (M, 9C) @ (9C, Co) ----
        acc = jnp.dot(col_ref[...], w_ref[...],
                      preferred_element_type=jnp.float32)       # (M, Co)

        # ---- BatchNorm2d (training-mode batch stats, fused single pass) ----
        s = jnp.sum(acc, axis=0, keepdims=True)
        ss = jnp.sum(acc * acc, axis=0, keepdims=True)
        mean = s * inv_m
        var = jnp.maximum(ss * inv_m - mean * mean, 0.0)
        scale = g_ref[...] * jax.lax.rsqrt(var + EPS)
        shift = b_ref[...] - mean * scale
        return jnp.maximum(acc * scale + shift, 0.0)            # ReLU

    y1 = conv_bn_relu(pooled, pad1_ref, col1_ref, w1_ref, g1_ref, b1_ref, Cp)
    y2 = conv_bn_relu(y1.reshape(N, Hp, Wp, Co), pad2_ref, col2_ref,
                      w2_ref, g2_ref, b2_ref, Co)
    o_ref[...] = y2
    # TODO(synk): PyTorch BatchNorm also updates running_mean/var buffers in
    # training mode; that side effect does not influence the forward output.


def down_block(x_nchw, params):
    """DownBlock forward. x_nchw: (N, Cin, H, W) f32 -> (N, Cout, H/2, W/2) f32."""
    w1, g1, b1, w2, g2, b2 = params
    N, Cin, H, W = x_nchw.shape
    Hp, Wp = H // 2, W // 2
    Cout = w1.shape[-1]
    Cp = _round_up(Cin, LANE)
    Co = _round_up(Cout, LANE)
    M = N * Hp * Wp

    # glue: NCHW -> NHWC, lane-dense channel pad, then a *free* row-major
    # reshape folding the 2x2 pool window: (N,H,W,Cp) -> (N,Hp,2,Wp,2*Cp).
    x_nhwc = jnp.transpose(x_nchw, (0, 2, 3, 1))
    x_nhwc = jnp.pad(x_nhwc, ((0, 0), (0, 0), (0, 0), (0, Cp - Cin)))
    x5 = x_nhwc.reshape(N, Hp, 2, Wp, 2 * Cp)

    # weights (HWIO): pad channels, flatten the 3x3 taps into the K axis.
    w1p = jnp.pad(w1, ((0, 0), (0, 0), (0, Cp - Cin), (0, Co - Cout))).reshape(9 * Cp, Co)
    w2p = jnp.pad(w2, ((0, 0), (0, 0), (0, Co - Cout), (0, Co - Cout))).reshape(9 * Co, Co)
    g1p = jnp.pad(g1, (0, Co - Cout)).reshape(1, Co)
    b1p = jnp.pad(b1, (0, Co - Cout)).reshape(1, Co)
    g2p = jnp.pad(g2, (0, Co - Cout)).reshape(1, Co)
    b2p = jnp.pad(b2, (0, Co - Cout)).reshape(1, Co)

    # explicit VMEM budget (inputs + output + scratch) with headroom, clamped
    # so the request is valid on v7x's 64 MiB VMEM as well.
    vmem_need = 4 * (x5.size + w1p.size + w2p.size + 4 * Co + M * Co
                     + N * (Hp + 2) * (Wp + 2) * (Cp + Co)
                     + M * 9 * (Cp + Co))
    vmem_limit = int(min(max(2 * vmem_need, 16 * 1024 * 1024), 48 * 1024 * 1024))

    out2d = pl.pallas_call(
        down_block_kernel,
        out_shape=jax.ShapeDtypeStruct((M, Co), jnp.float32),
        in_specs=[pl.BlockSpec(memory_space=pltpu.MemorySpace.VMEM)] * 7,
        out_specs=pl.BlockSpec(memory_space=pltpu.MemorySpace.VMEM),
        scratch_shapes=[
            pltpu.VMEM((N, Hp + 2, Wp + 2, Cp), jnp.float32),   # padded pooled input
            pltpu.VMEM((M, 9 * Cp), jnp.float32),               # im2col slab, stage 1
            pltpu.VMEM((N, Hp + 2, Wp + 2, Co), jnp.float32),   # padded stage-1 output
            pltpu.VMEM((M, 9 * Co), jnp.float32),               # im2col slab, stage 2
        ],
        compiler_params=pltpu.CompilerParams(vmem_limit_bytes=vmem_limit),
    )(x5, w1p, g1p, b1p, w2p, g2p, b2p)

    # glue: drop the channel padding, back to NCHW like the PyTorch module.
    out = out2d.reshape(N, Hp, Wp, Co)[..., :Cout]
    return jnp.transpose(out, (0, 3, 1, 2))


def reference(x_nchw, w1, g1, b1, w2, g2, b2):
    """Pure-JAX reference mirroring the PyTorch forward (training-mode BN)."""
    N, C, H, W = x_nchw.shape
    xp = x_nchw.reshape(N, C, H // 2, 2, W // 2, 2).max(axis=(3, 5))

    def conv_bn_relu(x, w, g, b):
        y = jax.lax.conv_general_dilated(
            x, w, window_strides=(1, 1), padding="SAME",
            dimension_numbers=("NCHW", "HWIO", "NCHW"),
            precision=jax.lax.Precision.HIGHEST)
        mean = y.mean(axis=(0, 2, 3), keepdims=True)
        var = ((y - mean) ** 2).mean(axis=(0, 2, 3), keepdims=True)
        y = (y - mean) / jnp.sqrt(var + EPS) * g.reshape(1, -1, 1, 1) \
            + b.reshape(1, -1, 1, 1)
        return jnp.maximum(y, 0.0)

    y = conv_bn_relu(xp, w1, g1, b1)
    return conv_bn_relu(y, w2, g2, b2)


if __name__ == "__main__":
    N, Cin, Cout, H = 2, 4, 8, 16

    key = jax.random.PRNGKey(0)
    ks = jax.random.split(key, 7)
    x = jax.random.normal(ks[0], (N, Cin, H, H), jnp.float32)
    # deterministic synthetic parameters (shapes per nn.Conv2d / nn.BatchNorm2d)
    w1 = jax.random.normal(ks[1], (3, 3, Cin, Cout), jnp.float32) * 0.1
    g1 = jax.random.uniform(ks[2], (Cout,), jnp.float32, 0.5, 1.5)
    b1 = jax.random.normal(ks[3], (Cout,), jnp.float32) * 0.1
    w2 = jax.random.normal(ks[4], (3, 3, Cout, Cout), jnp.float32) * 0.1
    g2 = jax.random.uniform(ks[5], (Cout,), jnp.float32, 0.5, 1.5)
    b2 = jax.random.normal(ks[6], (Cout,), jnp.float32) * 0.1
    params = (w1, g1, b1, w2, g2, b2)

    out = jax.jit(down_block)(x, params)
    out = jax.block_until_ready(out)
    assert out.shape == (N, Cout, H // 2, H // 2), out.shape

    ref = reference(x, *params)
    max_err = float(jnp.max(jnp.abs(out - ref)))
    if not bool(jnp.allclose(out, ref, atol=2e-3, rtol=2e-3)):
        raise AssertionError(f"kernel/reference mismatch, max abs err = {max_err}")

    print("KERNEL_OK")
</pallas_src>

<mosaic_0001>
module attributes {stable_mosaic.version = 11 : i64} {
  func.func @down_block_kernel(%arg0: memref<2x8x2x8x256xf32, #tpu.memory_space<vmem>>, %arg1: memref<1152x128xf32, #tpu.memory_space<vmem>>, %arg2: memref<1x128xf32, #tpu.memory_space<vmem>>, %arg3: memref<1x128xf32, #tpu.memory_space<vmem>>, %arg4: memref<1152x128xf32, #tpu.memory_space<vmem>>, %arg5: memref<1x128xf32, #tpu.memory_space<vmem>>, %arg6: memref<1x128xf32, #tpu.memory_space<vmem>>, %arg7: memref<128x128xf32, #tpu.memory_space<vmem>>, %arg8: memref<2x10x10x128xf32, #tpu.memory_space<vmem>>, %arg9: memref<128x1152xf32, #tpu.memory_space<vmem>>, %arg10: memref<2x10x10x128xf32, #tpu.memory_space<vmem>>, %arg11: memref<128x1152xf32, #tpu.memory_space<vmem>>) attributes {dimension_semantics = [], scalar_prefetch = 0 : i64, scratch_operands = 4 : i64, tpu.core_type = #tpu.core_type<tc>} {
    %c0 = arith.constant 0 : index
    %c0_0 = arith.constant 0 : index
    %c0_1 = arith.constant 0 : index
    %c0_2 = arith.constant 0 : index
    %c0_3 = arith.constant 0 : index
    %0 = vector.load %arg0[%c0, %c0_0, %c0_1, %c0_2, %c0_3] : memref<2x8x2x8x256xf32, #tpu.memory_space<vmem>>, vector<2x8x2x8x256xf32>
    %1 = vector.extract_strided_slice %0 {offsets = [0, 0, 0, 0, 0], sizes = [2, 8, 1, 8, 256], strides = [1, 1, 1, 1, 1]} : vector<2x8x2x8x256xf32> to vector<2x8x1x8x256xf32>
    %2 = vector.shape_cast %1 : vector<2x8x1x8x256xf32> to vector<2x8x8x256xf32>
    %3 = vector.extract_strided_slice %0 {offsets = [0, 0, 1, 0, 0], sizes = [2, 8, 1, 8, 256], strides = [1, 1, 1, 1, 1]} : vector<2x8x2x8x256xf32> to vector<2x8x1x8x256xf32>
    %4 = vector.shape_cast %3 : vector<2x8x1x8x256xf32> to vector<2x8x8x256xf32>
    %5 = arith.maximumf %2, %4 : vector<2x8x8x256xf32>
    %6 = vector.extract_strided_slice %5 {offsets = [0, 0, 0, 0], sizes = [2, 8, 8, 128], strides = [1, 1, 1, 1]} : vector<2x8x8x256xf32> to vector<2x8x8x128xf32>
    %7 = vector.extract_strided_slice %5 {offsets = [0, 0, 0, 128], sizes = [2, 8, 8, 128], strides = [1, 1, 1, 1]} : vector<2x8x8x256xf32> to vector<2x8x8x128xf32>
    %8 = arith.maximumf %6, %7 : vector<2x8x8x128xf32>
    %cst = arith.constant 0.000000e+00 : f32
    %9 = vector.broadcast %cst : f32 to vector<2x1x10x128xf32>
    %c0_4 = arith.constant 0 : index
    %c0_5 = arith.constant 0 : index
    %c0_6 = arith.constant 0 : index
    %c0_7 = arith.constant 0 : index
    %10 = vector.load %arg8[%c0_4, %c0_5, %c0_6, %c0_7] : memref<2x10x10x128xf32, #tpu.memory_space<vmem>>, vector<2x1x10x128xf32>
    tpu.vector_store %arg8[%c0_4, %c0_5, %c0_6, %c0_7], %9 {strides = array<i32>} : memref<2x10x10x128xf32, #tpu.memory_space<vmem>>, vector<2x1x10x128xf32>,
    %cst_8 = arith.constant 0.000000e+00 : f32
    %11 = vector.broadcast %cst_8 : f32 to vector<2x1x10x128xf32>
    %c0_9 = arith.constant 0 : index
    %c9 = arith.constant 9 : index
    %c0_10 = arith.constant 0 : index
    %c0_11 = arith.constant 0 : index
    %12 = vector.load %arg8[%c0_9, %c9, %c0_10, %c0_11] : memref<2x10x10x128xf32, #tpu.memory_space<vmem>>, vector<2x1x10x128xf32>
    tpu.vector_store %arg8[%c0_9, %c9, %c0_10, %c0_11], %11 {strides = array<i32>} : memref<2x10x10x128xf32, #tpu.memory_space<vmem>>, vector<2x1x10x128xf32>,
    %cst_12 = arith.constant 0.000000e+00 : f32
    %13 = vector.broadcast %cst_12 : f32 to vector<2x8x1x128xf32>
    %c0_13 = arith.constant 0 : index
    %c1 = arith.constant 1 : index
    %c0_14 = arith.constant 0 : index
    %c0_15 = arith.constant 0 : index
    %14 = vector.load %arg8[%c0_13, %c1, %c0_14, %c0_15] : memref<2x10x10x128xf32, #tpu.memory_space<vmem>>, vector<2x8x1x128xf32>
    tpu.vector_store %arg8[%c0_13, %c1, %c0_14, %c0_15], %13 {strides = array<i32>} : memref<2x10x10x128xf32, #tpu.memory_space<vmem>>, vector<2x8x1x128xf32>,
    %cst_16 = arith.constant 0.000000e+00 : f32
    %15 = vector.broadcast %cst_16 : f32 to vector<2x8x1x128xf32>
    %c0_17 = arith.constant 0 : index
    %c1_18 = arith.constant 1 : index
    %c9_19 = arith.constant 9 : index
    %c0_20 = arith.constant 0 : index
    %16 = vector.load %arg8[%c0_17, %c1_18, %c9_19, %c0_20] : memref<2x10x10x128xf32, #tpu.memory_space<vmem>>, vector<2x8x1x128xf32>
    tpu.vector_store %arg8[%c0_17, %c1_18, %c9_19, %c0_20], %15 {strides = array<i32>} : memref<2x10x10x128xf32, #tpu.memory_space<vmem>>, vector<2x8x1x128xf32>,
    %c0_21 = arith.constant 0 : index
    %c1_22 = arith.constant 1 : index
    %c1_23 = arith.constant 1 : index
    %c0_24 = arith.constant 0 : index
    %17 = vector.load %arg8[%c0_21, %c1_22, %c1_23, %c0_24] : memref<2x10x10x128xf32, #tpu.memory_space<vmem>>, vector<2x8x8x128xf32>
    tpu.vector_store %arg8[%c0_21, %c1_22, %c1_23, %c0_24], %8 {strides = array<i32>} : memref<2x10x10x128xf32, #tpu.memory_space<vmem>>, vector<2x8x8x128xf32>,
    %c0_25 = arith.constant 0 : index
    %c0_26 = arith.constant 0 : index
    %c0_27 = arith.constant 0 : index
    %c0_28 = arith.constant 0 : index
    %18 = vector.load %arg8[%c0_25, %c0_26, %c0_27, %c0_28] : memref<2x10x10x128xf32, #tpu.memory_space<vmem>>, vector<2x8x8x128xf32>
    %19 = vector.shape_cast %18 : vector<2x8x8x128xf32> to vector<128x128xf32>
    %c0_29 = arith.constant 0 : index
    %c0_30 = arith.constant 0 : index
    %20 = vector.load %arg9[%c0_29, %c0_30] : memref<128x1152xf32, #tpu.memory_space<vmem>>, vector<128x128xf32>
    tpu.vector_store %arg9[%c0_29, %c0_30], %19 {strides = array<i32>} : memref<128x1152xf32, #tpu.memory_space<vmem>>, vector<128x128xf32>,
    %c0_31 = arith.constant 0 : index
    %c0_32 = arith.constant 0 : index
    %c1_33 = arith.constant 1 : index
    %c0_34 = arith.constant 0 : index
    %21 = vector.load %arg8[%c0_31, %c0_32, %c1_33, %c0_34] : memref<2x10x10x128xf32, #tpu.memory_space<vmem>>, vector<2x8x8x128xf32>
    %22 = vector.shape_cast %21 : vector<2x8x8x128xf32> to vector<128x128xf32>
    %c0_35 = arith.constant 0 : index
    %c128 = arith.constant 128 : index
    %23 = vector.load %arg9[%c0_35, %c128] : memref<128x1152xf32, #tpu.memory_space<vmem>>, vector<128x128xf32>
    tpu.vector_store %arg9[%c0_35, %c128], %22 {strides = array<i32>} : memref<128x1152xf32, #tpu.memory_space<vmem>>, vector<128x128xf32>,
    %c0_36 = arith.constant 0 : index
    %c0_37 = arith.constant 0 : index
    %c2 = arith.constant 2 : index
    %c0_38 = arith.constant 0 : index
    %24 = vector.load %arg8[%c0_36, %c0_37, %c2, %c0_38] : memref<2x10x10x128xf32, #tpu.memory_space<vmem>>, vector<2x8x8x128xf32>
    %25 = vector.shape_cast %24 : vector<2x8x8x128xf32> to vector<128x128xf32>
    %c0_39 = arith.constant 0 : index
    %c256 = arith.constant 256 : index
    %26 = vector.load %arg9[%c0_39, %c256] : memref<128x1152xf32, #tpu.memory_space<vmem>>, vector<128x128xf32>
    tpu.vector_store %arg9[%c0_39, %c256], %25 {strides = array<i32>} : memref<128x1152xf32, #tpu.memory_space<vmem>>, vector<128x128xf32>,
    %c0_40 = arith.constant 0 : index
    %c1_41 = arith.constant 1 : index
    %c0_42 = arith.constant 0 : index
    %c0_43 = arith.constant 0 : index
    %27 = vector.load %arg8[%c0_40, %c1_41, %c0_42, %c0_43] : memref<2x10x10x128xf32, #tpu.memory_space<vmem>>, vector<2x8x8x128xf32>
    %28 = vector.shape_cast %27 : vector<2x8x8x128xf32> to vector<128x128xf32>
    %c0_44 = arith.constant 0 : index
    %c384 = arith.constant 384 : index
    %29 = vector.load %arg9[%c0_44, %c384] : memref<128x1152xf32, #tpu.memory_space<vmem>>, vector<128x128xf32>
    tpu.vector_store %arg9[%c0_44, %c384], %28 {strides = array<i32>} : memref<128x1152xf32, #tpu.memory_space<vmem>>, vector<128x128xf32>,
    %c0_45 = arith.constant 0 : index
    %c1_46 = arith.constant 1 : index
    %c1_47 = arith.constant 1 : index
    %c0_48 = arith.constant 0 : index
    %30 = vector.load %arg8[%c0_45, %c1_46, %c1_47, %c0_48] : memref<2x10x10x128xf32, #tpu.memory_space<vmem>>, vector<2x8x8x128xf32>
    %31 = vector.shape_cast %30 : vector<2x8x8x128xf32> to vector<128x128xf32>
    %c0_49 = arith.constant 0 : index
    %c512 = arith.constant 512 : index
    %32 = vector.load %arg9[%c0_49, %c512] : memref<128x1152xf32, #tpu.memory_space<vmem>>, vector<128x128xf32>
    tpu.vector_store %arg9[%c0_49, %c512], %31 {strides = array<i32>} : memref<128x1152xf32, #tpu.memory_space<vmem>>, vector<128x128xf32>,
    %c0_50 = arith.constant 0 : index
    %c1_51 = arith.constant 1 : index
    %c2_52 = arith.constant 2 : index
    %c0_53 = arith.constant 0 : index
    %33 = vector.load %arg8[%c0_50, %c1_51, %c2_52, %c0_53] : memref<2x10x10x128xf32, #tpu.memory_space<vmem>>, vector<2x8x8x128xf32>
    %34 = vector.shape_cast %33 : vector<2x8x8x128xf32> to vector<128x128xf32>
    %c0_54 = arith.constant 0 : index
    %c640 = arith.constant 640 : index
    %35 = vector.load %arg9[%c0_54, %c640] : memref<128x1152xf32, #tpu.memory_space<vmem>>, vector<128x128xf32>
    tpu.vector_store %arg9[%c0_54, %c640], %34 {strides = array<i32>} : memref<128x1152xf32, #tpu.memory_space<vmem>>, vector<128x128xf32>,
    %c0_55 = arith.constant 0 : index
    %c2_56 = arith.constant 2 : index
    %c0_57 = arith.constant 0 : index
    %c0_58 = arith.constant 0 : index
    %36 = vector.load %arg8[%c0_55, %c2_56, %c0_57, %c0_58] : memref<2x10x10x128xf32, #tpu.memory_space<vmem>>, vector<2x8x8x128xf32>
    %37 = vector.shape_cast %36 : vector<2x8x8x128xf32> to vector<128x128xf32>
    %c0_59 = arith.constant 0 : index
    %c768 = arith.constant 768 : index
    %38 = vector.load %arg9[%c0_59, %c768] : memref<128x1152xf32, #tpu.memory_space<vmem>>, vector<128x128xf32>
    tpu.vector_store %arg9[%c0_59, %c768], %37 {strides = array<i32>} : memref<128x1152xf32, #tpu.memory_space<vmem>>, vector<128x128xf32>,
    %c0_60 = arith.constant 0 : index
    %c2_61 = arith.constant 2 : index
    %c1_62 = arith.constant 1 : index
    %c0_63 = arith.constant 0 : index
    %39 = vector.load %arg8[%c0_60, %c2_61, %c1_62, %c0_63] : memref<2x10x10x128xf32, #tpu.memory_space<vmem>>, vector<2x8x8x128xf32>
    %40 = vector.shape_cast %39 : vector<2x8x8x128xf32> to vector<128x128xf32>
    %c0_64 = arith.constant 0 : index
    %c896 = arith.constant 896 : index
    %41 = vector.load %arg9[%c0_64, %c896] : memref<128x1152xf32, #tpu.memory_space<vmem>>, vector<128x128xf32>
    tpu.vector_store %arg9[%c0_64, %c896], %40 {strides = array<i32>} : memref<128x1152xf32, #tpu.memory_space<vmem>>, vector<128x128xf32>,
    %c0_65 = arith.constant 0 : index
    %c2_66 = arith.constant 2 : index
    %c2_67 = arith.constant 2 : index
    %c0_68 = arith.constant 0 : index
    %42 = vector.load %arg8[%c0_65, %c2_66, %c2_67, %c0_68] : memref<2x10x10x128xf32, #tpu.memory_space<vmem>>, vector<2x8x8x128xf32>
    %43 = vector.shape_cast %42 : vector<2x8x8x128xf32> to vector<128x128xf32>
    %c0_69 = arith.constant 0 : index
    %c1024 = arith.constant 1024 : index
    %44 = vector.load %arg9[%c0_69, %c1024] : memref<128x1152xf32, #tpu.memory_space<vmem>>, vector<128x128xf32>
    tpu.vector_store %arg9[%c0_69, %c1024], %43 {strides = array<i32>} : memref<128x1152xf32, #tpu.memory_space<vmem>>, vector<128x128xf32>,
    %c0_70 = arith.constant 0 : index
    %c0_71 = arith.constant 0 : index
    %45 = vector.load %arg9[%c0_70, %c0_71] : memref<128x1152xf32, #tpu.memory_space<vmem>>, vector<128x1152xf32>
    %c0_72 = arith.constant 0 : index
    %c0_73 = arith.constant 0 : index
    %46 = vector.load %arg1[%c0_72, %c0_73] : memref<1152x128xf32, #tpu.memory_space<vmem>>, vector<1152x128xf32>
    %cst_74 = arith.constant dense<0.000000e+00> : vector<128x128xf32>
    %47 = tpu.matmul %45, %46, %cst_74 {dimension_numbers = #tpu.dot_dimension_numbers<[1], [0], [0], [1], [0, 0, 1, 1], [], []>} : vector<128x1152xf32>, vector<1152x128xf32>, vector<128x128xf32> -> vector<128x128xf32>
    %cst_75 = arith.constant dense<0.000000e+00> : vector<128xf32>
    %48 = vector.multi_reduction <add>, %47, %cst_75 [0] : vector<128x128xf32> to vector<128xf32>
    %49 = vector.shape_cast %48 : vector<128xf32> to vector<1x128xf32>
    %50 = arith.mulf %47, %47 : vector<128x128xf32>
    %cst_76 = arith.constant dense<0.000000e+00> : vector<128xf32>
    %51 = vector.multi_reduction <add>, %50, %cst_76 [0] : vector<128x128xf32> to vector<128xf32>
    %52 = vector.shape_cast %51 : vector<128xf32> to vector<1x128xf32>
    %cst_77 = arith.constant 7.812500e-03 : f32
    %53 = vector.broadcast %cst_77 : f32 to vector<1x128xf32>
    %54 = arith.mulf %49, %53 : vector<1x128xf32>
    %cst_78 = arith.constant 7.812500e-03 : f32
    %55 = vector.broadcast %cst_78 : f32 to vector<1x128xf32>
    %56 = arith.mulf %52, %55 : vector<1x128xf32>
    %57 = arith.mulf %54, %54 : vector<1x128xf32>
    %58 = arith.subf %56, %57 : vector<1x128xf32>
    %cst_79 = arith.constant 0.000000e+00 : f32
    %59 = vector.broadcast %cst_79 : f32 to vector<1x128xf32>
    %60 = arith.maximumf %58, %59 : vector<1x128xf32>
    %c0_80 = arith.constant 0 : index
    %c0_81 = arith.constant 0 : index
    %61 = vector.load %arg2[%c0_80, %c0_81] : memref<1x128xf32, #tpu.memory_space<vmem>>, vector<1x128xf32>
    %cst_82 = arith.constant 9.99999974E-6 : f32
    %62 = vector.broadcast %cst_82 : f32 to vector<1x128xf32>
    %63 = arith.addf %60, %62 : vector<1x128xf32>
    %64 = math.rsqrt %63 : vector<1x128xf32>
    %65 = arith.mulf %61, %64 : vector<1x128xf32>
    %c0_83 = arith.constant 0 : index
    %c0_84 = arith.constant 0 : index
    %66 = vector.load %arg3[%c0_83, %c0_84] : memref<1x128xf32, #tpu.memory_space<vmem>>, vector<1x128xf32>
    %67 = arith.mulf %54, %65 : vector<1x128xf32>
    %68 = arith.subf %66, %67 : vector<1x128xf32>
    %69 = vector.broadcast %65 : vector<1x128xf32> to vector<128x128xf32>
    %70 = arith.mulf %47, %69 : vector<128x128xf32>
    %71 = vector.broadcast %68 : vector<1x128xf32> to vector<128x128xf32>
    %72 = arith.addf %70, %71 : vector<128x128xf32>
    %cst_85 = arith.constant 0.000000e+00 : f32
    %73 = vector.broadcast %cst_85 : f32 to vector<128x128xf32>
    %74 = arith.maximumf %72, %73 : vector<128x128xf32>
    %75 = vector.shape_cast %74 : vector<128x128xf32> to vector<2x8x8x128xf32>
    %cst_86 = arith.constant 0.000000e+00 : f32
    %76 = vector.broadcast %cst_86 : f32 to vector<2x1x10x128xf32>
    %c0_87 = arith.constant 0 : index
    %c0_88 = arith.constant 0 : index
    %c0_89 = arith.constant 0 : index
    %c0_90 = arith.constant 0 : index
    %77 = vector.load %arg10[%c0_87, %c0_88, %c0_89, %c0_90] : memref<2x10x10x128xf32, #tpu.memory_space<vmem>>, vector<2x1x10x128xf32>
    tpu.vector_store %arg10[%c0_87, %c0_88, %c0_89, %c0_90], %76 {strides = array<i32>} : memref<2x10x10x128xf32, #tpu.memory_space<vmem>>, vector<2x1x10x128xf32>,
    %cst_91 = arith.constant 0.000000e+00 : f32
    %78 = vector.broadcast %cst_91 : f32 to vector<2x1x10x128xf32>
    %c0_92 = arith.constant 0 : index
    %c9_93 = arith.constant 9 : index
    %c0_94 = arith.constant 0 : index
    %c0_95 = arith.constant 0 : index
    %79 = vector.load %arg10[%c0_92, %c9_93, %c0_94, %c0_95] : memref<2x10x10x128xf32, #tpu.memory_space<vmem>>, vector<2x1x10x128xf32>
    tpu.vector_store %arg10[%c0_92, %c9_93, %c0_94, %c0_95], %78 {strides = array<i32>} : memref<2x10x10x128xf32, #tpu.memory_space<vmem>>, vector<2x1x10x128xf32>,
    %cst_96 = arith.constant 0.000000e+00 : f32
    %80 = vector.broadcast %cst_96 : f32 to vector<2x8x1x128xf32>
    %c0_97 = arith.constant 0 : index
    %c1_98 = arith.constant 1 : index
    %c0_99 = arith.constant 0 : index
    %c0_100 = arith.constant 0 : index
    %81 = vector.load %arg10[%c0_97, %c1_98, %c0_99, %c0_100] : memref<2x10x10x128xf32, #tpu.memory_space<vmem>>, vector<2x8x1x128xf32>
    tpu.vector_store %arg10[%c0_97, %c1_98, %c0_99, %c0_100], %80 {strides = array<i32>} : memref<2x10x10x128xf32, #tpu.memory_space<vmem>>, vector<2x8x1x128xf32>,
    %cst_101 = arith.constant 0.000000e+00 : f32
    %82 = vector.broadcast %cst_101 : f32 to vector<2x8x1x128xf32>
    %c0_102 = arith.constant 0 : index
    %c1_103 = arith.constant 1 : index
    %c9_104 = arith.constant 9 : index
    %c0_105 = arith.constant 0 : index
    %83 = vector.load %arg10[%c0_102, %c1_103, %c9_104, %c0_105] : memref<2x10x10x128xf32, #tpu.memory_space<vmem>>, vector<2x8x1x128xf32>
    tpu.vector_store %arg10[%c0_102, %c1_103, %c9_104, %c0_105], %82 {strides = array<i32>} : memref<2x10x10x128xf32, #tpu.memory_space<vmem>>, vector<2x8x1x128xf32>,
    %c0_106 = arith.constant 0 : index
    %c1_107 = arith.constant 1 : index
    %c1_108 = arith.constant 1 : index
    %c0_109 = arith.constant 0 : index
    %84 = vector.load %arg10[%c0_106, %c1_107, %c1_108, %c0_109] : memref<2x10x10x128xf32, #tpu.memory_space<vmem>>, vector<2x8x8x128xf32>
    tpu.vector_store %arg10[%c0_106, %c1_107, %c1_108, %c0_109], %75 {strides = array<i32>} : memref<2x10x10x128xf32, #tpu.memory_space<vmem>>, vector<2x8x8x128xf32>,
    %c0_110 = arith.constant 0 : index
    %c0_111 = arith.constant 0 : index
    %c0_112 = arith.constant 0 : index
    %c0_113 = arith.constant 0 : index
    %85 = vector.load %arg10[%c0_110, %c0_111, %c0_112, %c0_113] : memref<2x10x10x128xf32, #tpu.memory_space<vmem>>, vector<2x8x8x128xf32>
    %86 = vector.shape_cast %85 : vector<2x8x8x128xf32> to vector<128x128xf32>
    %c0_114 = arith.constant 0 : index
    %c0_115 = arith.constant 0 : index
    %87 = vector.load %arg11[%c0_114, %c0_115] : memref<128x1152xf32, #tpu.memory_space<vmem>>, vector<128x128xf32>
    tpu.vector_store %arg11[%c0_114, %c0_115], %86 {strides = array<i32>} : memref<128x1152xf32, #tpu.memory_space<vmem>>, vector<128x128xf32>,
    %c0_116 = arith.constant 0 : index
    %c0_117 = arith.constant 0 : index
    %c1_118 = arith.constant 1 : index
    %c0_119 = arith.constant 0 : index
    %88 = vector.load %arg10[%c0_116, %c0_117, %c1_118, %c0_119] : memref<2x10x10x128xf32, #tpu.memory_space<vmem>>, vector<2x8x8x128xf32>
    %89 = vector.shape_cast %88 : vector<2x8x8x128xf32> to vector<128x128xf32>
    %c0_120 = arith.constant 0 : index
    %c128_121 = arith.constant 128 : index
    %90 = vector.load %arg11[%c0_120, %c128_121] : memref<128x1152xf32, #tpu.memory_space<vmem>>, vector<128x128xf32>
    tpu.vector_store %arg11[%c0_120, %c128_121], %89 {strides = array<i32>} : memref<128x1152xf32, #tpu.memory_space<vmem>>, vector<128x128xf32>,
    %c0_122 = arith.constant 0 : index
    %c0_123 = arith.constant 0 : index
    %c2_124 = arith.constant 2 : index
    %c0_125 = arith.constant 0 : index
    %91 = vector.load %arg10[%c0_122, %c0_123, %c2_124, %c0_125] : memref<2x10x10x128xf32, #tpu.memory_space<vmem>>, vector<2x8x8x128xf32>
    %92 = vector.shape_cast %91 : vector<2x8x8x128xf32> to vector<128x128xf32>
    %c0_126 = arith.constant 0 : index
    %c256_127 = arith.constant 256 : index
    %93 = vector.load %arg11[%c0_126, %c256_127] : memref<128x1152xf32, #tpu.memory_space<vmem>>, vector<128x128xf32>
    tpu.vector_store %arg11[%c0_126, %c256_127], %92 {strides = array<i32>} : memref<128x1152xf32, #tpu.memory_space<vmem>>, vector<128x128xf32>,
    %c0_128 = arith.constant 0 : index
    %c1_129 = arith.constant 1 : index
    %c0_130 = arith.constant 0 : index
    %c0_131 = arith.constant 0 : index
    %94 = vector.load %arg10[%c0_128, %c1_129, %c0_130, %c0_131] : memref<2x10x10x128xf32, #tpu.memory_space<vmem>>, vector<2x8x8x128xf32>
    %95 = vector.shape_cast %94 : vector<2x8x8x128xf32> to vector<128x128xf32>
    %c0_132 = arith.constant 0 : index
    %c384_133 = arith.constant 384 : index
    %96 = vector.load %arg11[%c0_132, %c384_133] : memref<128x1152xf32, #tpu.memory_space<vmem>>, vector<128x128xf32>
    tpu.vector_store %arg11[%c0_132, %c384_133], %95 {strides = array<i32>} : memref<128x1152xf32, #tpu.memory_space<vmem>>, vector<128x128xf32>,
    %c0_134 = arith.constant 0 : index
    %c1_135 = arith.constant 1 : index
    %c1_136 = arith.constant 1 : index
    %c0_137 = arith.constant 0 : index
    %97 = vector.load %arg10[%c0_134, %c1_135, %c1_136, %c0_137] : memref<2x10x10x128xf32, #tpu.memory_space<vmem>>, vector<2x8x8x128xf32>
    %98 = vector.shape_cast %97 : vector<2x8x8x128xf32> to vector<128x128xf32>
    %c0_138 = arith.constant 0 : index
    %c512_139 = arith.constant 512 : index
    %99 = vector.load %arg11[%c0_138, %c512_139] : memref<128x1152xf32, #tpu.memory_space<vmem>>, vector<128x128xf32>
    tpu.vector_store %arg11[%c0_138, %c512_139], %98 {strides = array<i32>} : memref<128x1152xf32, #tpu.memory_space<vmem>>, vector<128x128xf32>,
    %c0_140 = arith.constant 0 : index
    %c1_141 = arith.constant 1 : index
    %c2_142 = arith.constant 2 : index
    %c0_143 = arith.constant 0 : index
    %100 = vector.load %arg10[%c0_140, %c1_141, %c2_142, %c0_143] : memref<2x10x10x128xf32, #tpu.memory_space<vmem>>, vector<2x8x8x128xf32>
    %101 = vector.shape_cast %100 : vector<2x8x8x128xf32> to vector<128x128xf32>
    %c0_144 = arith.constant 0 : index
    %c640_145 = arith.constant 640 : index
    %102 = vector.load %arg11[%c0_144, %c640_145] : memref<128x1152xf32, #tpu.memory_space<vmem>>, vector<128x128xf32>
    tpu.vector_store %arg11[%c0_144, %c640_145], %101 {strides = array<i32>} : memref<128x1152xf32, #tpu.memory_space<vmem>>, vector<128x128xf32>,
    %c0_146 = arith.constant 0 : index
    %c2_147 = arith.constant 2 : index
    %c0_148 = arith.constant 0 : index
    %c0_149 = arith.constant 0 : index
    %103 = vector.load %arg10[%c0_146, %c2_147, %c0_148, %c0_149] : memref<2x10x10x128xf32, #tpu.memory_space<vmem>>, vector<2x8x8x128xf32>
    %104 = vector.shape_cast %103 : vector<2x8x8x128xf32> to vector<128x128xf32>
    %c0_150 = arith.constant 0 : index
    %c768_151 = arith.constant 768 : index
    %105 = vector.load %arg11[%c0_150, %c768_151] : memref<128x1152xf32, #tpu.memory_space<vmem>>, vector<128x128xf32>
    tpu.vector_store %arg11[%c0_150, %c768_151], %104 {strides = array<i32>} : memref<128x1152xf32, #tpu.memory_space<vmem>>, vector<128x128xf32>,
    %c0_152 = arith.constant 0 : index
    %c2_153 = arith.constant 2 : index
    %c1_154 = arith.constant 1 : index
    %c0_155 = arith.constant 0 : index
    %106 = vector.load %arg10[%c0_152, %c2_153, %c1_154, %c0_155] : memref<2x10x10x128xf32, #tpu.memory_space<vmem>>, vector<2x8x8x128xf32>
    %107 = vector.shape_cast %106 : vector<2x8x8x128xf32> to vector<128x128xf32>
    %c0_156 = arith.constant 0 : index
    %c896_157 = arith.constant 896 : index
    %108 = vector.load %arg11[%c0_156, %c896_157] : memref<128x1152xf32, #tpu.memory_space<vmem>>, vector<128x128xf32>
    tpu.vector_store %arg11[%c0_156, %c896_157], %107 {strides = array<i32>} : memref<128x1152xf32, #tpu.memory_space<vmem>>, vector<128x128xf32>,
    %c0_158 = arith.constant 0 : index
    %c2_159 = arith.constant 2 : index
    %c2_160 = arith.constant 2 : index
    %c0_161 = arith.constant 0 : index
    %109 = vector.load %arg10[%c0_158, %c2_159, %c2_160, %c0_161] : memref<2x10x10x128xf32, #tpu.memory_space<vmem>>, vector<2x8x8x128xf32>
    %110 = vector.shape_cast %109 : vector<2x8x8x128xf32> to vector<128x128xf32>
    %c0_162 = arith.constant 0 : index
    %c1024_163 = arith.constant 1024 : index
    %111 = vector.load %arg11[%c0_162, %c1024_163] : memref<128x1152xf32, #tpu.memory_space<vmem>>, vector<128x128xf32>
    tpu.vector_store %arg11[%c0_162, %c1024_163], %110 {strides = array<i32>} : memref<128x1152xf32, #tpu.memory_space<vmem>>, vector<128x128xf32>,
    %c0_164 = arith.constant 0 : index
    %c0_165 = arith.constant 0 : index
    %112 = vector.load %arg11[%c0_164, %c0_165] : memref<128x1152xf32, #tpu.memory_space<vmem>>, vector<128x1152xf32>
    %c0_166 = arith.constant 0 : index
    %c0_167 = arith.constant 0 : index
    %113 = vector.load %arg4[%c0_166, %c0_167] : memref<1152x128xf32, #tpu.memory_space<vmem>>, vector<1152x128xf32>
    %cst_168 = arith.constant dense<0.000000e+00> : vector<128x128xf32>
    %114 = tpu.matmul %112, %113, %cst_168 {dimension_numbers = #tpu.dot_dimension_numbers<[1], [0], [0], [1], [0, 0, 1, 1], [], []>} : vector<128x1152xf32>, vector<1152x128xf32>, vector<128x128xf32> -> vector<128x128xf32>
    %cst_169 = arith.constant dense<0.000000e+00> : vector<128xf32>
    %115 = vector.multi_reduction <add>, %114, %cst_169 [0] : vector<128x128xf32> to vector<128xf32>
    %116 = vector.shape_cast %115 : vector<128xf32> to vector<1x128xf32>
    %117 = arith.mulf %114, %114 : vector<128x128xf32>
    %cst_170 = arith.constant dense<0.000000e+00> : vector<128xf32>
    %118 = vector.multi_reduction <add>, %117, %cst_170 [0] : vector<128x128xf32> to vector<128xf32>
    %119 = vector.shape_cast %118 : vector<128xf32> to vector<1x128xf32>
    %cst_171 = arith.constant 7.812500e-03 : f32
    %120 = vector.broadcast %cst_171 : f32 to vector<1x128xf32>
    %121 = arith.mulf %116, %120 : vector<1x128xf32>
    %cst_172 = arith.constant 7.812500e-03 : f32
    %122 = vector.broadcast %cst_172 : f32 to vector<1x128xf32>
    %123 = arith.mulf %119, %122 : vector<1x128xf32>
    %124 = arith.mulf %121, %121 : vector<1x128xf32>
    %125 = arith.subf %123, %124 : vector<1x128xf32>
    %cst_173 = arith.constant 0.000000e+00 : f32
    %126 = vector.broadcast %cst_173 : f32 to vector<1x128xf32>
    %127 = arith.maximumf %125, %126 : vector<1x128xf32>
    %c0_174 = arith.constant 0 : index
    %c0_175 = arith.constant 0 : index
    %128 = vector.load %arg5[%c0_174, %c0_175] : memref<1x128xf32, #tpu.memory_space<vmem>>, vector<1x128xf32>
    %cst_176 = arith.constant 9.99999974E-6 : f32
    %129 = vector.broadcast %cst_176 : f32 to vector<1x128xf32>
    %130 = arith.addf %127, %129 : vector<1x128xf32>
    %131 = math.rsqrt %130 : vector<1x128xf32>
    %132 = arith.mulf %128, %131 : vector<1x128xf32>
    %c0_177 = arith.constant 0 : index
    %c0_178 = arith.constant 0 : index
    %133 = vector.load %arg6[%c0_177, %c0_178] : memref<1x128xf32, #tpu.memory_space<vmem>>, vector<1x128xf32>
    %134 = arith.mulf %121, %132 : vector<1x128xf32>
    %135 = arith.subf %133, %134 : vector<1x128xf32>
    %136 = vector.broadcast %132 : vector<1x128xf32> to vector<128x128xf32>
    %137 = arith.mulf %114, %136 : vector<128x128xf32>
    %138 = vector.broadcast %135 : vector<1x128xf32> to vector<128x128xf32>
    %139 = arith.addf %137, %138 : vector<128x128xf32>
    %cst_179 = arith.constant 0.000000e+00 : f32
    %140 = vector.broadcast %cst_179 : f32 to vector<128x128xf32>
    %141 = arith.maximumf %139, %140 : vector<128x128xf32>
    %c0_180 = arith.constant 0 : index
    %c0_181 = arith.constant 0 : index
    %142 = vector.load %arg7[%c0_180, %c0_181] : memref<128x128xf32, #tpu.memory_space<vmem>>, vector<128x128xf32>
    tpu.vector_store %arg7[%c0_180, %c0_181], %141 {strides = array<i32>} : memref<128x128xf32, #tpu.memory_space<vmem>>, vector<128x128xf32>,
    return
  }
}

</mosaic_0001>

<llo_original>
// kernel: down_block.1
$region0: #{down_block.1}
  #allocation0 [shape = 'u32[]', space=smem, size = 0x4, offset = 0x4, fixed_abs, tag = 'smem constant byte address 0x4 - core index']
  #allocation1 [shape = 'u32[144,128]{1,0:T(1,128)}', space=vmem, size = 0x12000, scoped, tag = 'internal scratch']
  #allocation2 [shape = 'f32[2,10,10,128]{3,2,1,0:T(8,128)}', space=vmem, size = 0x28000, scoped, tag = 'scratch operand']
  #allocation3 [shape = 'f32[128,1152]{1,0:T(8,128)}', space=vmem, size = 0x90000, scoped, tag = 'scratch operand']
  #allocation4 [shape = 'f32[2,10,10,128]{3,2,1,0:T(8,128)}', space=vmem, size = 0x28000, scoped, tag = 'scratch operand']
  #allocation5 [shape = 'f32[128,1152]{1,0:T(8,128)}', space=vmem, size = 0x90000, scoped, tag = 'scratch operand']
  %s0 = inlined_call_operand.vmem [shape: f32[2,8,2,8,256], index: 0, kind: input, shape index: {}]
  %s1 = inlined_call_operand.vmem [shape: f32[1152,128], index: 1, kind: input, shape index: {}]
  %s2 = inlined_call_operand.vmem [shape: f32[1,128], index: 2, kind: input, shape index: {}]
  %s3 = inlined_call_operand.vmem [shape: f32[1,128], index: 3, kind: input, shape index: {}]
  %s4 = inlined_call_operand.vmem [shape: f32[1152,128], index: 4, kind: input, shape index: {}]
  %s5 = inlined_call_operand.vmem [shape: f32[1,128], index: 5, kind: input, shape index: {}]
  %s6 = inlined_call_operand.vmem [shape: f32[1,128], index: 6, kind: input, shape index: {}]
  %s7 = inlined_call_operand.vmem [shape: f32[128,128], index: 7, kind: output, shape index: {}]
  %s8 = sld [smem:[#allocation0]]
  $region38: #{down_block.1} parent=0
    _
  %s10 = ssub.s32 1, %s8
  %s11 = scalar_select 0, %s10, %s8
  // Predicated region
  $region2: #{down_block.1} parent=0 // pred_check
    _
  $region3: #{down_block.1} parent=0 // pred_check_branch
    %13 = sbr.rel (0) target = $region5
  $region4: #{down_block.1} parent=0 // pred_region
    _
  $region5: #{down_block.1} parent=0 // pred_fallthru
    _
  // Predicated region
  $region6: #{down_block.1} parent=0 // pred_check
    _
  $region7: #{down_block.1} parent=0 // pred_check_branch
    %15 = sbr.rel (0) target = $region9
  $region8: #{down_block.1} parent=0 // pred_region
    _
  $region9: #{down_block.1} parent=0 // pred_fallthru
    _
  // Predicated region
  $region10: #{down_block.1} parent=0 // pred_check
    _
  $region11: #{down_block.1} parent=0 // pred_check_branch
    %17 = sbr.rel (0) target = $region13
  $region12: #{down_block.1} parent=0 // pred_region
    _
  $region13: #{down_block.1} parent=0 // pred_fallthru
    _
  // Predicated region
  $region14: #{down_block.1} parent=0 // pred_check
    _
  $region15: #{down_block.1} parent=0 // pred_check_branch
    %19 = sbr.rel (0) target = $region17
  $region16: #{down_block.1} parent=0 // pred_region
    _
  $region17: #{down_block.1} parent=0 // pred_fallthru
    _
  // Predicated region
  $region18: #{down_block.1} parent=0 // pred_check
    _
  $region19: #{down_block.1} parent=0 // pred_check_branch
    %21 = sbr.rel (0) target = $region21
  $region20: #{down_block.1} parent=0 // pred_region
    _
  $region21: #{down_block.1} parent=0 // pred_fallthru
    _
  // Predicated region
  $region22: #{down_block.1} parent=0 // pred_check
    _
  $region23: #{down_block.1} parent=0 // pred_check_branch
    %23 = sbr.rel (0) target = $region25
  $region24: #{down_block.1} parent=0 // pred_region
    _
  $region25: #{down_block.1} parent=0 // pred_fallthru
    _
  // Predicated region
  $region26: #{down_block.1} parent=0 // pred_check
    _
  $region27: #{down_block.1} parent=0 // pred_check_branch
    %25 = sbr.rel (0) target = $region29
  $region28: #{down_block.1} parent=0 // pred_region
    _
  $region29: #{down_block.1} parent=0 // pred_fallthru
    _
  %v26 = vld [vmem:[%s0] sm:$0xff]
  %v27 = vld [vmem:[%s0 + $0x8] sm:$0xff]
  %v28 = vld [vmem:[%s0 + $0x10] sm:$0xff]
  %v29 = vld [vmem:[%s0 + $0x18] sm:$0xff]
  %v30 = vld [vmem:[%s0 + $0x20] sm:$0xff]
  %v31 = vld [vmem:[%s0 + $0x28] sm:$0xff]
  %v32 = vld [vmem:[%s0 + $0x30] sm:$0xff]
  %v33 = vld [vmem:[%s0 + $0x38] sm:$0xff]
  %v34 = vld [vmem:[%s0 + $0x40] sm:$0xff]
  %v35 = vld [vmem:[%s0 + $0x48] sm:$0xff]
  %v36 = vld [vmem:[%s0 + $0x50] sm:$0xff]
  %v37 = vld [vmem:[%s0 + $0x58] sm:$0xff]
  %v38 = vld [vmem:[%s0 + $0x60] sm:$0xff]
  %v39 = vld [vmem:[%s0 + $0x68] sm:$0xff]
  %v40 = vld [vmem:[%s0 + $0x70] sm:$0xff]
  %v41 = vld [vmem:[%s0 + $0x78] sm:$0xff]
  %v42 = vld [vmem:[%s0 + $0x80] sm:$0xff]
  %v43 = vld [vmem:[%s0 + $0x88] sm:$0xff]
  %v44 = vld [vmem:[%s0 + $0x90] sm:$0xff]
  %v45 = vld [vmem:[%s0 + $0x98] sm:$0xff]
  %v46 = vld [vmem:[%s0 + $0xa0] sm:$0xff]
  %v47 = vld [vmem:[%s0 + $0xa8] sm:$0xff]
  %v48 = vld [vmem:[%s0 + $0xb0] sm:$0xff]
  %v49 = vld [vmem:[%s0 + $0xb8] sm:$0xff]
  %v50 = vld [vmem:[%s0 + $0xc0] sm:$0xff]
  %v51 = vld [vmem:[%s0 + $0xc8] sm:$0xff]
  %v52 = vld [vmem:[%s0 + $0xd0] sm:$0xff]
  %v53 = vld [vmem:[%s0 + $0xd8] sm:$0xff]
  %v54 = vld [vmem:[%s0 + $0xe0] sm:$0xff]
  %v55 = vld [vmem:[%s0 + $0xe8] sm:$0xff]
  %v56 = vld [vmem:[%s0 + $0xf0] sm:$0xff]
  %v57 = vld [vmem:[%s0 + $0xf8] sm:$0xff]
  %v58 = vld [vmem:[%s0 + $0x100] sm:$0xff]
  %v59 = vld [vmem:[%s0 + $0x108] sm:$0xff]
  %v60 = vld [vmem:[%s0 + $0x110] sm:$0xff]
  %v61 = vld [vmem:[%s0 + $0x118] sm:$0xff]
  %v62 = vld [vmem:[%s0 + $0x120] sm:$0xff]
  %v63 = vld [vmem:[%s0 + $0x128] sm:$0xff]
  %v64 = vld [vmem:[%s0 + $0x130] sm:$0xff]
  %v65 = vld [vmem:[%s0 + $0x138] sm:$0xff]
  %v66 = vld [vmem:[%s0 + $0x140] sm:$0xff]
  %v67 = vld [vmem:[%s0 + $0x148] sm:$0xff]
  %v68 = vld [vmem:[%s0 + $0x150] sm:$0xff]
  %v69 = vld [vmem:[%s0 + $0x158] sm:$0xff]
  %v70 = vld [vmem:[%s0 + $0x160] sm:$0xff]
  %v71 = vld [vmem:[%s0 + $0x168] sm:$0xff]
  %v72 = vld [vmem:[%s0 + $0x170] sm:$0xff]
  %v73 = vld [vmem:[%s0 + $0x178] sm:$0xff]
  %v74 = vld [vmem:[%s0 + $0x180] sm:$0xff]
  %v75 = vld [vmem:[%s0 + $0x188] sm:$0xff]
  %v76 = vld [vmem:[%s0 + $0x190] sm:$0xff]
  %v77 = vld [vmem:[%s0 + $0x198] sm:$0xff]
  %v78 = vld [vmem:[%s0 + $0x1a0] sm:$0xff]
  %v79 = vld [vmem:[%s0 + $0x1a8] sm:$0xff]
  %v80 = vld [vmem:[%s0 + $0x1b0] sm:$0xff]
  %v81 = vld [vmem:[%s0 + $0x1b8] sm:$0xff]
  %v82 = vld [vmem:[%s0 + $0x1c0] sm:$0xff]
  %v83 = vld [vmem:[%s0 + $0x1c8] sm:$0xff]
  %v84 = vld [vmem:[%s0 + $0x1d0] sm:$0xff]
  %v85 = vld [vmem:[%s0 + $0x1d8] sm:$0xff]
  %v86 = vld [vmem:[%s0 + $0x1e0] sm:$0xff]
  %v87 = vld [vmem:[%s0 + $0x1e8] sm:$0xff]
  %v88 = vld [vmem:[%s0 + $0x1f0] sm:$0xff]
  %v89 = vld [vmem:[%s0 + $0x1f8] sm:$0xff]
  %v90 = vmax.f32 %v26, %v28
  %v91 = vmax.f32 %v27, %v29
  %v92 = vmax.f32 %v30, %v32
  %v93 = vmax.f32 %v31, %v33
  %v94 = vmax.f32 %v34, %v36
  %v95 = vmax.f32 %v35, %v37
  %v96 = vmax.f32 %v38, %v40
  %v97 = vmax.f32 %v39, %v41
  %v98 = vmax.f32 %v42, %v44
  %v99 = vmax.f32 %v43, %v45
  %v100 = vmax.f32 %v46, %v48
  %v101 = vmax.f32 %v47, %v49
  %v102 = vmax.f32 %v50, %v52
  %v103 = vmax.f32 %v51, %v53
  %v104 = vmax.f32 %v54, %v56
  %v105 = vmax.f32 %v55, %v57
  %v106 = vmax.f32 %v58, %v60
  %v107 = vmax.f32 %v59, %v61
  %v108 = vmax.f32 %v62, %v64
  %v109 = vmax.f32 %v63, %v65
  %v110 = vmax.f32 %v66, %v68
  %v111 = vmax.f32 %v67, %v69
  %v112 = vmax.f32 %v70, %v72
  %v113 = vmax.f32 %v71, %v73
  %v114 = vmax.f32 %v74, %v76
  %v115 = vmax.f32 %v75, %v77
  %v116 = vmax.f32 %v78, %v80
  %v117 = vmax.f32 %v79, %v81
  %v118 = vmax.f32 %v82, %v84
  %v119 = vmax.f32 %v83, %v85
  %v120 = vmax.f32 %v86, %v88
  %v121 = vmax.f32 %v87, %v89
  %v122 = vmax.f32 %v90, %v91
  %v123 = vmax.f32 %v92, %v93
  %v124 = vmax.f32 %v94, %v95
  %v125 = vmax.f32 %v96, %v97
  %v126 = vmax.f32 %v98, %v99
  %v127 = vmax.f32 %v100, %v101
  %v128 = vmax.f32 %v102, %v103
  %v129 = vmax.f32 %v104, %v105
  %v130 = vmax.f32 %v106, %v107
  %v131 = vmax.f32 %v108, %v109
  %v132 = vmax.f32 %v110, %v111
  %v133 = vmax.f32 %v112, %v113
  %v134 = vmax.f32 %v114, %v115
  %v135 = vmax.f32 %v116, %v117
  %v136 = vmax.f32 %v118, %v119
  %v137 = vmax.f32 %v120, %v121
  %138 = vst [vmem:[#allocation2] sm:$0xff] 0.0
  %139 = vst [vmem:[#allocation2 + $0x8] sm:$0x3] 0.0
  %140 = vst [vmem:[#allocation2 + $0xa0] sm:$0xff] 0.0
  %141 = vst [vmem:[#allocation2 + $0xa8] sm:$0x3] 0.0
  %s142 = scalar_lea.vmem [#allocation2], 144
  %143 = vst [vmem:[%s142] sm:$0xff] 0.0
  %144 = vst [vmem:[%s142 + $0x8] sm:$0x3] 0.0
  %145 = vst [vmem:[%s142 + $0xa0] sm:$0xff] 0.0
  %146 = vst [vmem:[%s142 + $0xa8] sm:$0x3] 0.0
  %s147 = scalar_lea.vmem [#allocation2], 16
  %148 = vst [vmem:[%s147] sm:$0x1] 0.0
  %149 = vst [vmem:[%s147 + $0x10] sm:$0x1] 0.0
  %150 = vst [vmem:[%s147 + $0x20] sm:$0x1] 0.0
  %151 = vst [vmem:[%s147 + $0x30] sm:$0x1] 0.0
  %152 = vst [vmem:[%s147 + $0x40] sm:$0x1] 0.0
  %153 = vst [vmem:[%s147 + $0x50] sm:$0x1] 0.0
  %154 = vst [vmem:[%s147 + $0x60] sm:$0x1] 0.0
  %155 = vst [vmem:[%s147 + $0x70] sm:$0x1] 0.0
  %156 = vst [vmem:[%s147 + $0xa0] sm:$0x1] 0.0
  %157 = vst [vmem:[%s147 + $0xb0] sm:$0x1] 0.0
  %158 = vst [vmem:[%s147 + $0xc0] sm:$0x1] 0.0
  %159 = vst [vmem:[%s147 + $0xd0] sm:$0x1] 0.0
  %160 = vst [vmem:[%s147 + $0xe0] sm:$0x1] 0.0
  %161 = vst [vmem:[%s147 + $0xf0] sm:$0x1] 0.0
  %162 = vst [vmem:[%s147 + $0x100] sm:$0x1] 0.0
  %163 = vst [vmem:[%s147 + $0x110] sm:$0x1] 0.0
  %164 = vst [vmem:[%s147 + $0x9] sm:$0x1] 0.0
  %165 = vst [vmem:[%s147 + $0x19] sm:$0x1] 0.0
  %166 = vst [vmem:[%s147 + $0x29] sm:$0x1] 0.0
  %167 = vst [vmem:[%s147 + $0x39] sm:$0x1] 0.0
  %168 = vst [vmem:[%s147 + $0x49] sm:$0x1] 0.0
  %169 = vst [vmem:[%s147 + $0x59] sm:$0x1] 0.0
  %170 = vst [vmem:[%s147 + $0x69] sm:$0x1] 0.0
  %171 = vst [vmem:[%s147 + $0x79] sm:$0x1] 0.0
  %172 = vst [vmem:[%s147 + $0xa9] sm:$0x1] 0.0
  %173 = vst [vmem:[%s147 + $0xb9] sm:$0x1] 0.0
  %174 = vst [vmem:[%s147 + $0xc9] sm:$0x1] 0.0
  %175 = vst [vmem:[%s147 + $0xd9] sm:$0x1] 0.0
  %176 = vst [vmem:[%s147 + $0xe9] sm:$0x1] 0.0
  %177 = vst [vmem:[%s147 + $0xf9] sm:$0x1] 0.0
  %178 = vst [vmem:[%s147 + $0x109] sm:$0x1] 0.0
  %179 = vst [vmem:[%s147 + $0x119] sm:$0x1] 0.0
  %180 = vst [vmem:[%s147 + $0x1] sm:$0xff] %v122
  %181 = vst [vmem:[%s147 + $0x11] sm:$0xff] %v123
  %182 = vst [vmem:[%s147 + $0x21] sm:$0xff] %v124
  %183 = vst [vmem:[%s147 + $0x31] sm:$0xff] %v125
  %184 = vst [vmem:[%s147 + $0x41] sm:$0xff] %v126
  %185 = vst [vmem:[%s147 + $0x51] sm:$0xff] %v127
  %186 = vst [vmem:[%s147 + $0x61] sm:$0xff] %v128
  %187 = vst [vmem:[%s147 + $0x71] sm:$0xff] %v129
  %188 = vst [vmem:[%s147 + $0xa1] sm:$0xff] %v130
  %189 = vst [vmem:[%s147 + $0xb1] sm:$0xff] %v131
  %190 = vst [vmem:[%s147 + $0xc1] sm:$0xff] %v132
  %191 = vst [vmem:[%s147 + $0xd1] sm:$0xff] %v133
  %192 = vst [vmem:[%s147 + $0xe1] sm:$0xff] %v134
  %193 = vst [vmem:[%s147 + $0xf1] sm:$0xff] %v135
  %194 = vst [vmem:[%s147 + $0x101] sm:$0xff] %v136
  %195 = vst [vmem:[%s147 + $0x111] sm:$0xff] %v137
  %v196 = vld [vmem:[#allocation2] sm:$0xff]
  %v197 = vld [vmem:[#allocation2 + $0x10] sm:$0xff]
  %v198 = vld [vmem:[#allocation2 + $0x20] sm:$0xff]
  %v199 = vld [vmem:[#allocation2 + $0x30] sm:$0xff]
  %v200 = vld [vmem:[#allocation2 + $0x40] sm:$0xff]
  %v201 = vld [vmem:[#allocation2 + $0x50] sm:$0xff]
  %v202 = vld [vmem:[#allocation2 + $0x60] sm:$0xff]
  %v203 = vld [vmem:[#allocation2 + $0x70] sm:$0xff]
  %v204 = vld [vmem:[#allocation2 + $0xa0] sm:$0xff]
  %v205 = vld [vmem:[#allocation2 + $0xb0] sm:$0xff]
  %v206 = vld [vmem:[#allocation2 + $0xc0] sm:$0xff]
  %v207 = vld [vmem:[#allocation2 + $0xd0] sm:$0xff]
  %v208 = vld [vmem:[#allocation2 + $0xe0] sm:$0xff]
  %v209 = vld [vmem:[#allocation2 + $0xf0] sm:$0xff]
  %v210 = vld [vmem:[#allocation2 + $0x100] sm:$0xff]
  %v211 = vld [vmem:[#allocation2 + $0x110] sm:$0xff]
  %212 = vst [vmem:[#allocation3] sm:$0xff] %v196
  %213 = vst [vmem:[#allocation3 + $0x48] sm:$0xff] %v197
  %214 = vst [vmem:[#allocation3 + $0x90] sm:$0xff] %v198
  %215 = vst [vmem:[#allocation3 + $0xd8] sm:$0xff] %v199
  %216 = vst [vmem:[#allocation3 + $0x120] sm:$0xff] %v200
  %217 = vst [vmem:[#allocation3 + $0x168] sm:$0xff] %v201
  %218 = vst [vmem:[#allocation3 + $0x1b0] sm:$0xff] %v202
  %219 = vst [vmem:[#allocation3 + $0x1f8] sm:$0xff] %v203
  %220 = vst [vmem:[#allocation3 + $0x240] sm:$0xff] %v204
  %221 = vst [vmem:[#allocation3 + $0x288] sm:$0xff] %v205
  %222 = vst [vmem:[#allocation3 + $0x2d0] sm:$0xff] %v206
  %223 = vst [vmem:[#allocation3 + $0x318] sm:$0xff] %v207
  %224 = vst [vmem:[#allocation3 + $0x360] sm:$0xff] %v208
  %225 = vst [vmem:[#allocation3 + $0x3a8] sm:$0xff] %v209
  %226 = vst [vmem:[#allocation3 + $0x3f0] sm:$0xff] %v210
  %227 = vst [vmem:[#allocation3 + $0x438] sm:$0xff] %v211
  %v228 = vld [vmem:[#allocation2 + $0x1] sm:$0xff]
  %v229 = vld [vmem:[#allocation2 + $0x11] sm:$0xff]
  %v230 = vld [vmem:[#allocation2 + $0x21] sm:$0xff]
  %v231 = vld [vmem:[#allocation2 + $0x31] sm:$0xff]
  %v232 = vld [vmem:[#allocation2 + $0x41] sm:$0xff]
  %v233 = vld [vmem:[#allocation2 + $0x51] sm:$0xff]
  %v234 = vld [vmem:[#allocation2 + $0x61] sm:$0xff]
  %v235 = vld [vmem:[#allocation2 + $0x71] sm:$0xff]
  %v236 = vld [vmem:[#allocation2 + $0xa1] sm:$0xff]
  %v237 = vld [vmem:[#allocation2 + $0xb1] sm:$0xff]
  %v238 = vld [vmem:[#allocation2 + $0xc1] sm:$0xff]
  %v239 = vld [vmem:[#allocation2 + $0xd1] sm:$0xff]
  %v240 = vld [vmem:[#allocation2 + $0xe1] sm:$0xff]
  %v241 = vld [vmem:[#allocation2 + $0xf1] sm:$0xff]
  %v242 = vld [vmem:[#allocation2 + $0x101] sm:$0xff]
  %v243 = vld [vmem:[#allocation2 + $0x111] sm:$0xff]
  %244 = vst [vmem:[#allocation3 + $0x8] sm:$0xff] %v228
  %245 = vst [vmem:[#allocation3 + $0x50] sm:$0xff] %v229
  %246 = vst [vmem:[#allocation3 + $0x98] sm:$0xff] %v230
  %247 = vst [vmem:[#allocation3 + $0xe0] sm:$0xff] %v231
  %248 = vst [vmem:[#allocation3 + $0x128] sm:$0xff] %v232
  %249 = vst [vmem:[#allocation3 + $0x170] sm:$0xff] %v233
  %250 = vst [vmem:[#allocation3 + $0x1b8] sm:$0xff] %v234
  %251 = vst [vmem:[#allocation3 + $0x200] sm:$0xff] %v235
  %252 = vst [vmem:[#allocation3 + $0x248] sm:$0xff] %v236
  %253 = vst [vmem:[#allocation3 + $0x290] sm:$0xff] %v237
  %254 = vst [vmem:[#allocation3 + $0x2d8] sm:$0xff] %v238
  %255 = vst [vmem:[#allocation3 + $0x320] sm:$0xff] %v239
  %256 = vst [vmem:[#allocation3 + $0x368] sm:$0xff] %v240
  %257 = vst [vmem:[#allocation3 + $0x3b0] sm:$0xff] %v241
  %258 = vst [vmem:[#allocation3 + $0x3f8] sm:$0xff] %v242
  %259 = vst [vmem:[#allocation3 + $0x440] sm:$0xff] %v243
  %v260 = vld [vmem:[#allocation2 + $0x2] sm:$0xff]
  %v261 = vld [vmem:[#allocation2 + $0x12] sm:$0xff]
  %v262 = vld [vmem:[#allocation2 + $0x22] sm:$0xff]
  %v263 = vld [vmem:[#allocation2 + $0x32] sm:$0xff]
  %v264 = vld [vmem:[#allocation2 + $0x42] sm:$0xff]
  %v265 = vld [vmem:[#allocation2 + $0x52] sm:$0xff]
  %v266 = vld [vmem:[#allocation2 + $0x62] sm:$0xff]
  %v267 = vld [vmem:[#allocation2 + $0x72] sm:$0xff]
  %v268 = vld [vmem:[#allocation2 + $0xa2] sm:$0xff]
  %v269 = vld [vmem:[#allocation2 + $0xb2] sm:$0xff]
  %v270 = vld [vmem:[#allocation2 + $0xc2] sm:$0xff]
  %v271 = vld [vmem:[#allocation2 + $0xd2] sm:$0xff]
  %v272 = vld [vmem:[#allocation2 + $0xe2] sm:$0xff]
  %v273 = vld [vmem:[#allocation2 + $0xf2] sm:$0xff]
  %v274 = vld [vmem:[#allocation2 + $0x102] sm:$0xff]
  %v275 = vld [vmem:[#allocation2 + $0x112] sm:$0xff]
  %276 = vst [vmem:[#allocation3 + $0x10] sm:$0xff] %v260
  %277 = vst [vmem:[#allocation3 + $0x58] sm:$0xff] %v261
  %278 = vst [vmem:[#allocation3 + $0xa0] sm:$0xff] %v262
  %279 = vst [vmem:[#allocation3 + $0xe8] sm:$0xff] %v263
  %280 = vst [vmem:[#allocation3 + $0x130] sm:$0xff] %v264
  %281 = vst [vmem:[#allocation3 + $0x178] sm:$0xff] %v265
  %282 = vst [vmem:[#allocation3 + $0x1c0] sm:$0xff] %v266
  %283 = vst [vmem:[#allocation3 + $0x208] sm:$0xff] %v267
  %284 = vst [vmem:[#allocation3 + $0x250] sm:$0xff] %v268
  %285 = vst [vmem:[#allocation3 + $0x298] sm:$0xff] %v269
  %286 = vst [vmem:[#allocation3 + $0x2e0] sm:$0xff] %v270
  %287 = vst [vmem:[#allocation3 + $0x328] sm:$0xff] %v271
  %288 = vst [vmem:[#allocation3 + $0x370] sm:$0xff] %v272
  %289 = vst [vmem:[#allocation3 + $0x3b8] sm:$0xff] %v273
  %290 = vst [vmem:[#allocation3 + $0x400] sm:$0xff] %v274
  %291 = vst [vmem:[#allocation3 + $0x448] sm:$0xff] %v275
  %v292 = vld [vmem:[%s147] sm:$0xff]
  %v293 = vld [vmem:[%s147 + $0x10] sm:$0xff]
  %v294 = vld [vmem:[%s147 + $0x20] sm:$0xff]
  %v295 = vld [vmem:[%s147 + $0x30] sm:$0xff]
  %v296 = vld [vmem:[%s147 + $0x40] sm:$0xff]
  %v297 = vld [vmem:[%s147 + $0x50] sm:$0xff]
  %v298 = vld [vmem:[%s147 + $0x60] sm:$0xff]
  %v299 = vld [vmem:[%s147 + $0x70] sm:$0xff]
  %v300 = vld [vmem:[%s147 + $0xa0] sm:$0xff]
  %v301 = vld [vmem:[%s147 + $0xb0] sm:$0xff]
  %v302 = vld [vmem:[%s147 + $0xc0] sm:$0xff]
  %v303 = vld [vmem:[%s147 + $0xd0] sm:$0xff]
  %v304 = vld [vmem:[%s147 + $0xe0] sm:$0xff]
  %v305 = vld [vmem:[%s147 + $0xf0] sm:$0xff]
  %v306 = vld [vmem:[%s147 + $0x100] sm:$0xff]
  %v307 = vld [vmem:[%s147 + $0x110] sm:$0xff]
  %308 = vst [vmem:[#allocation3 + $0x18] sm:$0xff] %v292
  %309 = vst [vmem:[#allocation3 + $0x60] sm:$0xff] %v293
  %310 = vst [vmem:[#allocation3 + $0xa8] sm:$0xff] %v294
  %311 = vst [vmem:[#allocation3 + $0xf0] sm:$0xff] %v295
  %312 = vst [vmem:[#allocation3 + $0x138] sm:$0xff] %v296
  %313 = vst [vmem:[#allocation3 + $0x180] sm:$0xff] %v297
  %314 = vst [vmem:[#allocation3 + $0x1c8] sm:$0xff] %v298
  %315 = vst [vmem:[#allocation3 + $0x210] sm:$0xff] %v299
  %316 = vst [vmem:[#allocation3 + $0x258] sm:$0xff] %v300
  %317 = vst [vmem:[#allocation3 + $0x2a0] sm:$0xff] %v301
  %318 = vst [vmem:[#allocation3 + $0x2e8] sm:$0xff] %v302
  %319 = vst [vmem:[#allocation3 + $0x330] sm:$0xff] %v303
  %320 = vst [vmem:[#allocation3 + $0x378] sm:$0xff] %v304
  %321 = vst [vmem:[#allocation3 + $0x3c0] sm:$0xff] %v305
  %322 = vst [vmem:[#allocation3 + $0x408] sm:$0xff] %v306
  %323 = vst [vmem:[#allocation3 + $0x450] sm:$0xff] %v307
  %v324 = vld [vmem:[%s147 + $0x1] sm:$0xff]
  %v325 = vld [vmem:[%s147 + $0x11] sm:$0xff]
  %v326 = vld [vmem:[%s147 + $0x21] sm:$0xff]
  %v327 = vld [vmem:[%s147 + $0x31] sm:$0xff]
  %v328 = vld [vmem:[%s147 + $0x41] sm:$0xff]
  %v329 = vld [vmem:[%s147 + $0x51] sm:$0xff]
  %v330 = vld [vmem:[%s147 + $0x61] sm:$0xff]
  %v331 = vld [vmem:[%s147 + $0x71] sm:$0xff]
  %v332 = vld [vmem:[%s147 + $0xa1] sm:$0xff]
  %v333 = vld [vmem:[%s147 + $0xb1] sm:$0xff]
  %v334 = vld [vmem:[%s147 + $0xc1] sm:$0xff]
  %v335 = vld [vmem:[%s147 + $0xd1] sm:$0xff]
  %v336 = vld [vmem:[%s147 + $0xe1] sm:$0xff]
  %v337 = vld [vmem:[%s147 + $0xf1] sm:$0xff]
  %v338 = vld [vmem:[%s147 + $0x101] sm:$0xff]
  %v339 = vld [vmem:[%s147 + $0x111] sm:$0xff]
  %340 = vst [vmem:[#allocation3 + $0x20] sm:$0xff] %v324
  %341 = vst [vmem:[#allocation3 + $0x68] sm:$0xff] %v325
  %342 = vst [vmem:[#allocation3 + $0xb0] sm:$0xff] %v326
  %343 = vst [vmem:[#allocation3 + $0xf8] sm:$0xff] %v327
  %344 = vst [vmem:[#allocation3 + $0x140] sm:$0xff] %v328
  %345 = vst [vmem:[#allocation3 + $0x188] sm:$0xff] %v329
  %346 = vst [vmem:[#allocation3 + $0x1d0] sm:$0xff] %v330
  %347 = vst [vmem:[#allocation3 + $0x218] sm:$0xff] %v331
  %348 = vst [vmem:[#allocation3 + $0x260] sm:$0xff] %v332
  %349 = vst [vmem:[#allocation3 + $0x2a8] sm:$0xff] %v333
  %350 = vst [vmem:[#allocation3 + $0x2f0] sm:$0xff] %v334
  %351 = vst [vmem:[#allocation3 + $0x338] sm:$0xff] %v335
  %352 = vst [vmem:[#allocation3 + $0x380] sm:$0xff] %v336
  %353 = vst [vmem:[#allocation3 + $0x3c8] sm:$0xff] %v337
  %354 = vst [vmem:[#allocation3 + $0x410] sm:$0xff] %v338
  %355 = vst [vmem:[#allocation3 + $0x458] sm:$0xff] %v339
  %v356 = vld [vmem:[%s147 + $0x2] sm:$0xff]
  %v357 = vld [vmem:[%s147 + $0x12] sm:$0xff]
  %v358 = vld [vmem:[%s147 + $0x22] sm:$0xff]
  %v359 = vld [vmem:[%s147 + $0x32] sm:$0xff]
  %v360 = vld [vmem:[%s147 + $0x42] sm:$0xff]
  %v361 = vld [vmem:[%s147 + $0x52] sm:$0xff]
  %v362 = vld [vmem:[%s147 + $0x62] sm:$0xff]
  %v363 = vld [vmem:[%s147 + $0x72] sm:$0xff]
  %v364 = vld [vmem:[%s147 + $0xa2] sm:$0xff]
  %v365 = vld [vmem:[%s147 + $0xb2] sm:$0xff]
  %v366 = vld [vmem:[%s147 + $0xc2] sm:$0xff]
  %v367 = vld [vmem:[%s147 + $0xd2] sm:$0xff]
  %v368 = vld [vmem:[%s147 + $0xe2] sm:$0xff]
  %v369 = vld [vmem:[%s147 + $0xf2] sm:$0xff]
  %v370 = vld [vmem:[%s147 + $0x102] sm:$0xff]
  %v371 = vld [vmem:[%s147 + $0x112] sm:$0xff]
  %372 = vst [vmem:[#allocation3 + $0x28] sm:$0xff] %v356
  %373 = vst [vmem:[#allocation3 + $0x70] sm:$0xff] %v357
  %374 = vst [vmem:[#allocation3 + $0xb8] sm:$0xff] %v358
  %375 = vst [vmem:[#allocation3 + $0x100] sm:$0xff] %v359
  %376 = vst [vmem:[#allocation3 + $0x148] sm:$0xff] %v360
  %377 = vst [vmem:[#allocation3 + $0x190] sm:$0xff] %v361
  %378 = vst [vmem:[#allocation3 + $0x1d8] sm:$0xff] %v362
  %379 = vst [vmem:[#allocation3 + $0x220] sm:$0xff] %v363
  %380 = vst [vmem:[#allocation3 + $0x268] sm:$0xff] %v364
  %381 = vst [vmem:[#allocation3 + $0x2b0] sm:$0xff] %v365
  %382 = vst [vmem:[#allocation3 + $0x2f8] sm:$0xff] %v366
  %383 = vst [vmem:[#allocation3 + $0x340] sm:$0xff] %v367
  %384 = vst [vmem:[#allocation3 + $0x388] sm:$0xff] %v368
  %385 = vst [vmem:[#allocation3 + $0x3d0] sm:$0xff] %v369
  %386 = vst [vmem:[#allocation3 + $0x418] sm:$0xff] %v370
  %387 = vst [vmem:[#allocation3 + $0x460] sm:$0xff] %v371
  %s388 = scalar_lea.vmem [#allocation2], 32
  %v389 = vld [vmem:[%s388] sm:$0xff]
  %v390 = vld [vmem:[%s388 + $0x10] sm:$0xff]
  %v391 = vld [vmem:[%s388 + $0x20] sm:$0xff]
  %v392 = vld [vmem:[%s388 + $0x30] sm:$0xff]
  %v393 = vld [vmem:[%s388 + $0x40] sm:$0xff]
  %v394 = vld [vmem:[%s388 + $0x50] sm:$0xff]
  %v395 = vld [vmem:[%s388 + $0x60] sm:$0xff]
  %v396 = vld [vmem:[%s388 + $0x70] sm:$0xff]
  %v397 = vld [vmem:[%s388 + $0xa0] sm:$0xff]
  %v398 = vld [vmem:[%s388 + $0xb0] sm:$0xff]
  %v399 = vld [vmem:[%s388 + $0xc0] sm:$0xff]
  %v400 = vld [vmem:[%s388 + $0xd0] sm:$0xff]
  %v401 = vld [vmem:[%s388 + $0xe0] sm:$0xff]
  %v402 = vld [vmem:[%s388 + $0xf0] sm:$0xff]
  %v403 = vld [vmem:[%s388 + $0x100] sm:$0xff]
  %v404 = vld [vmem:[%s388 + $0x110] sm:$0xff]
  %405 = vst [vmem:[#allocation3 + $0x30] sm:$0xff] %v389
  %406 = vst [vmem:[#allocation3 + $0x78] sm:$0xff] %v390
  %407 = vst [vmem:[#allocation3 + $0xc0] sm:$0xff] %v391
  %408 = vst [vmem:[#allocation3 + $0x108] sm:$0xff] %v392
  %409 = vst [vmem:[#allocation3 + $0x150] sm:$0xff] %v393
  %410 = vst [vmem:[#allocation3 + $0x198] sm:$0xff] %v394
  %411 = vst [vmem:[#allocation3 + $0x1e0] sm:$0xff] %v395
  %412 = vst [vmem:[#allocation3 + $0x228] sm:$0xff] %v396
  %413 = vst [vmem:[#allocation3 + $0x270] sm:$0xff] %v397
  %414 = vst [vmem:[#allocation3 + $0x2b8] sm:$0xff] %v398
  %415 = vst [vmem:[#allocation3 + $0x300] sm:$0xff] %v399
  %416 = vst [vmem:[#allocation3 + $0x348] sm:$0xff] %v400
  %417 = vst [vmem:[#allocation3 + $0x390] sm:$0xff] %v401
  %418 = vst [vmem:[#allocation3 + $0x3d8] sm:$0xff] %v402
  %419 = vst [vmem:[#allocation3 + $0x420] sm:$0xff] %v403
  %420 = vst [vmem:[#allocation3 + $0x468] sm:$0xff] %v404
  %v421 = vld [vmem:[%s388 + $0x1] sm:$0xff]
  %v422 = vld [vmem:[%s388 + $0x11] sm:$0xff]
  %v423 = vld [vmem:[%s388 + $0x21] sm:$0xff]
  %v424 = vld [vmem:[%s388 + $0x31] sm:$0xff]
  %v425 = vld [vmem:[%s388 + $0x41] sm:$0xff]
  %v426 = vld [vmem:[%s388 + $0x51] sm:$0xff]
  %v427 = vld [vmem:[%s388 + $0x61] sm:$0xff]
  %v428 = vld [vmem:[%s388 + $0x71] sm:$0xff]
  %v429 = vld [vmem:[%s388 + $0xa1] sm:$0xff]
  %v430 = vld [vmem:[%s388 + $0xb1] sm:$0xff]
  %v431 = vld [vmem:[%s388 + $0xc1] sm:$0xff]
  %v432 = vld [vmem:[%s388 + $0xd1] sm:$0xff]
  %v433 = vld [vmem:[%s388 + $0xe1] sm:$0xff]
  %v434 = vld [vmem:[%s388 + $0xf1] sm:$0xff]
  %v435 = vld [vmem:[%s388 + $0x101] sm:$0xff]
  %v436 = vld [vmem:[%s388 + $0x111] sm:$0xff]
  %437 = vst [vmem:[#allocation3 + $0x38] sm:$0xff] %v421
  %438 = vst [vmem:[#allocation3 + $0x80] sm:$0xff] %v422
  %439 = vst [vmem:[#allocation3 + $0xc8] sm:$0xff] %v423
  %440 = vst [vmem:[#allocation3 + $0x110] sm:$0xff] %v424
  %441 = vst [vmem:[#allocation3 + $0x158] sm:$0xff] %v425
  %442 = vst [vmem:[#allocation3 + $0x1a0] sm:$0xff] %v426
  %443 = vst [vmem:[#allocation3 + $0x1e8] sm:$0xff] %v427
  %444 = vst [vmem:[#allocation3 + $0x230] sm:$0xff] %v428
  %445 = vst [vmem:[#allocation3 + $0x278] sm:$0xff] %v429
  %446 = vst [vmem:[#allocation3 + $0x2c0] sm:$0xff] %v430
  %447 = vst [vmem:[#allocation3 + $0x308] sm:$0xff] %v431
  %448 = vst [vmem:[#allocation3 + $0x350] sm:$0xff] %v432
  %449 = vst [vmem:[#allocation3 + $0x398] sm:$0xff] %v433
  %450 = vst [vmem:[#allocation3 + $0x3e0] sm:$0xff] %v434
  %451 = vst [vmem:[#allocation3 + $0x428] sm:$0xff] %v435
  %452 = vst [vmem:[#allocation3 + $0x470] sm:$0xff] %v436
  %v453 = vld [vmem:[%s388 + $0x2] sm:$0xff]
  %v454 = vld [vmem:[%s388 + $0x12] sm:$0xff]
  %v455 = vld [vmem:[%s388 + $0x22] sm:$0xff]
  %v456 = vld [vmem:[%s388 + $0x32] sm:$0xff]
  %v457 = vld [vmem:[%s388 + $0x42] sm:$0xff]
  %v458 = vld [vmem:[%s388 + $0x52] sm:$0xff]
  %v459 = vld [vmem:[%s388 + $0x62] sm:$0xff]
  %v460 = vld [vmem:[%s388 + $0x72] sm:$0xff]
  %v461 = vld [vmem:[%s388 + $0xa2] sm:$0xff]
  %v462 = vld [vmem:[%s388 + $0xb2] sm:$0xff]
  %v463 = vld [vmem:[%s388 + $0xc2] sm:$0xff]
  %v464 = vld [vmem:[%s388 + $0xd2] sm:$0xff]
  %v465 = vld [vmem:[%s388 + $0xe2] sm:$0xff]
  %v466 = vld [vmem:[%s388 + $0xf2] sm:$0xff]
  %v467 = vld [vmem:[%s388 + $0x102] sm:$0xff]
  %v468 = vld [vmem:[%s388 + $0x112] sm:$0xff]
  %469 = vst [vmem:[#allocation3 + $0x40] sm:$0xff] %v453
  %470 = vst [vmem:[#allocation3 + $0x88] sm:$0xff] %v454
  %471 = vst [vmem:[#allocation3 + $0xd0] sm:$0xff] %v455
  %472 = vst [vmem:[#allocation3 + $0x118] sm:$0xff] %v456
  %473 = vst [vmem:[#allocation3 + $0x160] sm:$0xff] %v457
  %474 = vst [vmem:[#allocation3 + $0x1a8] sm:$0xff] %v458
  %475 = vst [vmem:[#allocation3 + $0x1f0] sm:$0xff] %v459
  %476 = vst [vmem:[#allocation3 + $0x238] sm:$0xff] %v460
  %477 = vst [vmem:[#allocation3 + $0x280] sm:$0xff] %v461
  %478 = vst [vmem:[#allocation3 + $0x2c8] sm:$0xff] %v462
  %479 = vst [vmem:[#allocation3 + $0x310] sm:$0xff] %v463
  %480 = vst [vmem:[#allocation3 + $0x358] sm:$0xff] %v464
  %481 = vst [vmem:[#allocation3 + $0x3a0] sm:$0xff] %v465
  %482 = vst [vmem:[#allocation3 + $0x3e8] sm:$0xff] %v466
  %483 = vst [vmem:[#allocation3 + $0x430] sm:$0xff] %v467
  %484 = vst [vmem:[#allocation3 + $0x478] sm:$0xff] %v468
  %v485 = vld [vmem:[#allocation3] sm:$0xff]
  %v486 = vld [vmem:[#allocation3 + $0x8] sm:$0xff]
  %v487 = vld [vmem:[#allocation3 + $0x10] sm:$0xff]
  %v488 = vld [vmem:[#allocation3 + $0x18] sm:$0xff]
  %v489 = vld [vmem:[#allocation3 + $0x20] sm:$0xff]
  %v490 = vld [vmem:[#allocation3 + $0x28] sm:$0xff]
  %v491 = vld [vmem:[#allocation3 + $0x30] sm:$0xff]
  %v492 = vld [vmem:[#allocation3 + $0x38] sm:$0xff]
  %v493 = vld [vmem:[#allocation3 + $0x40] sm:$0xff]
  %v494 = vld [vmem:[#allocation3 + $0x48] sm:$0xff]
  %v495 = vld [vmem:[#allocation3 + $0x50] sm:$0xff]
  %v496 = vld [vmem:[#allocation3 + $0x58] sm:$0xff]
  %v497 = vld [vmem:[#allocation3 + $0x60] sm:$0xff]
  %v498 = vld [vmem:[#allocation3 + $0x68] sm:$0xff]
  %v499 = vld [vmem:[#allocation3 + $0x70] sm:$0xff]
  %v500 = vld [vmem:[#allocation3 + $0x78] sm:$0xff]
  %v501 = vld [vmem:[#allocation3 + $0x80] sm:$0xff]
  %v502 = vld [vmem:[#allocation3 + $0x88] sm:$0xff]
  %v503 = vld [vmem:[#allocation3 + $0x90] sm:$0xff]
  %v504 = vld [vmem:[#allocation3 + $0x98] sm:$0xff]
  %v505 = vld [vmem:[#allocation3 + $0xa0] sm:$0xff]
  %v506 = vld [vmem:[#allocation3 + $0xa8] sm:$0xff]
  %v507 = vld [vmem:[#allocation3 + $0xb0] sm:$0xff]
  %v508 = vld [vmem:[#allocation3 + $0xb8] sm:$0xff]
  %v509 = vld [vmem:[#allocation3 + $0xc0] sm:$0xff]
  %v510 = vld [vmem:[#allocation3 + $0xc8] sm:$0xff]
  %v511 = vld [vmem:[#allocation3 + $0xd0] sm:$0xff]
  %v512 = vld [vmem:[#allocation3 + $0xd8] sm:$0xff]
  %v513 = vld [vmem:[#allocation3 + $0xe0] sm:$0xff]
  %v514 = vld [vmem:[#allocation3 + $0xe8] sm:$0xff]
  %v515 = vld [vmem:[#allocation3 + $0xf0] sm:$0xff]
  %v516 = vld [vmem:[#allocation3 + $0xf8] sm:$0xff]
  %v517 = vld [vmem:[#allocation3 + $0x100] sm:$0xff]
  %v518 = vld [vmem:[#allocation3 + $0x108] sm:$0xff]
  %v519 = vld [vmem:[#allocation3 + $0x110] sm:$0xff]
  %v520 = vld [vmem:[#allocation3 + $0x118] sm:$0xff]
  %v521 = vld [vmem:[#allocation3 + $0x120] sm:$0xff]
  %v522 = vld [vmem:[#allocation3 + $0x128] sm:$0xff]
  %v523 = vld [vmem:[#allocation3 + $0x130] sm:$0xff]
  %v524 = vld [vmem:[#allocation3 + $0x138] sm:$0xff]
  %v525 = vld [vmem:[#allocation3 + $0x140] sm:$0xff]
  %v526 = vld [vmem:[#allocation3 + $0x148] sm:$0xff]
  %v527 = vld [vmem:[#allocation3 + $0x150] sm:$0xff]
  %v528 = vld [vmem:[#allocation3 + $0x158] sm:$0xff]
  %v529 = vld [vmem:[#allocation3 + $0x160] sm:$0xff]
  %v530 = vld [vmem:[#allocation3 + $0x168] sm:$0xff]
  %v531 = vld [vmem:[#allocation3 + $0x170] sm:$0xff]
  %v532 = vld [vmem:[#allocation3 + $0x178] sm:$0xff]
  %v533 = vld [vmem:[#allocation3 + $0x180] sm:$0xff]
  %v534 = vld [vmem:[#allocation3 + $0x188] sm:$0xff]
  %v535 = vld [vmem:[#allocation3 + $0x190] sm:$0xff]
  %v536 = vld [vmem:[#allocation3 + $0x198] sm:$0xff]
  %v537 = vld [vmem:[#allocation3 + $0x1a0] sm:$0xff]
  %v538 = vld [vmem:[#allocation3 + $0x1a8] sm:$0xff]
  %v539 = vld [vmem:[#allocation3 + $0x1b0] sm:$0xff]
  %v540 = vld [vmem:[#allocation3 + $0x1b8] sm:$0xff]
  %v541 = vld [vmem:[#allocation3 + $0x1c0] sm:$0xff]
  %v542 = vld [vmem:[#allocation3 + $0x1c8] sm:$0xff]
  %v543 = vld [vmem:[#allocation3 + $0x1d0] sm:$0xff]
  %v544 = vld [vmem:[#allocation3 + $0x1d8] sm:$0xff]
  %v545 = vld [vmem:[#allocation3 + $0x1e0] sm:$0xff]
  %v546 = vld [vmem:[#allocation3 + $0x1e8] sm:$0xff]
  %v547 = vld [vmem:[#allocation3 + $0x1f0] sm:$0xff]
  %v548 = vld [vmem:[#allocation3 + $0x1f8] sm:$0xff]
  %v549 = vld [vmem:[#allocation3 + $0x200] sm:$0xff]
  %v550 = vld [vmem:[#allocation3 + $0x208] sm:$0xff]
  %v551 = vld [vmem:[#allocation3 + $0x210] sm:$0xff]
  %v552 = vld [vmem:[#allocation3 + $0x218] sm:$0xff]
  %v553 = vld [vmem:[#allocation3 + $0x220] sm:$0xff]
  %v554 = vld [vmem:[#allocation3 + $0x228] sm:$0xff]
  %v555 = vld [vmem:[#allocation3 + $0x230] sm:$0xff]
  %v556 = vld [vmem:[#allocation3 + $0x238] sm:$0xff]
  %v557 = vld [vmem:[#allocation3 + $0x240] sm:$0xff]
  %v558 = vld [vmem:[#allocation3 + $0x248] sm:$0xff]
  %v559 = vld [vmem:[#allocation3 + $0x250] sm:$0xff]
  %v560 = vld [vmem:[#allocation3 + $0x258] sm:$0xff]
  %v561 = vld [vmem:[#allocation3 + $0x260] sm:$0xff]
  %v562 = vld [vmem:[#allocation3 + $0x268] sm:$0xff]
  %v563 = vld [vmem:[#allocation3 + $0x270] sm:$0xff]
  %v564 = vld [vmem:[#allocation3 + $0x278] sm:$0xff]
  %v565 = vld [vmem:[#allocation3 + $0x280] sm:$0xff]
  %v566 = vld [vmem:[#allocation3 + $0x288] sm:$0xff]
  %v567 = vld [vmem:[#allocation3 + $0x290] sm:$0xff]
  %v568 = vld [vmem:[#allocation3 + $0x298] sm:$0xff]
  %v569 = vld [vmem:[#allocation3 + $0x2a0] sm:$0xff]
  %v570 = vld [vmem:[#allocation3 + $0x2a8] sm:$0xff]
  %v571 = vld [vmem:[#allocation3 + $0x2b0] sm:$0xff]
  %v572 = vld [vmem:[#allocation3 + $0x2b8] sm:$0xff]
  %v573 = vld [vmem:[#allocation3 + $0x2c0] sm:$0xff]
  %v574 = vld [vmem:[#allocation3 + $0x2c8] sm:$0xff]
  %v575 = vld [vmem:[#allocation3 + $0x2d0] sm:$0xff]
  %v576 = vld [vmem:[#allocation3 + $0x2d8] sm:$0xff]
  %v577 = vld [vmem:[#allocation3 + $0x2e0] sm:$0xff]
  %v578 = vld [vmem:[#allocation3 + $0x2e8] sm:$0xff]
  %v579 = vld [vmem:[#allocation3 + $0x2f0] sm:$0xff]
  %v580 = vld [vmem:[#allocation3 + $0x2f8] sm:$0xff]
  %v581 = vld [vmem:[#allocation3 + $0x300] sm:$0xff]
  %v582 = vld [vmem:[#allocation3 + $0x308] sm:$0xff]
  %v583 = vld [vmem:[#allocation3 + $0x310] sm:$0xff]
  %v584 = vld [vmem:[#allocation3 + $0x318] sm:$0xff]
  %v585 = vld [vmem:[#allocation3 + $0x320] sm:$0xff]
  %v586 = vld [vmem:[#allocation3 + $0x328] sm:$0xff]
  %v587 = vld [vmem:[#allocation3 + $0x330] sm:$0xff]
  %v588 = vld [vmem:[#allocation3 + $0x338] sm:$0xff]
  %v589 = vld [vmem:[#allocation3 + $0x340] sm:$0xff]
  %v590 = vld [vmem:[#allocation3 + $0x348] sm:$0xff]
  %v591 = vld [vmem:[#allocation3 + $0x350] sm:$0xff]
  %v592 = vld [vmem:[#allocation3 + $0x358] sm:$0xff]
  %v593 = vld [vmem:[#allocation3 + $0x360] sm:$0xff]
  %v594 = vld [vmem:[#allocation3 + $0x368] sm:$0xff]
  %v595 = vld [vmem:[#allocation3 + $0x370] sm:$0xff]
  %v596 = vld [vmem:[#allocation3 + $0x378] sm:$0xff]
  %v597 = vld [vmem:[#allocation3 + $0x380] sm:$0xff]
  %v598 = vld [vmem:[#allocation3 + $0x388] sm:$0xff]
  %v599 = vld [vmem:[#allocation3 + $0x390] sm:$0xff]
  %v600 = vld [vmem:[#allocation3 + $0x398] sm:$0xff]
  %v601 = vld [vmem:[#allocation3 + $0x3a0] sm:$0xff]
  %v602 = vld [vmem:[#allocation3 + $0x3a8] sm:$0xff]
  %v603 = vld [vmem:[#allocation3 + $0x3b0] sm:$0xff]
  %v604 = vld [vmem:[#allocation3 + $0x3b8] sm:$0xff]
  %v605 = vld [vmem:[#allocation3 + $0x3c0] sm:$0xff]
  %v606 = vld [vmem:[#allocation3 + $0x3c8] sm:$0xff]
  %v607 = vld [vmem:[#allocation3 + $0x3d0] sm:$0xff]
  %v608 = vld [vmem:[#allocation3 + $0x3d8] sm:$0xff]
  %v609 = vld [vmem:[#allocation3 + $0x3e0] sm:$0xff]
  %v610 = vld [vmem:[#allocation3 + $0x3e8] sm:$0xff]
  %v611 = vld [vmem:[#allocation3 + $0x3f0] sm:$0xff]
  %v612 = vld [vmem:[#allocation3 + $0x3f8] sm:$0xff]
  %v613 = vld [vmem:[#allocation3 + $0x400] sm:$0xff]
  %v614 = vld [vmem:[#allocation3 + $0x408] sm:$0xff]
  %v615 = vld [vmem:[#allocation3 + $0x410] sm:$0xff]
  %v616 = vld [vmem:[#allocation3 + $0x418] sm:$0xff]
  %v617 = vld [vmem:[#allocation3 + $0x420] sm:$0xff]
  %v618 = vld [vmem:[#allocation3 + $0x428] sm:$0xff]
  %v619 = vld [vmem:[#allocation3 + $0x430] sm:$0xff]
  %v620 = vld [vmem:[#allocation3 + $0x438] sm:$0xff]
  %v621 = vld [vmem:[#allocation3 + $0x440] sm:$0xff]
  %v622 = vld [vmem:[#allocation3 + $0x448] sm:$0xff]
  %v623 = vld [vmem:[#allocation3 + $0x450] sm:$0xff]
  %v624 = vld [vmem:[#allocation3 + $0x458] sm:$0xff]
  %v625 = vld [vmem:[#allocation3 + $0x460] sm:$0xff]
  %v626 = vld [vmem:[#allocation3 + $0x468] sm:$0xff]
  %v627 = vld [vmem:[#allocation3 + $0x470] sm:$0xff]
  %v628 = vld [vmem:[#allocation3 + $0x478] sm:$0xff]
  %v629 = vld [vmem:[%s1] sm:$0xff]
  %v630 = vld [vmem:[%s1 + $0x8] sm:$0xff]
  %v631 = vld [vmem:[%s1 + $0x10] sm:$0xff]
  %v632 = vld [vmem:[%s1 + $0x18] sm:$0xff]
  %v633 = vld [vmem:[%s1 + $0x20] sm:$0xff]
  %v634 = vld [vmem:[%s1 + $0x28] sm:$0xff]
  %v635 = vld [vmem:[%s1 + $0x30] sm:$0xff]
  %v636 = vld [vmem:[%s1 + $0x38] sm:$0xff]
  %v637 = vld [vmem:[%s1 + $0x40] sm:$0xff]
  %v638 = vld [vmem:[%s1 + $0x48] sm:$0xff]
  %v639 = vld [vmem:[%s1 + $0x50] sm:$0xff]
  %v640 = vld [vmem:[%s1 + $0x58] sm:$0xff]
  %v641 = vld [vmem:[%s1 + $0x60] sm:$0xff]
  %v642 = vld [vmem:[%s1 + $0x68] sm:$0xff]
  %v643 = vld [vmem:[%s1 + $0x70] sm:$0xff]
  %v644 = vld [vmem:[%s1 + $0x78] sm:$0xff]
  %v645 = vld [vmem:[%s1 + $0x80] sm:$0xff]
  %v646 = vld [vmem:[%s1 + $0x88] sm:$0xff]
  %v647 = vld [vmem:[%s1 + $0x90] sm:$0xff]
  %v648 = vld [vmem:[%s1 + $0x98] sm:$0xff]
  %v649 = vld [vmem:[%s1 + $0xa0] sm:$0xff]
  %v650 = vld [vmem:[%s1 + $0xa8] sm:$0xff]
  %v651 = vld [vmem:[%s1 + $0xb0] sm:$0xff]
  %v652 = vld [vmem:[%s1 + $0xb8] sm:$0xff]
  %v653 = vld [vmem:[%s1 + $0xc0] sm:$0xff]
  %v654 = vld [vmem:[%s1 + $0xc8] sm:$0xff]
  %v655 = vld [vmem:[%s1 + $0xd0] sm:$0xff]
  %v656 = vld [vmem:[%s1 + $0xd8] sm:$0xff]
  %v657 = vld [vmem:[%s1 + $0xe0] sm:$0xff]
  %v658 = vld [vmem:[%s1 + $0xe8] sm:$0xff]
  %v659 = vld [vmem:[%s1 + $0xf0] sm:$0xff]
  %v660 = vld [vmem:[%s1 + $0xf8] sm:$0xff]
  %v661 = vld [vmem:[%s1 + $0x100] sm:$0xff]
  %v662 = vld [vmem:[%s1 + $0x108] sm:$0xff]
  %v663 = vld [vmem:[%s1 + $0x110] sm:$0xff]
  %v664 = vld [vmem:[%s1 + $0x118] sm:$0xff]
  %v665 = vld [vmem:[%s1 + $0x120] sm:$0xff]
  %v666 = vld [vmem:[%s1 + $0x128] sm:$0xff]
  %v667 = vld [vmem:[%s1 + $0x130] sm:$0xff]
  %v668 = vld [vmem:[%s1 + $0x138] sm:$0xff]
  %v669 = vld [vmem:[%s1 + $0x140] sm:$0xff]
  %v670 = vld [vmem:[%s1 + $0x148] sm:$0xff]
  %v671 = vld [vmem:[%s1 + $0x150] sm:$0xff]
  %v672 = vld [vmem:[%s1 + $0x158] sm:$0xff]
  %v673 = vld [vmem:[%s1 + $0x160] sm:$0xff]
  %v674 = vld [vmem:[%s1 + $0x168] sm:$0xff]
  %v675 = vld [vmem:[%s1 + $0x170] sm:$0xff]
  %v676 = vld [vmem:[%s1 + $0x178] sm:$0xff]
  %v677 = vld [vmem:[%s1 + $0x180] sm:$0xff]
  %v678 = vld [vmem:[%s1 + $0x188] sm:$0xff]
  %v679 = vld [vmem:[%s1 + $0x190] sm:$0xff]
  %v680 = vld [vmem:[%s1 + $0x198] sm:$0xff]
  %v681 = vld [vmem:[%s1 + $0x1a0] sm:$0xff]
  %v682 = vld [vmem:[%s1 + $0x1a8] sm:$0xff]
  %v683 = vld [vmem:[%s1 + $0x1b0] sm:$0xff]
  %v684 = vld [vmem:[%s1 + $0x1b8] sm:$0xff]
  %v685 = vld [vmem:[%s1 + $0x1c0] sm:$0xff]
  %v686 = vld [vmem:[%s1 + $0x1c8] sm:$0xff]
  %v687 = vld [vmem:[%s1 + $0x1d0] sm:$0xff]
  %v688 = vld [vmem:[%s1 + $0x1d8] sm:$0xff]
  %v689 = vld [vmem:[%s1 + $0x1e0] sm:$0xff]
  %v690 = vld [vmem:[%s1 + $0x1e8] sm:$0xff]
  %v691 = vld [vmem:[%s1 + $0x1f0] sm:$0xff]
  %v692 = vld [vmem:[%s1 + $0x1f8] sm:$0xff]
  %v693 = vld [vmem:[%s1 + $0x200] sm:$0xff]
  %v694 = vld [vmem:[%s1 + $0x208] sm:$0xff]
  %v695 = vld [vmem:[%s1 + $0x210] sm:$0xff]
  %v696 = vld [vmem:[%s1 + $0x218] sm:$0xff]
  %v697 = vld [vmem:[%s1 + $0x220] sm:$0xff]
  %v698 = vld [vmem:[%s1 + $0x228] sm:$0xff]
  %v699 = vld [vmem:[%s1 + $0x230] sm:$0xff]
  %v700 = vld [vmem:[%s1 + $0x238] sm:$0xff]
  %v701 = vld [vmem:[%s1 + $0x240] sm:$0xff]
  %v702 = vld [vmem:[%s1 + $0x248] sm:$0xff]
  %v703 = vld [vmem:[%s1 + $0x250] sm:$0xff]
  %v704 = vld [vmem:[%s1 + $0x258] sm:$0xff]
  %v705 = vld [vmem:[%s1 + $0x260] sm:$0xff]
  %v706 = vld [vmem:[%s1 + $0x268] sm:$0xff]
  %v707 = vld [vmem:[%s1 + $0x270] sm:$0xff]
  %v708 = vld [vmem:[%s1 + $0x278] sm:$0xff]
  %v709 = vld [vmem:[%s1 + $0x280] sm:$0xff]
  %v710 = vld [vmem:[%s1 + $0x288] sm:$0xff]
  %v711 = vld [vmem:[%s1 + $0x290] sm:$0xff]
  %v712 = vld [vmem:[%s1 + $0x298] sm:$0xff]
  %v713 = vld [vmem:[%s1 + $0x2a0] sm:$0xff]
  %v714 = vld [vmem:[%s1 + $0x2a8] sm:$0xff]
  %v715 = vld [vmem:[%s1 + $0x2b0] sm:$0xff]
  %v716 = vld [vmem:[%s1 + $0x2b8] sm:$0xff]
  %v717 = vld [vmem:[%s1 + $0x2c0] sm:$0xff]
  %v718 = vld [vmem:[%s1 + $0x2c8] sm:$0xff]
  %v719 = vld [vmem:[%s1 + $0x2d0] sm:$0xff]
  %v720 = vld [vmem:[%s1 + $0x2d8] sm:$0xff]
  %v721 = vld [vmem:[%s1 + $0x2e0] sm:$0xff]
  %v722 = vld [vmem:[%s1 + $0x2e8] sm:$0xff]
  %v723 = vld [vmem:[%s1 + $0x2f0] sm:$0xff]
  %v724 = vld [vmem:[%s1 + $0x2f8] sm:$0xff]
  %v725 = vld [vmem:[%s1 + $0x300] sm:$0xff]
  %v726 = vld [vmem:[%s1 + $0x308] sm:$0xff]
  %v727 = vld [vmem:[%s1 + $0x310] sm:$0xff]
  %v728 = vld [vmem:[%s1 + $0x318] sm:$0xff]
  %v729 = vld [vmem:[%s1 + $0x320] sm:$0xff]
  %v730 = vld [vmem:[%s1 + $0x328] sm:$0xff]
  %v731 = vld [vmem:[%s1 + $0x330] sm:$0xff]
  %v732 = vld [vmem:[%s1 + $0x338] sm:$0xff]
  %v733 = vld [vmem:[%s1 + $0x340] sm:$0xff]
  %v734 = vld [vmem:[%s1 + $0x348] sm:$0xff]
  %v735 = vld [vmem:[%s1 + $0x350] sm:$0xff]
  %v736 = vld [vmem:[%s1 + $0x358] sm:$0xff]
  %v737 = vld [vmem:[%s1 + $0x360] sm:$0xff]
  %v738 = vld [vmem:[%s1 + $0x368] sm:$0xff]
  %v739 = vld [vmem:[%s1 + $0x370] sm:$0xff]
  %v740 = vld [vmem:[%s1 + $0x378] sm:$0xff]
  %v741 = vld [vmem:[%s1 + $0x380] sm:$0xff]
  %v742 = vld [vmem:[%s1 + $0x388] sm:$0xff]
  %v743 = vld [vmem:[%s1 + $0x390] sm:$0xff]
  %v744 = vld [vmem:[%s1 + $0x398] sm:$0xff]
  %v745 = vld [vmem:[%s1 + $0x3a0] sm:$0xff]
  %v746 = vld [vmem:[%s1 + $0x3a8] sm:$0xff]
  %v747 = vld [vmem:[%s1 + $0x3b0] sm:$0xff]
  %v748 = vld [vmem:[%s1 + $0x3b8] sm:$0xff]
  %v749 = vld [vmem:[%s1 + $0x3c0] sm:$0xff]
  %v750 = vld [vmem:[%s1 + $0x3c8] sm:$0xff]
  %v751 = vld [vmem:[%s1 + $0x3d0] sm:$0xff]
  %v752 = vld [vmem:[%s1 + $0x3d8] sm:$0xff]
  %v753 = vld [vmem:[%s1 + $0x3e0] sm:$0xff]
  %v754 = vld [vmem:[%s1 + $0x3e8] sm:$0xff]
  %v755 = vld [vmem:[%s1 + $0x3f0] sm:$0xff]
  %v756 = vld [vmem:[%s1 + $0x3f8] sm:$0xff]
  %v757 = vld [vmem:[%s1 + $0x400] sm:$0xff]
  %v758 = vld [vmem:[%s1 + $0x408] sm:$0xff]
  %v759 = vld [vmem:[%s1 + $0x410] sm:$0xff]
  %v760 = vld [vmem:[%s1 + $0x418] sm:$0xff]
  %v761 = vld [vmem:[%s1 + $0x420] sm:$0xff]
  %v762 = vld [vmem:[%s1 + $0x428] sm:$0xff]
  %v763 = vld [vmem:[%s1 + $0x430] sm:$0xff]
  %v764 = vld [vmem:[%s1 + $0x438] sm:$0xff]
  %v765 = vld [vmem:[%s1 + $0x440] sm:$0xff]
  %v766 = vld [vmem:[%s1 + $0x448] sm:$0xff]
  %v767 = vld [vmem:[%s1 + $0x450] sm:$0xff]
  %v768 = vld [vmem:[%s1 + $0x458] sm:$0xff]
  %v769 = vld [vmem:[%s1 + $0x460] sm:$0xff]
  %v770 = vld [vmem:[%s1 + $0x468] sm:$0xff]
  %v771 = vld [vmem:[%s1 + $0x470] sm:$0xff]
  %v772 = vld [vmem:[%s1 + $0x478] sm:$0xff]
  %773 = vmatprep.subr.mxu0 0.0
  %774 = vmatpush1.msra.mxu0 %v629
  %775 = vmatprep.subr.mxu0 0.0
  %776 = vmatpush1.msra.mxu0 %v630
  %777 = vmatprep.subr.mxu0 0.0
  %778 = vmatpush1.msra.mxu0 %v631
  %779 = vmatprep.subr.mxu0 0.0
  %780 = vmatpush1.msra.mxu0 %v632
  %781 = vmatprep.subr.mxu0 0.0
  %782 = vmatpush1.msra.mxu0 %v633
  %783 = vmatprep.subr.mxu0 0.0
  %784 = vmatpush1.msra.mxu0 %v634
  %785 = vmatprep.subr.mxu0 0.0
  %786 = vmatpush1.msra.mxu0 %v635
  %787 = vmatprep.subr.mxu0 0.0
  %788 = vmatpush1.msra.mxu0 %v636
  %789 = vmatprep.subr.mxu0 0.0
  %790 = vmatpush1.msra.mxu0 %v637
  %791 = vmatprep.subr.mxu0 0.0
  %792 = vmatpush1.msra.mxu0 %v638
  %793 = vmatprep.subr.mxu0 0.0
  %794 = vmatpush1.msra.mxu0 %v639
  %795 = vmatprep.subr.mxu0 0.0
  %796 = vmatpush1.msra.mxu0 %v640
  %797 = vmatprep.subr.mxu0 0.0
  %798 = vmatpush1.msra.mxu0 %v641
  %799 = vmatprep.subr.mxu0 0.0
  %800 = vmatpush1.msra.mxu0 %v642
  %801 = vmatprep.subr.mxu0 0.0
  %802 = vmatpush1.msra.mxu0 %v643
  %803 = vmatprep.subr.mxu0 0.0
  %804 = vmatpush1.msra.mxu0 %v644
  %805 = vmatprep.subr.mxu0 0.0
  %806 = vmatpush1.msra.mxu0 %v645
  %807 = vmatprep.subr.mxu0 0.0
  %808 = vmatpush1.msra.mxu0 %v646
  %809 = vmatprep.subr.mxu0 0.0
  %810 = vmatpush1.msra.mxu0 %v647
  %811 = vmatprep.subr.mxu0 0.0
  %812 = vmatpush1.msra.mxu0 %v648
  %813 = vmatprep.subr.mxu0 0.0
  %814 = vmatpush1.msra.mxu0 %v649
  %815 = vmatprep.subr.mxu0 0.0
  %816 = vmatpush1.msra.mxu0 %v650
  %817 = vmatprep.subr.mxu0 0.0
  %818 = vmatpush1.msra.mxu0 %v651
  %819 = vmatprep.subr.mxu0 0.0
  %820 = vmatpush1.msra.mxu0 %v652
  %821 = vmatprep.subr.mxu0 0.0
  %822 = vmatpush1.msra.mxu0 %v653
  %823 = vmatprep.subr.mxu0 0.0
  %824 = vmatpush1.msra.mxu0 %v654
  %825 = vmatprep.subr.mxu0 0.0
  %826 = vmatpush1.msra.mxu0 %v655
  %827 = vmatprep.subr.mxu0 0.0
  %828 = vmatpush1.msra.mxu0 %v656
  %829 = vmatprep.subr.mxu0 0.0
  %830 = vmatpush1.msra.mxu0 %v657
  %831 = vmatprep.subr.mxu0 0.0
  %832 = vmatpush1.msra.mxu0 %v658
  %833 = vmatprep.subr.mxu0 0.0
  %834 = vmatpush1.msra.mxu0 %v659
  %835 = vmatprep.subr.mxu0 0.0
  %836 = vmatpush1.msra.mxu0 %v660
  %837 = vmatprep.mubr.f32.mxu0 %v486
  %838 = vmatmul.mubr.f32.gmra.mrb[0].mxu0 %v485
  %v839 = vpop.f32.mrb[0].mxu0
  %v840 = vadd.f32 0.0, %v839
  %v841 = vpop.f32.mrb[0].mxu0
  %842 = vmatprep.mubr.f32.mxu0 %v495
  %843 = vmatmul.mubr.f32.gmra.mrb[0].mxu0 %v494
  %v844 = vpop.f32.mrb[0].mxu0
  %v845 = vadd.f32 0.0, %v844
  %v846 = vpop.f32.mrb[0].mxu0
  %847 = vmatprep.mubr.f32.mxu0 %v504
  %848 = vmatmul.mubr.f32.gmra.mrb[0].mxu0 %v503
  %v849 = vpop.f32.mrb[0].mxu0
  %v850 = vadd.f32 0.0, %v849
  %v851 = vpop.f32.mrb[0].mxu0
  %852 = vmatprep.mubr.f32.mxu0 %v513
  %853 = vmatmul.mubr.f32.gmra.mrb[0].mxu0 %v512
  %v854 = vpop.f32.mrb[0].mxu0
  %v855 = vadd.f32 0.0, %v854
  %v856 = vpop.f32.mrb[0].mxu0
  %857 = vmatprep.mubr.f32.mxu0 %v522
  %858 = vmatmul.mubr.f32.gmra.mrb[0].mxu0 %v521
  %v859 = vpop.f32.mrb[0].mxu0
  %v860 = vadd.f32 0.0, %v859
  %v861 = vpop.f32.mrb[0].mxu0
  %862 = vmatprep.mubr.f32.mxu0 %v531
  %863 = vmatmul.mubr.f32.gmra.mrb[0].mxu0 %v530
  %v864 = vpop.f32.mrb[0].mxu0
  %v865 = vadd.f32 0.0, %v864
  %v866 = vpop.f32.mrb[0].mxu0
  %867 = vmatprep.mubr.f32.mxu0 %v540
  %868 = vmatmul.mubr.f32.gmra.mrb[0].mxu0 %v539
  %v869 = vpop.f32.mrb[0].mxu0
  %v870 = vadd.f32 0.0, %v869
  %v871 = vpop.f32.mrb[0].mxu0
  %872 = vmatprep.mubr.f32.mxu0 %v549
  %873 = vmatmul.mubr.f32.gmra.mrb[0].mxu0 %v548
  %v874 = vpop.f32.mrb[0].mxu0
  %v875 = vadd.f32 0.0, %v874
  %v876 = vpop.f32.mrb[0].mxu0
  %877 = vmatprep.mubr.f32.mxu0 %v558
  %878 = vmatmul.mubr.f32.gmra.mrb[0].mxu0 %v557
  %v879 = vpop.f32.mrb[0].mxu0
  %v880 = vadd.f32 0.0, %v879
  %v881 = vpop.f32.mrb[0].mxu0
  %882 = vmatprep.mubr.f32.mxu0 %v567
  %883 = vmatmul.mubr.f32.gmra.mrb[0].mxu0 %v566
  %v884 = vpop.f32.mrb[0].mxu0
  %v885 = vadd.f32 0.0, %v884
  %v886 = vpop.f32.mrb[0].mxu0
  %887 = vmatprep.mubr.f32.mxu0 %v576
  %888 = vmatmul.mubr.f32.gmra.mrb[0].mxu0 %v575
  %v889 = vpop.f32.mrb[0].mxu0
  %v890 = vadd.f32 0.0, %v889
  %v891 = vpop.f32.mrb[0].mxu0
  %892 = vmatprep.mubr.f32.mxu0 %v585
  %893 = vmatmul.mubr.f32.gmra.mrb[0].mxu0 %v584
  %v894 = vpop.f32.mrb[0].mxu0
  %v895 = vadd.f32 0.0, %v894
  %v896 = vpop.f32.mrb[0].mxu0
  %897 = vmatprep.mubr.f32.mxu0 %v594
  %898 = vmatmul.mubr.f32.gmra.mrb[0].mxu0 %v593
  %v899 = vpop.f32.mrb[0].mxu0
  %v900 = vadd.f32 0.0, %v899
  %v901 = vpop.f32.mrb[0].mxu0
  %902 = vmatprep.mubr.f32.mxu0 %v603
  %903 = vmatmul.mubr.f32.gmra.mrb[0].mxu0 %v602
  %v904 = vpop.f32.mrb[0].mxu0
  %v905 = vadd.f32 0.0, %v904
  %v906 = vpop.f32.mrb[0].mxu0
  %907 = vmatprep.mubr.f32.mxu0 %v612
  %908 = vmatmul.mubr.f32.gmra.mrb[0].mxu0 %v611
  %v909 = vpop.f32.mrb[0].mxu0
  %v910 = vadd.f32 0.0, %v909
  %v911 = vpop.f32.mrb[0].mxu0
  %912 = vmatprep.mubr.f32.mxu0 %v621
  %913 = vmatmul.mubr.f32.gmra.mrb[0].mxu0 %v620
  %v914 = vpop.f32.mrb[0].mxu0
  %v915 = vadd.f32 0.0, %v914
  %v916 = vpop.f32.mrb[0].mxu0
  %917 = vdwg.mxu0
  %918 = vmatprep.subr.mxu0 0.0
  %919 = vmatpush1.msra.mxu0 %v661
  %920 = vmatprep.subr.mxu0 0.0
  %921 = vmatpush1.msra.mxu0 %v662
  %922 = vmatprep.subr.mxu0 0.0
  %923 = vmatpush1.msra.mxu0 %v663
  %924 = vmatprep.subr.mxu0 0.0
  %925 = vmatpush1.msra.mxu0 %v664
  %926 = vmatprep.subr.mxu0 0.0
  %927 = vmatpush1.msra.mxu0 %v665
  %928 = vmatprep.subr.mxu0 0.0
  %929 = vmatpush1.msra.mxu0 %v666
  %930 = vmatprep.subr.mxu0 0.0
  %931 = vmatpush1.msra.mxu0 %v667
  %932 = vmatprep.subr.mxu0 0.0
  %933 = vmatpush1.msra.mxu0 %v668
  %934 = vmatprep.subr.mxu0 0.0
  %935 = vmatpush1.msra.mxu0 %v669
  %936 = vmatprep.subr.mxu0 0.0
  %937 = vmatpush1.msra.mxu0 %v670
  %938 = vmatprep.subr.mxu0 0.0
  %939 = vmatpush1.msra.mxu0 %v671
  %940 = vmatprep.subr.mxu0 0.0
  %941 = vmatpush1.msra.mxu0 %v672
  %942 = vmatprep.subr.mxu0 0.0
  %943 = vmatpush1.msra.mxu0 %v673
  %944 = vmatprep.subr.mxu0 0.0
  %945 = vmatpush1.msra.mxu0 %v674
  %946 = vmatprep.subr.mxu0 0.0
  %947 = vmatpush1.msra.mxu0 %v675
  %948 = vmatprep.subr.mxu0 0.0
  %949 = vmatpush1.msra.mxu0 %v676
  %950 = vmatprep.subr.mxu0 0.0
  %951 = vmatpush1.msra.mxu0 %v677
  %952 = vmatprep.subr.mxu0 0.0
  %953 = vmatpush1.msra.mxu0 %v678
  %954 = vmatprep.subr.mxu0 0.0
  %955 = vmatpush1.msra.mxu0 %v679
  %956 = vmatprep.subr.mxu0 0.0
  %957 = vmatpush1.msra.mxu0 %v680
  %958 = vmatprep.subr.mxu0 0.0
  %959 = vmatpush1.msra.mxu0 %v681
  %960 = vmatprep.subr.mxu0 0.0
  %961 = vmatpush1.msra.mxu0 %v682
  %962 = vmatprep.subr.mxu0 0.0
  %963 = vmatpush1.msra.mxu0 %v683
  %964 = vmatprep.subr.mxu0 0.0
  %965 = vmatpush1.msra.mxu0 %v684
  %966 = vmatprep.subr.mxu0 0.0
  %967 = vmatpush1.msra.mxu0 %v685
  %968 = vmatprep.subr.mxu0 0.0
  %969 = vmatpush1.msra.mxu0 %v686
  %970 = vmatprep.subr.mxu0 0.0
  %971 = vmatpush1.msra.mxu0 %v687
  %972 = vmatprep.subr.mxu0 0.0
  %973 = vmatpush1.msra.mxu0 %v688
  %974 = vmatprep.subr.mxu0 0.0
  %975 = vmatpush1.msra.mxu0 %v689
  %976 = vmatprep.subr.mxu0 0.0
  %977 = vmatpush1.msra.mxu0 %v690
  %978 = vmatprep.subr.mxu0 0.0
  %979 = vmatpush1.msra.mxu0 %v691
  %980 = vmatprep.subr.mxu0 0.0
  %981 = vmatpush1.msra.mxu0 %v692
  %982 = vmatprep.mubr.f32.mxu0 %v488
  %983 = vmatmul.mubr.f32.gmra.mrb[0].mxu0 %v487
  %v984 = vpop.f32.mrb[0].mxu0
  %v985 = vadd.f32 %v840, %v984
  %v986 = vpop.f32.mrb[0].mxu0
  %987 = vmatprep.mubr.f32.mxu0 %v497
  %988 = vmatmul.mubr.f32.gmra.mrb[0].mxu0 %v496
  %v989 = vpop.f32.mrb[0].mxu0
  %v990 = vadd.f32 %v845, %v989
  %v991 = vpop.f32.mrb[0].mxu0
  %992 = vmatprep.mubr.f32.mxu0 %v506
  %993 = vmatmul.mubr.f32.gmra.mrb[0].mxu0 %v505
  %v994 = vpop.f32.mrb[0].mxu0
  %v995 = vadd.f32 %v850, %v994
  %v996 = vpop.f32.mrb[0].mxu0
  %997 = vmatprep.mubr.f32.mxu0 %v515
  %998 = vmatmul.mubr.f32.gmra.mrb[0].mxu0 %v514
  %v999 = vpop.f32.mrb[0].mxu0
  %v1000 = vadd.f32 %v855, %v999
  %v1001 = vpop.f32.mrb[0].mxu0
  %1002 = vmatprep.mubr.f32.mxu0 %v524
  %1003 = vmatmul.mubr.f32.gmra.mrb[0].mxu0 %v523
  %v1004 = vpop.f32.mrb[0].mxu0
  %v1005 = vadd.f32 %v860, %v1004
  %v1006 = vpop.f32.mrb[0].mxu0
  %1007 = vmatprep.mubr.f32.mxu0 %v533
  %1008 = vmatmul.mubr.f32.gmra.mrb[0].mxu0 %v532
  %v1009 = vpop.f32.mrb[0].mxu0
  %v1010 = vadd.f32 %v865, %v1009
  %v1011 = vpop.f32.mrb[0].mxu0
  %1012 = vmatprep.mubr.f32.mxu0 %v542
  %1013 = vmatmul.mubr.f32.gmra.mrb[0].mxu0 %v541
  %v1014 = vpop.f32.mrb[0].mxu0
  %v1015 = vadd.f32 %v870, %v1014
  %v1016 = vpop.f32.mrb[0].mxu0
  %1017 = vmatprep.mubr.f32.mxu0 %v551
  %1018 = vmatmul.mubr.f32.gmra.mrb[0].mxu0 %v550
  %v1019 = vpop.f32.mrb[0].mxu0
  %v1020 = vadd.f32 %v875, %v1019
  %v1021 = vpop.f32.mrb[0].mxu0
  %1022 = vmatprep.mubr.f32.mxu0 %v560
  %1023 = vmatmul.mubr.f32.gmra.mrb[0].mxu0 %v559
  %v1024 = vpop.f32.mrb[0].mxu0
  %v1025 = vadd.f32 %v880, %v1024
  %v1026 = vpop.f32.mrb[0].mxu0
  %1027 = vmatprep.mubr.f32.mxu0 %v569
  %1028 = vmatmul.mubr.f32.gmra.mrb[0].mxu0 %v568
  %v1029 = vpop.f32.mrb[0].mxu0
  %v1030 = vadd.f32 %v885, %v1029
  %v1031 = vpop.f32.mrb[0].mxu0
  %1032 = vmatprep.mubr.f32.mxu0 %v578
  %1033 = vmatmul.mubr.f32.gmra.mrb[0].mxu0 %v577
  %v1034 = vpop.f32.mrb[0].mxu0
  %v1035 = vadd.f32 %v890, %v1034
  %v1036 = vpop.f32.mrb[0].mxu0
  %1037 = vmatprep.mubr.f32.mxu0 %v587
  %1038 = vmatmul.mubr.f32.gmra.mrb[0].mxu0 %v586
  %v1039 = vpop.f32.mrb[0].mxu0
  %v1040 = vadd.f32 %v895, %v1039
  %v1041 = vpop.f32.mrb[0].mxu0
  %1042 = vmatprep.mubr.f32.mxu0 %v596
  %1043 = vmatmul.mubr.f32.gmra.mrb[0].mxu0 %v595
  %v1044 = vpop.f32.mrb[0].mxu0
  %v1045 = vadd.f32 %v900, %v1044
  %v1046 = vpop.f32.mrb[0].mxu0
  %1047 = vmatprep.mubr.f32.mxu0 %v605
  %1048 = vmatmul.mubr.f32.gmra.mrb[0].mxu0 %v604
  %v1049 = vpop.f32.mrb[0].mxu0
  %v1050 = vadd.f32 %v905, %v1049
  %v1051 = vpop.f32.mrb[0].mxu0
  %1052 = vmatprep.mubr.f32.mxu0 %v614
  %1053 = vmatmul.mubr.f32.gmra.mrb[0].mxu0 %v613
  %v1054 = vpop.f32.mrb[0].mxu0
  %v1055 = vadd.f32 %v910, %v1054
  %v1056 = vpop.f32.mrb[0].mxu0
  %1057 = vmatprep.mubr.f32.mxu0 %v623
  %1058 = vmatmul.mubr.f32.gmra.mrb[0].mxu0 %v622
  %v1059 = vpop.f32.mrb[0].mxu0
  %v1060 = vadd.f32 %v915, %v1059
  %v1061 = vpop.f32.mrb[0].mxu0
  %1062 = vdwg.mxu0
  %1063 = vmatprep.subr.mxu0 0.0
  %1064 = vmatpush1.msra.mxu0 %v693
  %1065 = vmatprep.subr.mxu0 0.0
  %1066 = vmatpush1.msra.mxu0 %v694
  %1067 = vmatprep.subr.mxu0 0.0
  %1068 = vmatpush1.msra.mxu0 %v695
  %1069 = vmatprep.subr.mxu0 0.0
  %1070 = vmatpush1.msra.mxu0 %v696
  %1071 = vmatprep.subr.mxu0 0.0
  %1072 = vmatpush1.msra.mxu0 %v697
  %1073 = vmatprep.subr.mxu0 0.0
  %1074 = vmatpush1.msra.mxu0 %v698
  %1075 = vmatprep.subr.mxu0 0.0
  %1076 = vmatpush1.msra.mxu0 %v699
  %1077 = vmatprep.subr.mxu0 0.0
  %1078 = vmatpush1.msra.mxu0 %v700
  %1079 = vmatprep.subr.mxu0 0.0
  %1080 = vmatpush1.msra.mxu0 %v701
  %1081 = vmatprep.subr.mxu0 0.0
  %1082 = vmatpush1.msra.mxu0 %v702
  %1083 = vmatprep.subr.mxu0 0.0
  %1084 = vmatpush1.msra.mxu0 %v703
  %1085 = vmatprep.subr.mxu0 0.0
  %1086 = vmatpush1.msra.mxu0 %v704
  %1087 = vmatprep.subr.mxu0 0.0
  %1088 = vmatpush1.msra.mxu0 %v705
  %1089 = vmatprep.subr.mxu0 0.0
  %1090 = vmatpush1.msra.mxu0 %v706
  %1091 = vmatprep.subr.mxu0 0.0
  %1092 = vmatpush1.msra.mxu0 %v707
  %1093 = vmatprep.subr.mxu0 0.0
  %1094 = vmatpush1.msra.mxu0 %v708
  %1095 = vmatprep.subr.mxu0 0.0
  %1096 = vmatpush1.msra.mxu0 %v709
  %1097 = vmatprep.subr.mxu0 0.0
  %1098 = vmatpush1.msra.mxu0 %v710
  %1099 = vmatprep.subr.mxu0 0.0
  %1100 = vmatpush1.msra.mxu0 %v711
  %1101 = vmatprep.subr.mxu0 0.0
  %1102 = vmatpush1.msra.mxu0 %v712
  %1103 = vmatprep.subr.mxu0 0.0
  %1104 = vmatpush1.msra.mxu0 %v713
  %1105 = vmatprep.subr.mxu0 0.0
  %1106 = vmatpush1.msra.mxu0 %v714
  %1107 = vmatprep.subr.mxu0 0.0
  %1108 = vmatpush1.msra.mxu0 %v715
  %1109 = vmatprep.subr.mxu0 0.0
  %1110 = vmatpush1.msra.mxu0 %v716
  %1111 = vmatprep.subr.mxu0 0.0
  %1112 = vmatpush1.msra.mxu0 %v717
  %1113 = vmatprep.subr.mxu0 0.0
  %1114 = vmatpush1.msra.mxu0 %v718
  %1115 = vmatprep.subr.mxu0 0.0
  %1116 = vmatpush1.msra.mxu0 %v719
  %1117 = vmatprep.subr.mxu0 0.0
  %1118 = vmatpush1.msra.mxu0 %v720
  %1119 = vmatprep.subr.mxu0 0.0
  %1120 = vmatpush1.msra.mxu0 %v721
  %1121 = vmatprep.subr.mxu0 0.0
  %1122 = vmatpush1.msra.mxu0 %v722
  %1123 = vmatprep.subr.mxu0 0.0
  %1124 = vmatpush1.msra.mxu0 %v723
  %1125 = vmatprep.subr.mxu0 0.0
  %1126 = vmatpush1.msra.mxu0 %v724
  %1127 = vmatprep.mubr.f32.mxu0 %v490
  %1128 = vmatmul.mubr.f32.gmra.mrb[0].mxu0 %v489
  %v1129 = vpop.f32.mrb[0].mxu0
  %v1130 = vadd.f32 %v985, %v1129
  %v1131 = vpop.f32.mrb[0].mxu0
  %1132 = vmatprep.mubr.f32.mxu0 %v499
  %1133 = vmatmul.mubr.f32.gmra.mrb[0].mxu0 %v498
  %v1134 = vpop.f32.mrb[0].mxu0
  %v1135 = vadd.f32 %v990, %v1134
  %v1136 = vpop.f32.mrb[0].mxu0
  %1137 = vmatprep.mubr.f32.mxu0 %v508
  %1138 = vmatmul.mubr.f32.gmra.mrb[0].mxu0 %v507
  %v1139 = vpop.f32.mrb[0].mxu0
  %v1140 = vadd.f32 %v995, %v1139
  %v1141 = vpop.f32.mrb[0].mxu0
  %1142 = vmatprep.mubr.f32.mxu0 %v517
  %1143 = vmatmul.mubr.f32.gmra.mrb[0].mxu0 %v516
  %v1144 = vpop.f32.mrb[0].mxu0
  %v1145 = vadd.f32 %v1000, %v1144
  %v1146 = vpop.f32.mrb[0].mxu0
  %1147 = vmatprep.mubr.f32.mxu0 %v526
  %1148 = vmatmul.mubr.f32.gmra.mrb[0].mxu0 %v525
  %v1149 = vpop.f32.mrb[0].mxu0
  %v1150 = vadd.f32 %v1005, %v1149
  %v1151 = vpop.f32.mrb[0].mxu0
  %1152 = vmatprep.mubr.f32.mxu0 %v535
  %1153 = vmatmul.mubr.f32.gmra.mrb[0].mxu0 %v534
  %v1154 = vpop.f32.mrb[0].mxu0
  %v1155 = vadd.f32 %v1010, %v1154
  %v1156 = vpop.f32.mrb[0].mxu0
  %1157 = vmatprep.mubr.f32.mxu0 %v544
  %1158 = vmatmul.mubr.f32.gmra.mrb[0].mxu0 %v543
  %v1159 = vpop.f32.mrb[0].mxu0
  %v1160 = vadd.f32 %v1015, %v1159
  %v1161 = vpop.f32.mrb[0].mxu0
  %1162 = vmatprep.mubr.f32.mxu0 %v553
  %1163 = vmatmul.mubr.f32.gmra.mrb[0].mxu0 %v552
  %v1164 = vpop.f32.mrb[0].mxu0
  %v1165 = vadd.f32 %v1020, %v1164
  %v1166 = vpop.f32.mrb[0].mxu0
  %1167 = vmatprep.mubr.f32.mxu0 %v562
  %1168 = vmatmul.mubr.f32.gmra.mrb[0].mxu0 %v561
  %v1169 = vpop.f32.mrb[0].mxu0
  %v1170 = vadd.f32 %v1025, %v1169
  %v1171 = vpop.f32.mrb[0].mxu0
  %1172 = vmatprep.mubr.f32.mxu0 %v571
  %1173 = vmatmul.mubr.f32.gmra.mrb[0].mxu0 %v570
  %v1174 = vpop.f32.mrb[0].mxu0
  %v1175 = vadd.f32 %v1030, %v1174
  %v1176 = vpop.f32.mrb[0].mxu0
  %1177 = vmatprep.mubr.f32.mxu0 %v580
  %1178 = vmatmul.mubr.f32.gmra.mrb[0].mxu0 %v579
  %v1179 = vpop.f32.mrb[0].mxu0
  %v1180 = vadd.f32 %v1035, %v1179
  %v1181 = vpop.f32.mrb[0].mxu0
  %1182 = vmatprep.mubr.f32.mxu0 %v589
  %1183 = vmatmul.mubr.f32.gmra.mrb[0].mxu0 %v588
  %v1184 = vpop.f32.mrb[0].mxu0
  %v1185 = vadd.f32 %v1040, %v1184
  %v1186 = vpop.f32.mrb[0].mxu0
  %1187 = vmatprep.mubr.f32.mxu0 %v598
  %1188 = vmatmul.mubr.f32.gmra.mrb[0].mxu0 %v597
  %v1189 = vpop.f32.mrb[0].mxu0
  %v1190 = vadd.f32 %v1045, %v1189
  %v1191 = vpop.f32.mrb[0].mxu0
  %1192 = vmatprep.mubr.f32.mxu0 %v607
  %1193 = vmatmul.mubr.f32.gmra.mrb[0].mxu0 %v606
  %v1194 = vpop.f32.mrb[0].mxu0
  %v1195 = vadd.f32 %v1050, %v1194
  %v1196 = vpop.f32.mrb[0].mxu0
  %1197 = vmatprep.mubr.f32.mxu0 %v616
  %1198 = vmatmul.mubr.f32.gmra.mrb[0].mxu0 %v615
  %v1199 = vpop.f32.mrb[0].mxu0
  %v1200 = vadd.f32 %v1055, %v1199
  %v1201 = vpop.f32.mrb[0].mxu0
  %1202 = vmatprep.mubr.f32.mxu0 %v625
  %1203 = vmatmul.mubr.f32.gmra.mrb[0].mxu0 %v624
  %v1204 = vpop.f32.mrb[0].mxu0
  %v1205 = vadd.f32 %v1060, %v1204
  %v1206 = vpop.f32.mrb[0].mxu0
  %1207 = vdwg.mxu0
  %1208 = vmatprep.subr.mxu0 0.0
  %1209 = vmatpush1.msra.mxu0 %v725
  %1210 = vmatprep.subr.mxu0 0.0
  %1211 = vmatpush1.msra.mxu0 %v726
  %1212 = vmatprep.subr.mxu0 0.0
  %1213 = vmatpush1.msra.mxu0 %v727
  %1214 = vmatprep.subr.mxu0 0.0
  %1215 = vmatpush1.msra.mxu0 %v728
  %1216 = vmatprep.subr.mxu0 0.0
  %1217 = vmatpush1.msra.mxu0 %v729
  %1218 = vmatprep.subr.mxu0 0.0
  %1219 = vmatpush1.msra.mxu0 %v730
  %1220 = vmatprep.subr.mxu0 0.0
  %1221 = vmatpush1.msra.mxu0 %v731
  %1222 = vmatprep.subr.mxu0 0.0
  %1223 = vmatpush1.msra.mxu0 %v732
  %1224 = vmatprep.subr.mxu0 0.0
  %1225 = vmatpush1.msra.mxu0 %v733
  %1226 = vmatprep.subr.mxu0 0.0
  %1227 = vmatpush1.msra.mxu0 %v734
  %1228 = vmatprep.subr.mxu0 0.0
  %1229 = vmatpush1.msra.mxu0 %v735
  %1230 = vmatprep.subr.mxu0 0.0
  %1231 = vmatpush1.msra.mxu0 %v736
  %1232 = vmatprep.subr.mxu0 0.0
  %1233 = vmatpush1.msra.mxu0 %v737
  %1234 = vmatprep.subr.mxu0 0.0
  %1235 = vmatpush1.msra.mxu0 %v738
  %1236 = vmatprep.subr.mxu0 0.0
  %1237 = vmatpush1.msra.mxu0 %v739
  %1238 = vmatprep.subr.mxu0 0.0
  %1239 = vmatpush1.msra.mxu0 %v740
  %1240 = vmatprep.subr.mxu0 0.0
  %1241 = vmatpush1.msra.mxu0 %v741
  %1242 = vmatprep.subr.mxu0 0.0
  %1243 = vmatpush1.msra.mxu0 %v742
  %1244 = vmatprep.subr.mxu0 0.0
  %1245 = vmatpush1.msra.mxu0 %v743
  %1246 = vmatprep.subr.mxu0 0.0
  %1247 = vmatpush1.msra.mxu0 %v744
  %1248 = vmatprep.subr.mxu0 0.0
  %1249 = vmatpush1.msra.mxu0 %v745
  %1250 = vmatprep.subr.mxu0 0.0
  %1251 = vmatpush1.msra.mxu0 %v746
  %1252 = vmatprep.subr.mxu0 0.0
  %1253 = vmatpush1.msra.mxu0 %v747
  %1254 = vmatprep.subr.mxu0 0.0
  %1255 = vmatpush1.msra.mxu0 %v748
  %1256 = vmatprep.subr.mxu0 0.0
  %1257 = vmatpush1.msra.mxu0 %v749
  %1258 = vmatprep.subr.mxu0 0.0
  %1259 = vmatpush1.msra.mxu0 %v750
  %1260 = vmatprep.subr.mxu0 0.0
  %1261 = vmatpush1.msra.mxu0 %v751
  %1262 = vmatprep.subr.mxu0 0.0
  %1263 = vmatpush1.msra.mxu0 %v752
  %1264 = vmatprep.subr.mxu0 0.0
  %1265 = vmatpush1.msra.mxu0 %v753
  %1266 = vmatprep.subr.mxu0 0.0
  %1267 = vmatpush1.msra.mxu0 %v754
  %1268 = vmatprep.subr.mxu0 0.0
  %1269 = vmatpush1.msra.mxu0 %v755
  %1270 = vmatprep.subr.mxu0 0.0
  %1271 = vmatpush1.msra.mxu0 %v756
  %1272 = vmatprep.mubr.f32.mxu0 %v492
  %1273 = vmatmul.mubr.f32.gmra.mrb[0].mxu0 %v491
  %v1274 = vpop.f32.mrb[0].mxu0
  %v1275 = vadd.f32 %v1130, %v1274
  %v1276 = vpop.f32.mrb[0].mxu0
  %1277 = vmatprep.mubr.f32.mxu0 %v501
  %1278 = vmatmul.mubr.f32.gmra.mrb[0].mxu0 %v500
  %v1279 = vpop.f32.mrb[0].mxu0
  %v1280 = vadd.f32 %v1135, %v1279
  %v1281 = vpop.f32.mrb[0].mxu0
  %1282 = vmatprep.mubr.f32.mxu0 %v510
  %1283 = vmatmul.mubr.f32.gmra.mrb[0].mxu0 %v509
  %v1284 = vpop.f32.mrb[0].mxu0
  %v1285 = vadd.f32 %v1140, %v1284
  %v1286 = vpop.f32.mrb[0].mxu0
  %1287 = vmatprep.mubr.f32.mxu0 %v519
  %1288 = vmatmul.mubr.f32.gmra.mrb[0].mxu0 %v518
  %v1289 = vpop.f32.mrb[0].mxu0
  %v1290 = vadd.f32 %v1145, %v1289
  %v1291 = vpop.f32.mrb[0].mxu0
  %1292 = vmatprep.mubr.f32.mxu0 %v528
  %1293 = vmatmul.mubr.f32.gmra.mrb[0].mxu0 %v527
  %v1294 = vpop.f32.mrb[0].mxu0
  %v1295 = vadd.f32 %v1150, %v1294
  %v1296 = vpop.f32.mrb[0].mxu0
  %1297 = vmatprep.mubr.f32.mxu0 %v537
  %1298 = vmatmul.mubr.f32.gmra.mrb[0].mxu0 %v536
  %v1299 = vpop.f32.mrb[0].mxu0
  %v1300 = vadd.f32 %v1155, %v1299
  %v1301 = vpop.f32.mrb[0].mxu0
  %1302 = vmatprep.mubr.f32.mxu0 %v546
  %1303 = vmatmul.mubr.f32.gmra.mrb[0].mxu0 %v545
  %v1304 = vpop.f32.mrb[0].mxu0
  %v1305 = vadd.f32 %v1160, %v1304
  %v1306 = vpop.f32.mrb[0].mxu0
  %1307 = vmatprep.mubr.f32.mxu0 %v555
  %1308 = vmatmul.mubr.f32.gmra.mrb[0].mxu0 %v554
  %v1309 = vpop.f32.mrb[0].mxu0
  %v1310 = vadd.f32 %v1165, %v1309
  %v1311 = vpop.f32.mrb[0].mxu0
  %1312 = vmatprep.mubr.f32.mxu0 %v564
  %1313 = vmatmul.mubr.f32.gmra.mrb[0].mxu0 %v563
  %v1314 = vpop.f32.mrb[0].mxu0
  %v1315 = vadd.f32 %v1170, %v1314
  %v1316 = vpop.f32.mrb[0].mxu0
  %1317 = vmatprep.mubr.f32.mxu0 %v573
  %1318 = vmatmul.mubr.f32.gmra.mrb[0].mxu0 %v572
  %v1319 = vpop.f32.mrb[0].mxu0
  %v1320 = vadd.f32 %v1175, %v1319
  %v1321 = vpop.f32.mrb[0].mxu0
  %1322 = vmatprep.mubr.f32.mxu0 %v582
  %1323 = vmatmul.mubr.f32.gmra.mrb[0].mxu0 %v581
  %v1324 = vpop.f32.mrb[0].mxu0
  %v1325 = vadd.f32 %v1180, %v1324
  %v1326 = vpop.f32.mrb[0].mxu0
  %1327 = vmatprep.mubr.f32.mxu0 %v591
  %1328 = vmatmul.mubr.f32.gmra.mrb[0].mxu0 %v590
  %v1329 = vpop.f32.mrb[0].mxu0
  %v1330 = vadd.f32 %v1185, %v1329
  %v1331 = vpop.f32.mrb[0].mxu0
  %1332 = vmatprep.mubr.f32.mxu0 %v600
  %1333 = vmatmul.mubr.f32.gmra.mrb[0].mxu0 %v599
  %v1334 = vpop.f32.mrb[0].mxu0
  %v1335 = vadd.f32 %v1190, %v1334
  %v1336 = vpop.f32.mrb[0].mxu0
  %1337 = vmatprep.mubr.f32.mxu0 %v609
  %1338 = vmatmul.mubr.f32.gmra.mrb[0].mxu0 %v608
  %v1339 = vpop.f32.mrb[0].mxu0
  %v1340 = vadd.f32 %v1195, %v1339
  %v1341 = vpop.f32.mrb[0].mxu0
  %1342 = vmatprep.mubr.f32.mxu0 %v618
  %1343 = vmatmul.mubr.f32.gmra.mrb[0].mxu0 %v617
  %v1344 = vpop.f32.mrb[0].mxu0
  %v1345 = vadd.f32 %v1200, %v1344
  %v1346 = vpop.f32.mrb[0].mxu0
  %1347 = vmatprep.mubr.f32.mxu0 %v627
  %1348 = vmatmul.mubr.f32.gmra.mrb[0].mxu0 %v626
  %v1349 = vpop.f32.mrb[0].mxu0
  %v1350 = vadd.f32 %v1205, %v1349
  %v1351 = vpop.f32.mrb[0].mxu0
  %1352 = vdwg.mxu0
  %1353 = vmatprep.subr.mxu0 0.0
  %1354 = vmatpush1.msra.mxu0 %v757
  %1355 = vmatprep.subr.mxu0 0.0
  %1356 = vmatpush1.msra.mxu0 %v758
  %1357 = vmatprep.subr.mxu0 0.0
  %1358 = vmatpush1.msra.mxu0 %v759
  %1359 = vmatprep.subr.mxu0 0.0
  %1360 = vmatpush1.msra.mxu0 %v760
  %1361 = vmatprep.subr.mxu0 0.0
  %1362 = vmatpush1.msra.mxu0 %v761
  %1363 = vmatprep.subr.mxu0 0.0
  %1364 = vmatpush1.msra.mxu0 %v762
  %1365 = vmatprep.subr.mxu0 0.0
  %1366 = vmatpush1.msra.mxu0 %v763
  %1367 = vmatprep.subr.mxu0 0.0
  %1368 = vmatpush1.msra.mxu0 %v764
  %1369 = vmatprep.subr.mxu0 0.0
  %1370 = vmatpush1.msra.mxu0 %v765
  %1371 = vmatprep.subr.mxu0 0.0
  %1372 = vmatpush1.msra.mxu0 %v766
  %1373 = vmatprep.subr.mxu0 0.0
  %1374 = vmatpush1.msra.mxu0 %v767
  %1375 = vmatprep.subr.mxu0 0.0
  %1376 = vmatpush1.msra.mxu0 %v768
  %1377 = vmatprep.subr.mxu0 0.0
  %1378 = vmatpush1.msra.mxu0 %v769
  %1379 = vmatprep.subr.mxu0 0.0
  %1380 = vmatpush1.msra.mxu0 %v770
  %1381 = vmatprep.subr.mxu0 0.0
  %1382 = vmatpush1.msra.mxu0 %v771
  %1383 = vmatprep.subr.mxu0 0.0
  %1384 = vmatpush1.msra.mxu0 %v772
  %1385 = vmatprep.subr.mxu0 0.0
  %1386 = vmatpush1.msra.mxu0 0.0
  %1387 = vmatprep.subr.mxu0 0.0
  %1388 = vmatpush1.msra.mxu0 0.0
  %1389 = vmatprep.subr.mxu0 0.0
  %1390 = vmatpush1.msra.mxu0 0.0
  %1391 = vmatprep.subr.mxu0 0.0
  %1392 = vmatpush1.msra.mxu0 0.0
  %1393 = vmatprep.subr.mxu0 0.0
  %1394 = vmatpush1.msra.mxu0 0.0
  %1395 = vmatprep.subr.mxu0 0.0
  %1396 = vmatpush1.msra.mxu0 0.0
  %1397 = vmatprep.subr.mxu0 0.0
  %1398 = vmatpush1.msra.mxu0 0.0
  %1399 = vmatprep.subr.mxu0 0.0
  %1400 = vmatpush1.msra.mxu0 0.0
  %1401 = vmatprep.subr.mxu0 0.0
  %1402 = vmatpush1.msra.mxu0 0.0
  %1403 = vmatprep.subr.mxu0 0.0
  %1404 = vmatpush1.msra.mxu0 0.0
  %1405 = vmatprep.subr.mxu0 0.0
  %1406 = vmatpush1.msra.mxu0 0.0
  %1407 = vmatprep.subr.mxu0 0.0
  %1408 = vmatpush1.msra.mxu0 0.0
  %1409 = vmatprep.subr.mxu0 0.0
  %1410 = vmatpush1.msra.mxu0 0.0
  %1411 = vmatprep.subr.mxu0 0.0
  %1412 = vmatpush1.msra.mxu0 0.0
  %1413 = vmatprep.subr.mxu0 0.0
  %1414 = vmatpush1.msra.mxu0 0.0
  %1415 = vmatprep.subr.mxu0 0.0
  %1416 = vmatpush1.msra.mxu0 0.0
  %1417 = vmatprep.mubr.f32.mxu0 0.0
  %1418 = vmatmul.mubr.f32.gmra.mrb[0].mxu0 %v493
  %v1419 = vpop.f32.mrb[0].mxu0
  %v1420 = vadd.f32 %v1275, %v1419
  %v1421 = vpop.f32.mrb[0].mxu0
  %1422 = vmatprep.mubr.f32.mxu0 0.0
  %1423 = vmatmul.mubr.f32.gmra.mrb[0].mxu0 %v502
  %v1424 = vpop.f32.mrb[0].mxu0
  %v1425 = vadd.f32 %v1280, %v1424
  %v1426 = vpop.f32.mrb[0].mxu0
  %1427 = vmatprep.mubr.f32.mxu0 0.0
  %1428 = vmatmul.mubr.f32.gmra.mrb[0].mxu0 %v511
  %v1429 = vpop.f32.mrb[0].mxu0
  %v1430 = vadd.f32 %v1285, %v1429
  %v1431 = vpop.f32.mrb[0].mxu0
  %1432 = vmatprep.mubr.f32.mxu0 0.0
  %1433 = vmatmul.mubr.f32.gmra.mrb[0].mxu0 %v520
  %v1434 = vpop.f32.mrb[0].mxu0
  %v1435 = vadd.f32 %v1290, %v1434
  %v1436 = vpop.f32.mrb[0].mxu0
  %1437 = vmatprep.mubr.f32.mxu0 0.0
  %1438 = vmatmul.mubr.f32.gmra.mrb[0].mxu0 %v529
  %v1439 = vpop.f32.mrb[0].mxu0
  %v1440 = vadd.f32 %v1295, %v1439
  %v1441 = vpop.f32.mrb[0].mxu0
  %1442 = vmatprep.mubr.f32.mxu0 0.0
  %1443 = vmatmul.mubr.f32.gmra.mrb[0].mxu0 %v538
  %v1444 = vpop.f32.mrb[0].mxu0
  %v1445 = vadd.f32 %v1300, %v1444
  %v1446 = vpop.f32.mrb[0].mxu0
  %1447 = vmatprep.mubr.f32.mxu0 0.0
  %1448 = vmatmul.mubr.f32.gmra.mrb[0].mxu0 %v547
  %v1449 = vpop.f32.mrb[0].mxu0
  %v1450 = vadd.f32 %v1305, %v1449
  %v1451 = vpop.f32.mrb[0].mxu0
  %1452 = vmatprep.mubr.f32.mxu0 0.0
  %1453 = vmatmul.mubr.f32.gmra.mrb[0].mxu0 %v556
  %v1454 = vpop.f32.mrb[0].mxu0
  %v1455 = vadd.f32 %v1310, %v1454
  %v1456 = vpop.f32.mrb[0].mxu0
  %1457 = vmatprep.mubr.f32.mxu0 0.0
  %1458 = vmatmul.mubr.f32.gmra.mrb[0].mxu0 %v565
  %v1459 = vpop.f32.mrb[0].mxu0
  %v1460 = vadd.f32 %v1315, %v1459
  %v1461 = vpop.f32.mrb[0].mxu0
  %1462 = vmatprep.mubr.f32.mxu0 0.0
  %1463 = vmatmul.mubr.f32.gmra.mrb[0].mxu0 %v574
  %v1464 = vpop.f32.mrb[0].mxu0
  %v1465 = vadd.f32 %v1320, %v1464
  %v1466 = vpop.f32.mrb[0].mxu0
  %1467 = vmatprep.mubr.f32.mxu0 0.0
  %1468 = vmatmul.mubr.f32.gmra.mrb[0].mxu0 %v583
  %v1469 = vpop.f32.mrb[0].mxu0
  %v1470 = vadd.f32 %v1325, %v1469
  %v1471 = vpop.f32.mrb[0].mxu0
  %1472 = vmatprep.mubr.f32.mxu0 0.0
  %1473 = vmatmul.mubr.f32.gmra.mrb[0].mxu0 %v592
  %v1474 = vpop.f32.mrb[0].mxu0
  %v1475 = vadd.f32 %v1330, %v1474
  %v1476 = vpop.f32.mrb[0].mxu0
  %1477 = vmatprep.mubr.f32.mxu0 0.0
  %1478 = vmatmul.mubr.f32.gmra.mrb[0].mxu0 %v601
  %v1479 = vpop.f32.mrb[0].mxu0
  %v1480 = vadd.f32 %v1335, %v1479
  %v1481 = vpop.f32.mrb[0].mxu0
  %1482 = vmatprep.mubr.f32.mxu0 0.0
  %1483 = vmatmul.mubr.f32.gmra.mrb[0].mxu0 %v610
  %v1484 = vpop.f32.mrb[0].mxu0
  %v1485 = vadd.f32 %v1340, %v1484
  %v1486 = vpop.f32.mrb[0].mxu0
  %1487 = vmatprep.mubr.f32.mxu0 0.0
  %1488 = vmatmul.mubr.f32.gmra.mrb[0].mxu0 %v619
  %v1489 = vpop.f32.mrb[0].mxu0
  %v1490 = vadd.f32 %v1345, %v1489
  %v1491 = vpop.f32.mrb[0].mxu0
  %1492 = vmatprep.mubr.f32.mxu0 0.0
  %1493 = vmatmul.mubr.f32.gmra.mrb[0].mxu0 %v628
  %v1494 = vpop.f32.mrb[0].mxu0
  %v1495 = vadd.f32 %v1350, %v1494
  %v1496 = vpop.f32.mrb[0].mxu0
  %1497 = vdwg.mxu0
  %v1498 = vadd.f32 %v1420, %v1425
  %v1499 = vadd.f32 %v1498, %v1430
  %v1500 = vadd.f32 %v1499, %v1435
  %v1501 = vadd.f32 %v1500, %v1440
  %v1502 = vadd.f32 %v1501, %v1445
  %v1503 = vadd.f32 %v1502, %v1450
  %v1504 = vadd.f32 %v1503, %v1455
  %v1505 = vadd.f32 %v1504, %v1460
  %v1506 = vadd.f32 %v1505, %v1465
  %v1507 = vadd.f32 %v1506, %v1470
  %v1508 = vadd.f32 %v1507, %v1475
  %v1509 = vadd.f32 %v1508, %v1480
  %v1510 = vadd.f32 %v1509, %v1485
  %v1511 = vadd.f32 %v1510, %v1490
  %v1512 = vadd.f32 %v1511, %v1495
  %v1513 = vrot.slane %v1512, 4
  %v1514 = vadd.f32 %v1512, %v1513
  %v1515 = vrot.slane %v1514, 2
  %v1516 = vadd.f32 %v1514, %v1515
  %v1517 = vrot.slane %v1516, 1
  %v1518 = vadd.f32 %v1516, %v1517
  %v1519 = vmul.f32 %v1420, %v1420
  %v1520 = vmul.f32 %v1425, %v1425
  %v1521 = vmul.f32 %v1430, %v1430
  %v1522 = vmul.f32 %v1435, %v1435
  %v1523 = vmul.f32 %v1440, %v1440
  %v1524 = vmul.f32 %v1445, %v1445
  %v1525 = vmul.f32 %v1450, %v1450
  %v1526 = vmul.f32 %v1455, %v1455
  %v1527 = vmul.f32 %v1460, %v1460
  %v1528 = vmul.f32 %v1465, %v1465
  %v1529 = vmul.f32 %v1470, %v1470
  %v1530 = vmul.f32 %v1475, %v1475
  %v1531 = vmul.f32 %v1480, %v1480
  %v1532 = vmul.f32 %v1485, %v1485
  %v1533 = vmul.f32 %v1490, %v1490
  %v1534 = vmul.f32 %v1495, %v1495
  %v1535 = vadd.f32 %v1519, %v1520
  %v1536 = vadd.f32 %v1535, %v1521
  %v1537 = vadd.f32 %v1536, %v1522
  %v1538 = vadd.f32 %v1537, %v1523
  %v1539 = vadd.f32 %v1538, %v1524
  %v1540 = vadd.f32 %v1539, %v1525
  %v1541 = vadd.f32 %v1540, %v1526
  %v1542 = vadd.f32 %v1541, %v1527
  %v1543 = vadd.f32 %v1542, %v1528
  %v1544 = vadd.f32 %v1543, %v1529
  %v1545 = vadd.f32 %v1544, %v1530
  %v1546 = vadd.f32 %v1545, %v1531
  %v1547 = vadd.f32 %v1546, %v1532
  %v1548 = vadd.f32 %v1547, %v1533
  %v1549 = vadd.f32 %v1548, %v1534
  %v1550 = vrot.slane %v1549, 4
  %v1551 = vadd.f32 %v1549, %v1550
  %v1552 = vrot.slane %v1551, 2
  %v1553 = vadd.f32 %v1551, %v1552
  %v1554 = vrot.slane %v1553, 1
  %v1555 = vadd.f32 %v1553, %v1554
  %v1556 = vmul.f32 %v1518, 0.0078125
  %v1557 = vmul.f32 %v1555, 0.0078125
  %v1558 = vmul.f32 %v1556, %v1556
  %v1559 = vsub.f32 %v1557, %v1558
  %v1560 = vmax.f32 %v1559, 0.0
  %v1561 = vld [vmem:[%s2] sm:$0x1]
  %v1562 = vadd.f32 %v1560, 1e-05
  %v1563 = vrsqrt.pop %v1562
  %v1564 = vmul.f32 %v1561, %v1563
  %v1565 = vld [vmem:[%s3] sm:$0x1]
  %v1566 = vmul.f32 %v1556, %v1564
  %v1567 = vsub.f32 %v1565, %v1566
  %v1569 = vlaneseq
  %v1570 = vshrl.u32 %v1569, 7
  %v1571 = vsub.s32 0, %v1570
  %v1572 = vrot.slane %v1564, %v1571
  %v1574 = vmul.f32 %v1420, %v1572
  %v1575 = vmul.f32 %v1425, %v1572
  %v1576 = vmul.f32 %v1430, %v1572
  %v1577 = vmul.f32 %v1435, %v1572
  %v1578 = vmul.f32 %v1440, %v1572
  %v1579 = vmul.f32 %v1445, %v1572
  %v1580 = vmul.f32 %v1450, %v1572
  %v1581 = vmul.f32 %v1455, %v1572
  %v1582 = vmul.f32 %v1460, %v1572
  %v1583 = vmul.f32 %v1465, %v1572
  %v1584 = vmul.f32 %v1470, %v1572
  %v1585 = vmul.f32 %v1475, %v1572
  %v1586 = vmul.f32 %v1480, %v1572
  %v1587 = vmul.f32 %v1485, %v1572
  %v1588 = vmul.f32 %v1490, %v1572
  %v1589 = vmul.f32 %v1495, %v1572
  %v1591 = vlaneseq
  %v1592 = vshrl.u32 %v1591, 7
  %v1593 = vsub.s32 0, %v1592
  %v1594 = vrot.slane %v1567, %v1593
  %v1596 = vadd.f32 %v1574, %v1594
  %v1597 = vadd.f32 %v1575, %v1594
  %v1598 = vadd.f32 %v1576, %v1594
  %v1599 = vadd.f32 %v1577, %v1594
  %v1600 = vadd.f32 %v1578, %v1594
  %v1601 = vadd.f32 %v1579, %v1594
  %v1602 = vadd.f32 %v1580, %v1594
  %v1603 = vadd.f32 %v1581, %v1594
  %v1604 = vadd.f32 %v1582, %v1594
  %v1605 = vadd.f32 %v1583, %v1594
  %v1606 = vadd.f32 %v1584, %v1594
  %v1607 = vadd.f32 %v1585, %v1594
  %v1608 = vadd.f32 %v1586, %v1594
  %v1609 = vadd.f32 %v1587, %v1594
  %v1610 = vadd.f32 %v1588, %v1594
  %v1611 = vadd.f32 %v1589, %v1594
  %v1612 = vmax.f32 %v1596, 0.0
  %v1613 = vmax.f32 %v1597, 0.0
  %v1614 = vmax.f32 %v1598, 0.0
  %v1615 = vmax.f32 %v1599, 0.0
  %v1616 = vmax.f32 %v1600, 0.0
  %v1617 = vmax.f32 %v1601, 0.0
  %v1618 = vmax.f32 %v1602, 0.0
  %v1619 = vmax.f32 %v1603, 0.0
  %v1620 = vmax.f32 %v1604, 0.0
  %v1621 = vmax.f32 %v1605, 0.0
  %v1622 = vmax.f32 %v1606, 0.0
  %v1623 = vmax.f32 %v1607, 0.0
  %v1624 = vmax.f32 %v1608, 0.0
  %v1625 = vmax.f32 %v1609, 0.0
  %v1626 = vmax.f32 %v1610, 0.0
  %v1627 = vmax.f32 %v1611, 0.0
  %1628 = vst [vmem:[#allocation4] sm:$0xff] 0.0
  %1629 = vst [vmem:[#allocation4 + $0x8] sm:$0x3] 0.0
  %1630 = vst [vmem:[#allocation4 + $0xa0] sm:$0xff] 0.0
  %1631 = vst [vmem:[#allocation4 + $0xa8] sm:$0x3] 0.0
  %s1632 = scalar_lea.vmem [#allocation4], 144
  %1633 = vst [vmem:[%s1632] sm:$0xff] 0.0
  %1634 = vst [vmem:[%s1632 + $0x8] sm:$0x3] 0.0
  %1635 = vst [vmem:[%s1632 + $0xa0] sm:$0xff] 0.0
  %1636 = vst [vmem:[%s1632 + $0xa8] sm:$0x3] 0.0
  %s1637 = scalar_lea.vmem [#allocation4], 16
  %1638 = vst [vmem:[%s1637] sm:$0x1] 0.0
  %1639 = vst [vmem:[%s1637 + $0x10] sm:$0x1] 0.0
  %1640 = vst [vmem:[%s1637 + $0x20] sm:$0x1] 0.0
  %1641 = vst [vmem:[%s1637 + $0x30] sm:$0x1] 0.0
  %1642 = vst [vmem:[%s1637 + $0x40] sm:$0x1] 0.0
  %1643 = vst [vmem:[%s1637 + $0x50] sm:$0x1] 0.0
  %1644 = vst [vmem:[%s1637 + $0x60] sm:$0x1] 0.0
  %1645 = vst [vmem:[%s1637 + $0x70] sm:$0x1] 0.0
  %1646 = vst [vmem:[%s1637 + $0xa0] sm:$0x1] 0.0
  %1647 = vst [vmem:[%s1637 + $0xb0] sm:$0x1] 0.0
  %1648 = vst [vmem:[%s1637 + $0xc0] sm:$0x1] 0.0
  %1649 = vst [vmem:[%s1637 + $0xd0] sm:$0x1] 0.0
  %1650 = vst [vmem:[%s1637 + $0xe0] sm:$0x1] 0.0
  %1651 = vst [vmem:[%s1637 + $0xf0] sm:$0x1] 0.0
  %1652 = vst [vmem:[%s1637 + $0x100] sm:$0x1] 0.0
  %1653 = vst [vmem:[%s1637 + $0x110] sm:$0x1] 0.0
  %1654 = vst [vmem:[%s1637 + $0x9] sm:$0x1] 0.0
  %1655 = vst [vmem:[%s1637 + $0x19] sm:$0x1] 0.0
  %1656 = vst [vmem:[%s1637 + $0x29] sm:$0x1] 0.0
  %1657 = vst [vmem:[%s1637 + $0x39] sm:$0x1] 0.0
  %1658 = vst [vmem:[%s1637 + $0x49] sm:$0x1] 0.0
  %1659 = vst [vmem:[%s1637 + $0x59] sm:$0x1] 0.0
  %1660 = vst [vmem:[%s1637 + $0x69] sm:$0x1] 0.0
  %1661 = vst [vmem:[%s1637 + $0x79] sm:$0x1] 0.0
  %1662 = vst [vmem:[%s1637 + $0xa9] sm:$0x1] 0.0
  %1663 = vst [vmem:[%s1637 + $0xb9] sm:$0x1] 0.0
  %1664 = vst [vmem:[%s1637 + $0xc9] sm:$0x1] 0.0
  %1665 = vst [vmem:[%s1637 + $0xd9] sm:$0x1] 0.0
  %1666 = vst [vmem:[%s1637 + $0xe9] sm:$0x1] 0.0
  %1667 = vst [vmem:[%s1637 + $0xf9] sm:$0x1] 0.0
  %1668 = vst [vmem:[%s1637 + $0x109] sm:$0x1] 0.0
  %1669 = vst [vmem:[%s1637 + $0x119] sm:$0x1] 0.0
  %1670 = vst [vmem:[%s1637 + $0x1] sm:$0xff] %v1612
  %1671 = vst [vmem:[%s1637 + $0x11] sm:$0xff] %v1613
  %1672 = vst [vmem:[%s1637 + $0x21] sm:$0xff] %v1614
  %1673 = vst [vmem:[%s1637 + $0x31] sm:$0xff] %v1615
  %1674 = vst [vmem:[%s1637 + $0x41] sm:$0xff] %v1616
  %1675 = vst [vmem:[%s1637 + $0x51] sm:$0xff] %v1617
  %1676 = vst [vmem:[%s1637 + $0x61] sm:$0xff] %v1618
  %1677 = vst [vmem:[%s1637 + $0x71] sm:$0xff] %v1619
  %1678 = vst [vmem:[%s1637 + $0xa1] sm:$0xff] %v1620
  %1679 = vst [vmem:[%s1637 + $0xb1] sm:$0xff] %v1621
  %1680 = vst [vmem:[%s1637 + $0xc1] sm:$0xff] %v1622
  %1681 = vst [vmem:[%s1637 + $0xd1] sm:$0xff] %v1623
  %1682 = vst [vmem:[%s1637 + $0xe1] sm:$0xff] %v1624
  %1683 = vst [vmem:[%s1637 + $0xf1] sm:$0xff] %v1625
  %1684 = vst [vmem:[%s1637 + $0x101] sm:$0xff] %v1626
  %1685 = vst [vmem:[%s1637 + $0x111] sm:$0xff] %v1627
  %v1686 = vld [vmem:[#allocation4] sm:$0xff]
  %v1687 = vld [vmem:[#allocation4 + $0x10] sm:$0xff]
  %v1688 = vld [vmem:[#allocation4 + $0x20] sm:$0xff]
  %v1689 = vld [vmem:[#allocation4 + $0x30] sm:$0xff]
  %v1690 = vld [vmem:[#allocation4 + $0x40] sm:$0xff]
  %v1691 = vld [vmem:[#allocation4 + $0x50] sm:$0xff]
  %v1692 = vld [vmem:[#allocation4 + $0x60] sm:$0xff]
  %v1693 = vld [vmem:[#allocation4 + $0x70] sm:$0xff]
  %v1694 = vld [vmem:[#allocation4 + $0xa0] sm:$0xff]
  %v1695 = vld [vmem:[#allocation4 + $0xb0] sm:$0xff]
  %v1696 = vld [vmem:[#allocation4 + $0xc0] sm:$0xff]
  %v1697 = vld [vmem:[#allocation4 + $0xd0] sm:$0xff]
  %v1698 = vld [vmem:[#allocation4 + $0xe0] sm:$0xff]
  %v1699 = vld [vmem:[#allocation4 + $0xf0] sm:$0xff]
  %v1700 = vld [vmem:[#allocation4 + $0x100] sm:$0xff]
  %v1701 = vld [vmem:[#allocation4 + $0x110] sm:$0xff]
  %1702 = vst [vmem:[#allocation5] sm:$0xff] %v1686
  %1703 = vst [vmem:[#allocation5 + $0x48] sm:$0xff] %v1687
  %1704 = vst [vmem:[#allocation5 + $0x90] sm:$0xff] %v1688
  %1705 = vst [vmem:[#allocation5 + $0xd8] sm:$0xff] %v1689
  %1706 = vst [vmem:[#allocation5 + $0x120] sm:$0xff] %v1690
  %1707 = vst [vmem:[#allocation5 + $0x168] sm:$0xff] %v1691
  %1708 = vst [vmem:[#allocation5 + $0x1b0] sm:$0xff] %v1692
  %1709 = vst [vmem:[#allocation5 + $0x1f8] sm:$0xff] %v1693
  %1710 = vst [vmem:[#allocation5 + $0x240] sm:$0xff] %v1694
  %1711 = vst [vmem:[#allocation5 + $0x288] sm:$0xff] %v1695
  %1712 = vst [vmem:[#allocation5 + $0x2d0] sm:$0xff] %v1696
  %1713 = vst [vmem:[#allocation5 + $0x318] sm:$0xff] %v1697
  %1714 = vst [vmem:[#allocation5 + $0x360] sm:$0xff] %v1698
  %1715 = vst [vmem:[#allocation5 + $0x3a8] sm:$0xff] %v1699
  %1716 = vst [vmem:[#allocation5 + $0x3f0] sm:$0xff] %v1700
  %1717 = vst [vmem:[#allocation5 + $0x438] sm:$0xff] %v1701
  %v1718 = vld [vmem:[#allocation4 + $0x1] sm:$0xff]
  %v1719 = vld [vmem:[#allocation4 + $0x11] sm:$0xff]
  %v1720 = vld [vmem:[#allocation4 + $0x21] sm:$0xff]
  %v1721 = vld [vmem:[#allocation4 + $0x31] sm:$0xff]
  %v1722 = vld [vmem:[#allocation4 + $0x41] sm:$0xff]
  %v1723 = vld [vmem:[#allocation4 + $0x51] sm:$0xff]
  %v1724 = vld [vmem:[#allocation4 + $0x61] sm:$0xff]
  %v1725 = vld [vmem:[#allocation4 + $0x71] sm:$0xff]
  %v1726 = vld [vmem:[#allocation4 + $0xa1] sm:$0xff]
  %v1727 = vld [vmem:[#allocation4 + $0xb1] sm:$0xff]
  %v1728 = vld [vmem:[#allocation4 + $0xc1] sm:$0xff]
  %v1729 = vld [vmem:[#allocation4 + $0xd1] sm:$0xff]
  %v1730 = vld [vmem:[#allocation4 + $0xe1] sm:$0xff]
  %v1731 = vld [vmem:[#allocation4 + $0xf1] sm:$0xff]
  %v1732 = vld [vmem:[#allocation4 + $0x101] sm:$0xff]
  %v1733 = vld [vmem:[#allocation4 + $0x111] sm:$0xff]
  %1734 = vst [vmem:[#allocation5 + $0x8] sm:$0xff] %v1718
  %1735 = vst [vmem:[#allocation5 + $0x50] sm:$0xff] %v1719
  %1736 = vst [vmem:[#allocation5 + $0x98] sm:$0xff] %v1720
  %1737 = vst [vmem:[#allocation5 + $0xe0] sm:$0xff] %v1721
  %1738 = vst [vmem:[#allocation5 + $0x128] sm:$0xff] %v1722
  %1739 = vst [vmem:[#allocation5 + $0x170] sm:$0xff] %v1723
  %1740 = vst [vmem:[#allocation5 + $0x1b8] sm:$0xff] %v1724
  %1741 = vst [vmem:[#allocation5 + $0x200] sm:$0xff] %v1725
  %1742 = vst [vmem:[#allocation5 + $0x248] sm:$0xff] %v1726
  %1743 = vst [vmem:[#allocation5 + $0x290] sm:$0xff] %v1727
  %1744 = vst [vmem:[#allocation5 + $0x2d8] sm:$0xff] %v1728
  %1745 = vst [vmem:[#allocation5 + $0x320] sm:$0xff] %v1729
  %1746 = vst [vmem:[#allocation5 + $0x368] sm:$0xff] %v1730
  %1747 = vst [vmem:[#allocation5 + $0x3b0] sm:$0xff] %v1731
  %1748 = vst [vmem:[#allocation5 + $0x3f8] sm:$0xff] %v1732
  %1749 = vst [vmem:[#allocation5 + $0x440] sm:$0xff] %v1733
  %v1750 = vld [vmem:[#allocation4 + $0x2] sm:$0xff]
  %v1751 = vld [vmem:[#allocation4 + $0x12] sm:$0xff]
  %v1752 = vld [vmem:[#allocation4 + $0x22] sm:$0xff]
  %v1753 = vld [vmem:[#allocation4 + $0x32] sm:$0xff]
  %v1754 = vld [vmem:[#allocation4 + $0x42] sm:$0xff]
  %v1755 = vld [vmem:[#allocation4 + $0x52] sm:$0xff]
  %v1756 = vld [vmem:[#allocation4 + $0x62] sm:$0xff]
  %v1757 = vld [vmem:[#allocation4 + $0x72] sm:$0xff]
  %v1758 = vld [vmem:[#allocation4 + $0xa2] sm:$0xff]
  %v1759 = vld [vmem:[#allocation4 + $0xb2] sm:$0xff]
  %v1760 = vld [vmem:[#allocation4 + $0xc2] sm:$0xff]
  %v1761 = vld [vmem:[#allocation4 + $0xd2] sm:$0xff]
  %v1762 = vld [vmem:[#allocation4 + $0xe2] sm:$0xff]
  %v1763 = vld [vmem:[#allocation4 + $0xf2] sm:$0xff]
  %v1764 = vld [vmem:[#allocation4 + $0x102] sm:$0xff]
  %v1765 = vld [vmem:[#allocation4 + $0x112] sm:$0xff]
  %1766 = vst [vmem:[#allocation5 + $0x10] sm:$0xff] %v1750
  %1767 = vst [vmem:[#allocation5 + $0x58] sm:$0xff] %v1751
  %1768 = vst [vmem:[#allocation5 + $0xa0] sm:$0xff] %v1752
  %1769 = vst [vmem:[#allocation5 + $0xe8] sm:$0xff] %v1753
  %1770 = vst [vmem:[#allocation5 + $0x130] sm:$0xff] %v1754
  %1771 = vst [vmem:[#allocation5 + $0x178] sm:$0xff] %v1755
  %1772 = vst [vmem:[#allocation5 + $0x1c0] sm:$0xff] %v1756
  %1773 = vst [vmem:[#allocation5 + $0x208] sm:$0xff] %v1757
  %1774 = vst [vmem:[#allocation5 + $0x250] sm:$0xff] %v1758
  %1775 = vst [vmem:[#allocation5 + $0x298] sm:$0xff] %v1759
  %1776 = vst [vmem:[#allocation5 + $0x2e0] sm:$0xff] %v1760
  %1777 = vst [vmem:[#allocation5 + $0x328] sm:$0xff] %v1761
  %1778 = vst [vmem:[#allocation5 + $0x370] sm:$0xff] %v1762
  %1779 = vst [vmem:[#allocation5 + $0x3b8] sm:$0xff] %v1763
  %1780 = vst [vmem:[#allocation5 + $0x400] sm:$0xff] %v1764
  %1781 = vst [vmem:[#allocation5 + $0x448] sm:$0xff] %v1765
  %v1782 = vld [vmem:[%s1637] sm:$0xff]
  %v1783 = vld [vmem:[%s1637 + $0x10] sm:$0xff]
  %v1784 = vld [vmem:[%s1637 + $0x20] sm:$0xff]
  %v1785 = vld [vmem:[%s1637 + $0x30] sm:$0xff]
  %v1786 = vld [vmem:[%s1637 + $0x40] sm:$0xff]
  %v1787 = vld [vmem:[%s1637 + $0x50] sm:$0xff]
  %v1788 = vld [vmem:[%s1637 + $0x60] sm:$0xff]
  %v1789 = vld [vmem:[%s1637 + $0x70] sm:$0xff]
  %v1790 = vld [vmem:[%s1637 + $0xa0] sm:$0xff]
  %v1791 = vld [vmem:[%s1637 + $0xb0] sm:$0xff]
  %v1792 = vld [vmem:[%s1637 + $0xc0] sm:$0xff]
  %v1793 = vld [vmem:[%s1637 + $0xd0] sm:$0xff]
  %v1794 = vld [vmem:[%s1637 + $0xe0] sm:$0xff]
  %v1795 = vld [vmem:[%s1637 + $0xf0] sm:$0xff]
  %v1796 = vld [vmem:[%s1637 + $0x100] sm:$0xff]
  %v1797 = vld [vmem:[%s1637 + $0x110] sm:$0xff]
  %1798 = vst [vmem:[#allocation5 + $0x18] sm:$0xff] %v1782
  %1799 = vst [vmem:[#allocation5 + $0x60] sm:$0xff] %v1783
  %1800 = vst [vmem:[#allocation5 + $0xa8] sm:$0xff] %v1784
  %1801 = vst [vmem:[#allocation5 + $0xf0] sm:$0xff] %v1785
  %1802 = vst [vmem:[#allocation5 + $0x138] sm:$0xff] %v1786
  %1803 = vst [vmem:[#allocation5 + $0x180] sm:$0xff] %v1787
  %1804 = vst [vmem:[#allocation5 + $0x1c8] sm:$0xff] %v1788
  %1805 = vst [vmem:[#allocation5 + $0x210] sm:$0xff] %v1789
  %1806 = vst [vmem:[#allocation5 + $0x258] sm:$0xff] %v1790
  %1807 = vst [vmem:[#allocation5 + $0x2a0] sm:$0xff] %v1791
  %1808 = vst [vmem:[#allocation5 + $0x2e8] sm:$0xff] %v1792
  %1809 = vst [vmem:[#allocation5 + $0x330] sm:$0xff] %v1793
  %1810 = vst [vmem:[#allocation5 + $0x378] sm:$0xff] %v1794
  %1811 = vst [vmem:[#allocation5 + $0x3c0] sm:$0xff] %v1795
  %1812 = vst [vmem:[#allocation5 + $0x408] sm:$0xff] %v1796
  %1813 = vst [vmem:[#allocation5 + $0x450] sm:$0xff] %v1797
  %v1814 = vld [vmem:[%s1637 + $0x1] sm:$0xff]
  %v1815 = vld [vmem:[%s1637 + $0x11] sm:$0xff]
  %v1816 = vld [vmem:[%s1637 + $0x21] sm:$0xff]
  %v1817 = vld [vmem:[%s1637 + $0x31] sm:$0xff]
  %v1818 = vld [vmem:[%s1637 + $0x41] sm:$0xff]
  %v1819 = vld [vmem:[%s1637 + $0x51] sm:$0xff]
  %v1820 = vld [vmem:[%s1637 + $0x61] sm:$0xff]
  %v1821 = vld [vmem:[%s1637 + $0x71] sm:$0xff]
  %v1822 = vld [vmem:[%s1637 + $0xa1] sm:$0xff]
  %v1823 = vld [vmem:[%s1637 + $0xb1] sm:$0xff]
  %v1824 = vld [vmem:[%s1637 + $0xc1] sm:$0xff]
  %v1825 = vld [vmem:[%s1637 + $0xd1] sm:$0xff]
  %v1826 = vld [vmem:[%s1637 + $0xe1] sm:$0xff]
  %v1827 = vld [vmem:[%s1637 + $0xf1] sm:$0xff]
  %v1828 = vld [vmem:[%s1637 + $0x101] sm:$0xff]
  %v1829 = vld [vmem:[%s1637 + $0x111] sm:$0xff]
  %1830 = vst [vmem:[#allocation5 + $0x20] sm:$0xff] %v1814
  %1831 = vst [vmem:[#allocation5 + $0x68] sm:$0xff] %v1815
  %1832 = vst [vmem:[#allocation5 + $0xb0] sm:$0xff] %v1816
  %1833 = vst [vmem:[#allocation5 + $0xf8] sm:$0xff] %v1817
  %1834 = vst [vmem:[#allocation5 + $0x140] sm:$0xff] %v1818
  %1835 = vst [vmem:[#allocation5 + $0x188] sm:$0xff] %v1819
  %1836 = vst [vmem:[#allocation5 + $0x1d0] sm:$0xff] %v1820
  %1837 = vst [vmem:[#allocation5 + $0x218] sm:$0xff] %v1821
  %1838 = vst [vmem:[#allocation5 + $0x260] sm:$0xff] %v1822
  %1839 = vst [vmem:[#allocation5 + $0x2a8] sm:$0xff] %v1823
  %1840 = vst [vmem:[#allocation5 + $0x2f0] sm:$0xff] %v1824
  %1841 = vst [vmem:[#allocation5 + $0x338] sm:$0xff] %v1825
  %1842 = vst [vmem:[#allocation5 + $0x380] sm:$0xff] %v1826
  %1843 = vst [vmem:[#allocation5 + $0x3c8] sm:$0xff] %v1827
  %1844 = vst [vmem:[#allocation5 + $0x410] sm:$0xff] %v1828
  %1845 = vst [vmem:[#allocation5 + $0x458] sm:$0xff] %v1829
  %v1846 = vld [vmem:[%s1637 + $0x2] sm:$0xff]
  %v1847 = vld [vmem:[%s1637 + $0x12] sm:$0xff]
  %v1848 = vld [vmem:[%s1637 + $0x22] sm:$0xff]
  %v1849 = vld [vmem:[%s1637 + $0x32] sm:$0xff]
  %v1850 = vld [vmem:[%s1637 + $0x42] sm:$0xff]
  %v1851 = vld [vmem:[%s1637 + $0x52] sm:$0xff]
  %v1852 = vld [vmem:[%s1637 + $0x62] sm:$0xff]
  %v1853 = vld [vmem:[%s1637 + $0x72] sm:$0xff]
  %v1854 = vld [vmem:[%s1637 + $0xa2] sm:$0xff]
  %v1855 = vld [vmem:[%s1637 + $0xb2] sm:$0xff]
  %v1856 = vld [vmem:[%s1637 + $0xc2] sm:$0xff]
  %v1857 = vld [vmem:[%s1637 + $0xd2] sm:$0xff]
  %v1858 = vld [vmem:[%s1637 + $0xe2] sm:$0xff]
  %v1859 = vld [vmem:[%s1637 + $0xf2] sm:$0xff]
  %v1860 = vld [vmem:[%s1637 + $0x102] sm:$0xff]
  %v1861 = vld [vmem:[%s1637 + $0x112] sm:$0xff]
  %1862 = vst [vmem:[#allocation5 + $0x28] sm:$0xff] %v1846
  %1863 = vst [vmem:[#allocation5 + $0x70] sm:$0xff] %v1847
  %1864 = vst [vmem:[#allocation5 + $0xb8] sm:$0xff] %v1848
  %1865 = vst [vmem:[#allocation5 + $0x100] sm:$0xff] %v1849
  %1866 = vst [vmem:[#allocation5 + $0x148] sm:$0xff] %v1850
  %1867 = vst [vmem:[#allocation5 + $0x190] sm:$0xff] %v1851
  %1868 = vst [vmem:[#allocation5 + $0x1d8] sm:$0xff] %v1852
  %1869 = vst [vmem:[#allocation5 + $0x220] sm:$0xff] %v1853
  %1870 = vst [vmem:[#allocation5 + $0x268] sm:$0xff] %v1854
  %1871 = vst [vmem:[#allocation5 + $0x2b0] sm:$0xff] %v1855
  %1872 = vst [vmem:[#allocation5 + $0x2f8] sm:$0xff] %v1856
  %1873 = vst [vmem:[#allocation5 + $0x340] sm:$0xff] %v1857
  %1874 = vst [vmem:[#allocation5 + $0x388] sm:$0xff] %v1858
  %1875 = vst [vmem:[#allocation5 + $0x3d0] sm:$0xff] %v1859
  %1876 = vst [vmem:[#allocation5 + $0x418] sm:$0xff] %v1860
  %1877 = vst [vmem:[#allocation5 + $0x460] sm:$0xff] %v1861
  %s1878 = scalar_lea.vmem [#allocation4], 32
  %v1879 = vld [vmem:[%s1878] sm:$0xff]
  %v1880 = vld [vmem:[%s1878 + $0x10] sm:$0xff]
  %v1881 = vld [vmem:[%s1878 + $0x20] sm:$0xff]
  %v1882 = vld [vmem:[%s1878 + $0x30] sm:$0xff]
  %v1883 = vld [vmem:[%s1878 + $0x40] sm:$0xff]
  %v1884 = vld [vmem:[%s1878 + $0x50] sm:$0xff]
  %v1885 = vld [vmem:[%s1878 + $0x60] sm:$0xff]
  %v1886 = vld [vmem:[%s1878 + $0x70] sm:$0xff]
  %v1887 = vld [vmem:[%s1878 + $0xa0] sm:$0xff]
  %v1888 = vld [vmem:[%s1878 + $0xb0] sm:$0xff]
  %v1889 = vld [vmem:[%s1878 + $0xc0] sm:$0xff]
  %v1890 = vld [vmem:[%s1878 + $0xd0] sm:$0xff]
  %v1891 = vld [vmem:[%s1878 + $0xe0] sm:$0xff]
  %v1892 = vld [vmem:[%s1878 + $0xf0] sm:$0xff]
  %v1893 = vld [vmem:[%s1878 + $0x100] sm:$0xff]
  %v1894 = vld [vmem:[%s1878 + $0x110] sm:$0xff]
  %1895 = vst [vmem:[#allocation5 + $0x30] sm:$0xff] %v1879
  %1896 = vst [vmem:[#allocation5 + $0x78] sm:$0xff] %v1880
  %1897 = vst [vmem:[#allocation5 + $0xc0] sm:$0xff] %v1881
  %1898 = vst [vmem:[#allocation5 + $0x108] sm:$0xff] %v1882
  %1899 = vst [vmem:[#allocation5 + $0x150] sm:$0xff] %v1883
  %1900 = vst [vmem:[#allocation5 + $0x198] sm:$0xff] %v1884
  %1901 = vst [vmem:[#allocation5 + $0x1e0] sm:$0xff] %v1885
  %1902 = vst [vmem:[#allocation5 + $0x228] sm:$0xff] %v1886
  %1903 = vst [vmem:[#allocation5 + $0x270] sm:$0xff] %v1887
  %1904 = vst [vmem:[#allocation5 + $0x2b8] sm:$0xff] %v1888
  %1905 = vst [vmem:[#allocation5 + $0x300] sm:$0xff] %v1889
  %1906 = vst [vmem:[#allocation5 + $0x348] sm:$0xff] %v1890
  %1907 = vst [vmem:[#allocation5 + $0x390] sm:$0xff] %v1891
  %1908 = vst [vmem:[#allocation5 + $0x3d8] sm:$0xff] %v1892
  %1909 = vst [vmem:[#allocation5 + $0x420] sm:$0xff] %v1893
  %1910 = vst [vmem:[#allocation5 + $0x468] sm:$0xff] %v1894
  %v1911 = vld [vmem:[%s1878 + $0x1] sm:$0xff]
  %v1912 = vld [vmem:[%s1878 + $0x11] sm:$0xff]
  %v1913 = vld [vmem:[%s1878 + $0x21] sm:$0xff]
  %v1914 = vld [vmem:[%s1878 + $0x31] sm:$0xff]
  %v1915 = vld [vmem:[%s1878 + $0x41] sm:$0xff]
  %v1916 = vld [vmem:[%s1878 + $0x51] sm:$0xff]
  %v1917 = vld [vmem:[%s1878 + $0x61] sm:$0xff]
  %v1918 = vld [vmem:[%s1878 + $0x71] sm:$0xff]
  %v1919 = vld [vmem:[%s1878 + $0xa1] sm:$0xff]
  %v1920 = vld [vmem:[%s1878 + $0xb1] sm:$0xff]
  %v1921 = vld [vmem:[%s1878 + $0xc1] sm:$0xff]
  %v1922 = vld [vmem:[%s1878 + $0xd1] sm:$0xff]
  %v1923 = vld [vmem:[%s1878 + $0xe1] sm:$0xff]
  %v1924 = vld [vmem:[%s1878 + $0xf1] sm:$0xff]
  %v1925 = vld [vmem:[%s1878 + $0x101] sm:$0xff]
  %v1926 = vld [vmem:[%s1878 + $0x111] sm:$0xff]
  %1927 = vst [vmem:[#allocation5 + $0x38] sm:$0xff] %v1911
  %1928 = vst [vmem:[#allocation5 + $0x80] sm:$0xff] %v1912
  %1929 = vst [vmem:[#allocation5 + $0xc8] sm:$0xff] %v1913
  %1930 = vst [vmem:[#allocation5 + $0x110] sm:$0xff] %v1914
  %1931 = vst [vmem:[#allocation5 + $0x158] sm:$0xff] %v1915
  %1932 = vst [vmem:[#allocation5 + $0x1a0] sm:$0xff] %v1916
  %1933 = vst [vmem:[#allocation5 + $0x1e8] sm:$0xff] %v1917
  %1934 = vst [vmem:[#allocation5 + $0x230] sm:$0xff] %v1918
  %1935 = vst [vmem:[#allocation5 + $0x278] sm:$0xff] %v1919
  %1936 = vst [vmem:[#allocation5 + $0x2c0] sm:$0xff] %v1920
  %1937 = vst [vmem:[#allocation5 + $0x308] sm:$0xff] %v1921
  %1938 = vst [vmem:[#allocation5 + $0x350] sm:$0xff] %v1922
  %1939 = vst [vmem:[#allocation5 + $0x398] sm:$0xff] %v1923
  %1940 = vst [vmem:[#allocation5 + $0x3e0] sm:$0xff] %v1924
  %1941 = vst [vmem:[#allocation5 + $0x428] sm:$0xff] %v1925
  %1942 = vst [vmem:[#allocation5 + $0x470] sm:$0xff] %v1926
  %v1943 = vld [vmem:[%s1878 + $0x2] sm:$0xff]
  %v1944 = vld [vmem:[%s1878 + $0x12] sm:$0xff]
  %v1945 = vld [vmem:[%s1878 + $0x22] sm:$0xff]
  %v1946 = vld [vmem:[%s1878 + $0x32] sm:$0xff]
  %v1947 = vld [vmem:[%s1878 + $0x42] sm:$0xff]
  %v1948 = vld [vmem:[%s1878 + $0x52] sm:$0xff]
  %v1949 = vld [vmem:[%s1878 + $0x62] sm:$0xff]
  %v1950 = vld [vmem:[%s1878 + $0x72] sm:$0xff]
  %v1951 = vld [vmem:[%s1878 + $0xa2] sm:$0xff]
  %v1952 = vld [vmem:[%s1878 + $0xb2] sm:$0xff]
  %v1953 = vld [vmem:[%s1878 + $0xc2] sm:$0xff]
  %v1954 = vld [vmem:[%s1878 + $0xd2] sm:$0xff]
  %v1955 = vld [vmem:[%s1878 + $0xe2] sm:$0xff]
  %v1956 = vld [vmem:[%s1878 + $0xf2] sm:$0xff]
  %v1957 = vld [vmem:[%s1878 + $0x102] sm:$0xff]
  %v1958 = vld [vmem:[%s1878 + $0x112] sm:$0xff]
  %1959 = vst [vmem:[#allocation5 + $0x40] sm:$0xff] %v1943
  %1960 = vst [vmem:[#allocation5 + $0x88] sm:$0xff] %v1944
  %1961 = vst [vmem:[#allocation5 + $0xd0] sm:$0xff] %v1945
  %1962 = vst [vmem:[#allocation5 + $0x118] sm:$0xff] %v1946
  %1963 = vst [vmem:[#allocation5 + $0x160] sm:$0xff] %v1947
  %1964 = vst [vmem:[#allocation5 + $0x1a8] sm:$0xff] %v1948
  %1965 = vst [vmem:[#allocation5 + $0x1f0] sm:$0xff] %v1949
  %1966 = vst [vmem:[#allocation5 + $0x238] sm:$0xff] %v1950
  %1967 = vst [vmem:[#allocation5 + $0x280] sm:$0xff] %v1951
  %1968 = vst [vmem:[#allocation5 + $0x2c8] sm:$0xff] %v1952
  %1969 = vst [vmem:[#allocation5 + $0x310] sm:$0xff] %v1953
  %1970 = vst [vmem:[#allocation5 + $0x358] sm:$0xff] %v1954
  %1971 = vst [vmem:[#allocation5 + $0x3a0] sm:$0xff] %v1955
  %1972 = vst [vmem:[#allocation5 + $0x3e8] sm:$0xff] %v1956
  %1973 = vst [vmem:[#allocation5 + $0x430] sm:$0xff] %v1957
  %1974 = vst [vmem:[#allocation5 + $0x478] sm:$0xff] %v1958
  %v1975 = vld [vmem:[#allocation5] sm:$0xff]
  %v1976 = vld [vmem:[#allocation5 + $0x8] sm:$0xff]
  %v1977 = vld [vmem:[#allocation5 + $0x10] sm:$0xff]
  %v1978 = vld [vmem:[#allocation5 + $0x18] sm:$0xff]
  %v1979 = vld [vmem:[#allocation5 + $0x20] sm:$0xff]
  %v1980 = vld [vmem:[#allocation5 + $0x28] sm:$0xff]
  %v1981 = vld [vmem:[#allocation5 + $0x30] sm:$0xff]
  %v1982 = vld [vmem:[#allocation5 + $0x38] sm:$0xff]
  %v1983 = vld [vmem:[#allocation5 + $0x40] sm:$0xff]
  %v1984 = vld [vmem:[#allocation5 + $0x48] sm:$0xff]
  %v1985 = vld [vmem:[#allocation5 + $0x50] sm:$0xff]
  %v1986 = vld [vmem:[#allocation5 + $0x58] sm:$0xff]
  %v1987 = vld [vmem:[#allocation5 + $0x60] sm:$0xff]
  %v1988 = vld [vmem:[#allocation5 + $0x68] sm:$0xff]
  %v1989 = vld [vmem:[#allocation5 + $0x70] sm:$0xff]
  %v1990 = vld [vmem:[#allocation5 + $0x78] sm:$0xff]
  %v1991 = vld [vmem:[#allocation5 + $0x80] sm:$0xff]
  %v1992 = vld [vmem:[#allocation5 + $0x88] sm:$0xff]
  %v1993 = vld [vmem:[#allocation5 + $0x90] sm:$0xff]
  %v1994 = vld [vmem:[#allocation5 + $0x98] sm:$0xff]
  %v1995 = vld [vmem:[#allocation5 + $0xa0] sm:$0xff]
  %v1996 = vld [vmem:[#allocation5 + $0xa8] sm:$0xff]
  %v1997 = vld [vmem:[#allocation5 + $0xb0] sm:$0xff]
  %v1998 = vld [vmem:[#allocation5 + $0xb8] sm:$0xff]
  %v1999 = vld [vmem:[#allocation5 + $0xc0] sm:$0xff]
  %v2000 = vld [vmem:[#allocation5 + $0xc8] sm:$0xff]
  %v2001 = vld [vmem:[#allocation5 + $0xd0] sm:$0xff]
  %v2002 = vld [vmem:[#allocation5 + $0xd8] sm:$0xff]
  %v2003 = vld [vmem:[#allocation5 + $0xe0] sm:$0xff]
  %v2004 = vld [vmem:[#allocation5 + $0xe8] sm:$0xff]
  %v2005 = vld [vmem:[#allocation5 + $0xf0] sm:$0xff]
  %v2006 = vld [vmem:[#allocation5 + $0xf8] sm:$0xff]
  %v2007 = vld [vmem:[#allocation5 + $0x100] sm:$0xff]
  %v2008 = vld [vmem:[#allocation5 + $0x108] sm:$0xff]
  %v2009 = vld [vmem:[#allocation5 + $0x110] sm:$0xff]
  %v2010 = vld [vmem:[#allocation5 + $0x118] sm:$0xff]
  %v2011 = vld [vmem:[#allocation5 + $0x120] sm:$0xff]
  %v2012 = vld [vmem:[#allocation5 + $0x128] sm:$0xff]
  %v2013 = vld [vmem:[#allocation5 + $0x130] sm:$0xff]
  %v2014 = vld [vmem:[#allocation5 + $0x138] sm:$0xff]
  %v2015 = vld [vmem:[#allocation5 + $0x140] sm:$0xff]
  %v2016 = vld [vmem:[#allocation5 + $0x148] sm:$0xff]
  %v2017 = vld [vmem:[#allocation5 + $0x150] sm:$0xff]
  %v2018 = vld [vmem:[#allocation5 + $0x158] sm:$0xff]
  %v2019 = vld [vmem:[#allocation5 + $0x160] sm:$0xff]
  %v2020 = vld [vmem:[#allocation5 + $0x168] sm:$0xff]
  %v2021 = vld [vmem:[#allocation5 + $0x170] sm:$0xff]
  %v2022 = vld [vmem:[#allocation5 + $0x178] sm:$0xff]
  %v2023 = vld [vmem:[#allocation5 + $0x180] sm:$0xff]
  %v2024 = vld [vmem:[#allocation5 + $0x188] sm:$0xff]
  %v2025 = vld [vmem:[#allocation5 + $0x190] sm:$0xff]
  %v2026 = vld [vmem:[#allocation5 + $0x198] sm:$0xff]
  %v2027 = vld [vmem:[#allocation5 + $0x1a0] sm:$0xff]
  %v2028 = vld [vmem:[#allocation5 + $0x1a8] sm:$0xff]
  %v2029 = vld [vmem:[#allocation5 + $0x1b0] sm:$0xff]
  %v2030 = vld [vmem:[#allocation5 + $0x1b8] sm:$0xff]
  %v2031 = vld [vmem:[#allocation5 + $0x1c0] sm:$0xff]
  %v2032 = vld [vmem:[#allocation5 + $0x1c8] sm:$0xff]
  %v2033 = vld [vmem:[#allocation5 + $0x1d0] sm:$0xff]
  %v2034 = vld [vmem:[#allocation5 + $0x1d8] sm:$0xff]
  %v2035 = vld [vmem:[#allocation5 + $0x1e0] sm:$0xff]
  %v2036 = vld [vmem:[#allocation5 + $0x1e8] sm:$0xff]
  %v2037 = vld [vmem:[#allocation5 + $0x1f0] sm:$0xff]
  %v2038 = vld [vmem:[#allocation5 + $0x1f8] sm:$0xff]
  %v2039 = vld [vmem:[#allocation5 + $0x200] sm:$0xff]
  %v2040 = vld [vmem:[#allocation5 + $0x208] sm:$0xff]
  %v2041 = vld [vmem:[#allocation5 + $0x210] sm:$0xff]
  %v2042 = vld [vmem:[#allocation5 + $0x218] sm:$0xff]
  %v2043 = vld [vmem:[#allocation5 + $0x220] sm:$0xff]
  %v2044 = vld [vmem:[#allocation5 + $0x228] sm:$0xff]
  %v2045 = vld [vmem:[#allocation5 + $0x230] sm:$0xff]
  %v2046 = vld [vmem:[#allocation5 + $0x238] sm:$0xff]
  %v2047 = vld [vmem:[#allocation5 + $0x240] sm:$0xff]
  %v2048 = vld [vmem:[#allocation5 + $0x248] sm:$0xff]
  %v2049 = vld [vmem:[#allocation5 + $0x250] sm:$0xff]
  %v2050 = vld [vmem:[#allocation5 + $0x258] sm:$0xff]
  %v2051 = vld [vmem:[#allocation5 + $0x260] sm:$0xff]
  %v2052 = vld [vmem:[#allocation5 + $0x268] sm:$0xff]
  %v2053 = vld [vmem:[#allocation5 + $0x270] sm:$0xff]
  %v2054 = vld [vmem:[#allocation5 + $0x278] sm:$0xff]
  %v2055 = vld [vmem:[#allocation5 + $0x280] sm:$0xff]
  %v2056 = vld [vmem:[#allocation5 + $0x288] sm:$0xff]
  %v2057 = vld [vmem:[#allocation5 + $0x290] sm:$0xff]
  %v2058 = vld [vmem:[#allocation5 + $0x298] sm:$0xff]
  %v2059 = vld [vmem:[#allocation5 + $0x2a0] sm:$0xff]
  %v2060 = vld [vmem:[#allocation5 + $0x2a8] sm:$0xff]
  %v2061 = vld [vmem:[#allocation5 + $0x2b0] sm:$0xff]
  %v2062 = vld [vmem:[#allocation5 + $0x2b8] sm:$0xff]
  %v2063 = vld [vmem:[#allocation5 + $0x2c0] sm:$0xff]
  %v2064 = vld [vmem:[#allocation5 + $0x2c8] sm:$0xff]
  %v2065 = vld [vmem:[#allocation5 + $0x2d0] sm:$0xff]
  %v2066 = vld [vmem:[#allocation5 + $0x2d8] sm:$0xff]
  %v2067 = vld [vmem:[#allocation5 + $0x2e0] sm:$0xff]
  %v2068 = vld [vmem:[#allocation5 + $0x2e8] sm:$0xff]
  %v2069 = vld [vmem:[#allocation5 + $0x2f0] sm:$0xff]
  %v2070 = vld [vmem:[#allocation5 + $0x2f8] sm:$0xff]
  %v2071 = vld [vmem:[#allocation5 + $0x300] sm:$0xff]
  %v2072 = vld [vmem:[#allocation5 + $0x308] sm:$0xff]
  %v2073 = vld [vmem:[#allocation5 + $0x310] sm:$0xff]
  %v2074 = vld [vmem:[#allocation5 + $0x318] sm:$0xff]
  %v2075 = vld [vmem:[#allocation5 + $0x320] sm:$0xff]
  %v2076 = vld [vmem:[#allocation5 + $0x328] sm:$0xff]
  %v2077 = vld [vmem:[#allocation5 + $0x330] sm:$0xff]
  %v2078 = vld [vmem:[#allocation5 + $0x338] sm:$0xff]
  %v2079 = vld [vmem:[#allocation5 + $0x340] sm:$0xff]
  %v2080 = vld [vmem:[#allocation5 + $0x348] sm:$0xff]
  %v2081 = vld [vmem:[#allocation5 + $0x350] sm:$0xff]
  %v2082 = vld [vmem:[#allocation5 + $0x358] sm:$0xff]
  %v2083 = vld [vmem:[#allocation5 + $0x360] sm:$0xff]
  %v2084 = vld [vmem:[#allocation5 + $0x368] sm:$0xff]
  %v2085 = vld [vmem:[#allocation5 + $0x370] sm:$0xff]
  %v2086 = vld [vmem:[#allocation5 + $0x378] sm:$0xff]
  %v2087 = vld [vmem:[#allocation5 + $0x380] sm:$0xff]
  %v2088 = vld [vmem:[#allocation5 + $0x388] sm:$0xff]
  %v2089 = vld [vmem:[#allocation5 + $0x390] sm:$0xff]
  %v2090 = vld [vmem:[#allocation5 + $0x398] sm:$0xff]
  %v2091 = vld [vmem:[#allocation5 + $0x3a0] sm:$0xff]
  %v2092 = vld [vmem:[#allocation5 + $0x3a8] sm:$0xff]
  %v2093 = vld [vmem:[#allocation5 + $0x3b0] sm:$0xff]
  %v2094 = vld [vmem:[#allocation5 + $0x3b8] sm:$0xff]
  %v2095 = vld [vmem:[#allocation5 + $0x3c0] sm:$0xff]
  %v2096 = vld [vmem:[#allocation5 + $0x3c8] sm:$0xff]
  %v2097 = vld [vmem:[#allocation5 + $0x3d0] sm:$0xff]
  %v2098 = vld [vmem:[#allocation5 + $0x3d8] sm:$0xff]
  %v2099 = vld [vmem:[#allocation5 + $0x3e0] sm:$0xff]
  %v2100 = vld [vmem:[#allocation5 + $0x3e8] sm:$0xff]
  %v2101 = vld [vmem:[#allocation5 + $0x3f0] sm:$0xff]
  %v2102 = vld [vmem:[#allocation5 + $0x3f8] sm:$0xff]
  %v2103 = vld [vmem:[#allocation5 + $0x400] sm:$0xff]
  %v2104 = vld [vmem:[#allocation5 + $0x408] sm:$0xff]
  %v2105 = vld [vmem:[#allocation5 + $0x410] sm:$0xff]
  %v2106 = vld [vmem:[#allocation5 + $0x418] sm:$0xff]
  %v2107 = vld [vmem:[#allocation5 + $0x420] sm:$0xff]
  %v2108 = vld [vmem:[#allocation5 + $0x428] sm:$0xff]
  %v2109 = vld [vmem:[#allocation5 + $0x430] sm:$0xff]
  %v2110 = vld [vmem:[#allocation5 + $0x438] sm:$0xff]
  %v2111 = vld [vmem:[#allocation5 + $0x440] sm:$0xff]
  %v2112 = vld [vmem:[#allocation5 + $0x448] sm:$0xff]
  %v2113 = vld [vmem:[#allocation5 + $0x450] sm:$0xff]
  %v2114 = vld [vmem:[#allocation5 + $0x458] sm:$0xff]
  %v2115 = vld [vmem:[#allocation5 + $0x460] sm:$0xff]
  %v2116 = vld [vmem:[#allocation5 + $0x468] sm:$0xff]
  %v2117 = vld [vmem:[#allocation5 + $0x470] sm:$0xff]
  %v2118 = vld [vmem:[#allocation5 + $0x478] sm:$0xff]
  %v2119 = vld [vmem:[%s4] sm:$0xff]
  %v2120 = vld [vmem:[%s4 + $0x8] sm:$0xff]
  %v2121 = vld [vmem:[%s4 + $0x10] sm:$0xff]
  %v2122 = vld [vmem:[%s4 + $0x18] sm:$0xff]
  %v2123 = vld [vmem:[%s4 + $0x20] sm:$0xff]
  %v2124 = vld [vmem:[%s4 + $0x28] sm:$0xff]
  %v2125 = vld [vmem:[%s4 + $0x30] sm:$0xff]
  %v2126 = vld [vmem:[%s4 + $0x38] sm:$0xff]
  %v2127 = vld [vmem:[%s4 + $0x40] sm:$0xff]
  %v2128 = vld [vmem:[%s4 + $0x48] sm:$0xff]
  %v2129 = vld [vmem:[%s4 + $0x50] sm:$0xff]
  %v2130 = vld [vmem:[%s4 + $0x58] sm:$0xff]
  %v2131 = vld [vmem:[%s4 + $0x60] sm:$0xff]
  %v2132 = vld [vmem:[%s4 + $0x68] sm:$0xff]
  %v2133 = vld [vmem:[%s4 + $0x70] sm:$0xff]
  %v2134 = vld [vmem:[%s4 + $0x78] sm:$0xff]
  %v2135 = vld [vmem:[%s4 + $0x80] sm:$0xff]
  %v2136 = vld [vmem:[%s4 + $0x88] sm:$0xff]
  %v2137 = vld [vmem:[%s4 + $0x90] sm:$0xff]
  %v2138 = vld [vmem:[%s4 + $0x98] sm:$0xff]
  %v2139 = vld [vmem:[%s4 + $0xa0] sm:$0xff]
  %v2140 = vld [vmem:[%s4 + $0xa8] sm:$0xff]
  %v2141 = vld [vmem:[%s4 + $0xb0] sm:$0xff]
  %v2142 = vld [vmem:[%s4 + $0xb8] sm:$0xff]
  %v2143 = vld [vmem:[%s4 + $0xc0] sm:$0xff]
  %v2144 = vld [vmem:[%s4 + $0xc8] sm:$0xff]
  %v2145 = vld [vmem:[%s4 + $0xd0] sm:$0xff]
  %v2146 = vld [vmem:[%s4 + $0xd8] sm:$0xff]
  %v2147 = vld [vmem:[%s4 + $0xe0] sm:$0xff]
  %v2148 = vld [vmem:[%s4 + $0xe8] sm:$0xff]
  %v2149 = vld [vmem:[%s4 + $0xf0] sm:$0xff]
  %v2150 = vld [vmem:[%s4 + $0xf8] sm:$0xff]
  %v2151 = vld [vmem:[%s4 + $0x100] sm:$0xff]
  %v2152 = vld [vmem:[%s4 + $0x108] sm:$0xff]
  %v2153 = vld [vmem:[%s4 + $0x110] sm:$0xff]
  %v2154 = vld [vmem:[%s4 + $0x118] sm:$0xff]
  %v2155 = vld [vmem:[%s4 + $0x120] sm:$0xff]
  %v2156 = vld [vmem:[%s4 + $0x128] sm:$0xff]
  %v2157 = vld [vmem:[%s4 + $0x130] sm:$0xff]
  %v2158 = vld [vmem:[%s4 + $0x138] sm:$0xff]
  %v2159 = vld [vmem:[%s4 + $0x140] sm:$0xff]
  %v2160 = vld [vmem:[%s4 + $0x148] sm:$0xff]
  %v2161 = vld [vmem:[%s4 + $0x150] sm:$0xff]
  %v2162 = vld [vmem:[%s4 + $0x158] sm:$0xff]
  %v2163 = vld [vmem:[%s4 + $0x160] sm:$0xff]
  %v2164 = vld [vmem:[%s4 + $0x168] sm:$0xff]
  %v2165 = vld [vmem:[%s4 + $0x170] sm:$0xff]
  %v2166 = vld [vmem:[%s4 + $0x178] sm:$0xff]
  %v2167 = vld [vmem:[%s4 + $0x180] sm:$0xff]
  %v2168 = vld [vmem:[%s4 + $0x188] sm:$0xff]
  %v2169 = vld [vmem:[%s4 + $0x190] sm:$0xff]
  %v2170 = vld [vmem:[%s4 + $0x198] sm:$0xff]
  %v2171 = vld [vmem:[%s4 + $0x1a0] sm:$0xff]
  %v2172 = vld [vmem:[%s4 + $0x1a8] sm:$0xff]
  %v2173 = vld [vmem:[%s4 + $0x1b0] sm:$0xff]
  %v2174 = vld [vmem:[%s4 + $0x1b8] sm:$0xff]
  %v2175 = vld [vmem:[%s4 + $0x1c0] sm:$0xff]
  %v2176 = vld [vmem:[%s4 + $0x1c8] sm:$0xff]
  %v2177 = vld [vmem:[%s4 + $0x1d0] sm:$0xff]
  %v2178 = vld [vmem:[%s4 + $0x1d8] sm:$0xff]
  %v2179 = vld [vmem:[%s4 + $0x1e0] sm:$0xff]
  %v2180 = vld [vmem:[%s4 + $0x1e8] sm:$0xff]
  %v2181 = vld [vmem:[%s4 + $0x1f0] sm:$0xff]
  %v2182 = vld [vmem:[%s4 + $0x1f8] sm:$0xff]
  %v2183 = vld [vmem:[%s4 + $0x200] sm:$0xff]
  %v2184 = vld [vmem:[%s4 + $0x208] sm:$0xff]
  %v2185 = vld [vmem:[%s4 + $0x210] sm:$0xff]
  %v2186 = vld [vmem:[%s4 + $0x218] sm:$0xff]
  %v2187 = vld [vmem:[%s4 + $0x220] sm:$0xff]
  %v2188 = vld [vmem:[%s4 + $0x228] sm:$0xff]
  %v2189 = vld [vmem:[%s4 + $0x230] sm:$0xff]
  %v2190 = vld [vmem:[%s4 + $0x238] sm:$0xff]
  %v2191 = vld [vmem:[%s4 + $0x240] sm:$0xff]
  %v2192 = vld [vmem:[%s4 + $0x248] sm:$0xff]
  %v2193 = vld [vmem:[%s4 + $0x250] sm:$0xff]
  %v2194 = vld [vmem:[%s4 + $0x258] sm:$0xff]
  %v2195 = vld [vmem:[%s4 + $0x260] sm:$0xff]
  %v2196 = vld [vmem:[%s4 + $0x268] sm:$0xff]
  %v2197 = vld [vmem:[%s4 + $0x270] sm:$0xff]
  %v2198 = vld [vmem:[%s4 + $0x278] sm:$0xff]
  %v2199 = vld [vmem:[%s4 + $0x280] sm:$0xff]
  %v2200 = vld [vmem:[%s4 + $0x288] sm:$0xff]
  %v2201 = vld [vmem:[%s4 + $0x290] sm:$0xff]
  %v2202 = vld [vmem:[%s4 + $0x298] sm:$0xff]
  %v2203 = vld [vmem:[%s4 + $0x2a0] sm:$0xff]
  %v2204 = vld [vmem:[%s4 + $0x2a8] sm:$0xff]
  %v2205 = vld [vmem:[%s4 + $0x2b0] sm:$0xff]
  %v2206 = vld [vmem:[%s4 + $0x2b8] sm:$0xff]
  %v2207 = vld [vmem:[%s4 + $0x2c0] sm:$0xff]
  %v2208 = vld [vmem:[%s4 + $0x2c8] sm:$0xff]
  %v2209 = vld [vmem:[%s4 + $0x2d0] sm:$0xff]
  %v2210 = vld [vmem:[%s4 + $0x2d8] sm:$0xff]
  %v2211 = vld [vmem:[%s4 + $0x2e0] sm:$0xff]
  %v2212 = vld [vmem:[%s4 + $0x2e8] sm:$0xff]
  %v2213 = vld [vmem:[%s4 + $0x2f0] sm:$0xff]
  %v2214 = vld [vmem:[%s4 + $0x2f8] sm:$0xff]
  %v2215 = vld [vmem:[%s4 + $0x300] sm:$0xff]
  %v2216 = vld [vmem:[%s4 + $0x308] sm:$0xff]
  %v2217 = vld [vmem:[%s4 + $0x310] sm:$0xff]
  %v2218 = vld [vmem:[%s4 + $0x318] sm:$0xff]
  %v2219 = vld [vmem:[%s4 + $0x320] sm:$0xff]
  %v2220 = vld [vmem:[%s4 + $0x328] sm:$0xff]
  %v2221 = vld [vmem:[%s4 + $0x330] sm:$0xff]
  %v2222 = vld [vmem:[%s4 + $0x338] sm:$0xff]
  %v2223 = vld [vmem:[%s4 + $0x340] sm:$0xff]
  %v2224 = vld [vmem:[%s4 + $0x348] sm:$0xff]
  %v2225 = vld [vmem:[%s4 + $0x350] sm:$0xff]
  %v2226 = vld [vmem:[%s4 + $0x358] sm:$0xff]
  %v2227 = vld [vmem:[%s4 + $0x360] sm:$0xff]
  %v2228 = vld [vmem:[%s4 + $0x368] sm:$0xff]
  %v2229 = vld [vmem:[%s4 + $0x370] sm:$0xff]
  %v2230 = vld [vmem:[%s4 + $0x378] sm:$0xff]
  %v2231 = vld [vmem:[%s4 + $0x380] sm:$0xff]
  %v2232 = vld [vmem:[%s4 + $0x388] sm:$0xff]
  %v2233 = vld [vmem:[%s4 + $0x390] sm:$0xff]
  %v2234 = vld [vmem:[%s4 + $0x398] sm:$0xff]
  %v2235 = vld [vmem:[%s4 + $0x3a0] sm:$0xff]
  %v2236 = vld [vmem:[%s4 + $0x3a8] sm:$0xff]
  %v2237 = vld [vmem:[%s4 + $0x3b0] sm:$0xff]
  %v2238 = vld [vmem:[%s4 + $0x3b8] sm:$0xff]
  %v2239 = vld [vmem:[%s4 + $0x3c0] sm:$0xff]
  %v2240 = vld [vmem:[%s4 + $0x3c8] sm:$0xff]
  %v2241 = vld [vmem:[%s4 + $0x3d0] sm:$0xff]
  %v2242 = vld [vmem:[%s4 + $0x3d8] sm:$0xff]
  %v2243 = vld [vmem:[%s4 + $0x3e0] sm:$0xff]
  %v2244 = vld [vmem:[%s4 + $0x3e8] sm:$0xff]
  %v2245 = vld [vmem:[%s4 + $0x3f0] sm:$0xff]
  %v2246 = vld [vmem:[%s4 + $0x3f8] sm:$0xff]
  %v2247 = vld [vmem:[%s4 + $0x400] sm:$0xff]
  %v2248 = vld [vmem:[%s4 + $0x408] sm:$0xff]
  %v2249 = vld [vmem:[%s4 + $0x410] sm:$0xff]
  %v2250 = vld [vmem:[%s4 + $0x418] sm:$0xff]
  %v2251 = vld [vmem:[%s4 + $0x420] sm:$0xff]
  %v2252 = vld [vmem:[%s4 + $0x428] sm:$0xff]
  %v2253 = vld [vmem:[%s4 + $0x430] sm:$0xff]
  %v2254 = vld [vmem:[%s4 + $0x438] sm:$0xff]
  %v2255 = vld [vmem:[%s4 + $0x440] sm:$0xff]
  %v2256 = vld [vmem:[%s4 + $0x448] sm:$0xff]
  %v2257 = vld [vmem:[%s4 + $0x450] sm:$0xff]
  %v2258 = vld [vmem:[%s4 + $0x458] sm:$0xff]
  %v2259 = vld [vmem:[%s4 + $0x460] sm:$0xff]
  %v2260 = vld [vmem:[%s4 + $0x468] sm:$0xff]
  %v2261 = vld [vmem:[%s4 + $0x470] sm:$0xff]
  %v2262 = vld [vmem:[%s4 + $0x478] sm:$0xff]
  %2263 = vmatprep.subr.mxu0 0.0
  %2264 = vmatpush1.msra.mxu0 %v2119
  %2265 = vmatprep.subr.mxu0 0.0
  %2266 = vmatpush1.msra.mxu0 %v2120
  %2267 = vmatprep.subr.mxu0 0.0
  %2268 = vmatpush1.msra.mxu0 %v2121
  %2269 = vmatprep.subr.mxu0 0.0
  %2270 = vmatpush1.msra.mxu0 %v2122
  %2271 = vmatprep.subr.mxu0 0.0
  %2272 = vmatpush1.msra.mxu0 %v2123
  %2273 = vmatprep.subr.mxu0 0.0
  %2274 = vmatpush1.msra.mxu0 %v2124
  %2275 = vmatprep.subr.mxu0 0.0
  %2276 = vmatpush1.msra.mxu0 %v2125
  %2277 = vmatprep.subr.mxu0 0.0
  %2278 = vmatpush1.msra.mxu0 %v2126
  %2279 = vmatprep.subr.mxu0 0.0
  %2280 = vmatpush1.msra.mxu0 %v2127
  %2281 = vmatprep.subr.mxu0 0.0
  %2282 = vmatpush1.msra.mxu0 %v2128
  %2283 = vmatprep.subr.mxu0 0.0
  %2284 = vmatpush1.msra.mxu0 %v2129
  %2285 = vmatprep.subr.mxu0 0.0
  %2286 = vmatpush1.msra.mxu0 %v2130
  %2287 = vmatprep.subr.mxu0 0.0
  %2288 = vmatpush1.msra.mxu0 %v2131
  %2289 = vmatprep.subr.mxu0 0.0
  %2290 = vmatpush1.msra.mxu0 %v2132
  %2291 = vmatprep.subr.mxu0 0.0
  %2292 = vmatpush1.msra.mxu0 %v2133
  %2293 = vmatprep.subr.mxu0 0.0
  %2294 = vmatpush1.msra.mxu0 %v2134
  %2295 = vmatprep.subr.mxu0 0.0
  %2296 = vmatpush1.msra.mxu0 %v2135
  %2297 = vmatprep.subr.mxu0 0.0
  %2298 = vmatpush1.msra.mxu0 %v2136
  %2299 = vmatprep.subr.mxu0 0.0
  %2300 = vmatpush1.msra.mxu0 %v2137
  %2301 = vmatprep.subr.mxu0 0.0
  %2302 = vmatpush1.msra.mxu0 %v2138
  %2303 = vmatprep.subr.mxu0 0.0
  %2304 = vmatpush1.msra.mxu0 %v2139
  %2305 = vmatprep.subr.mxu0 0.0
  %2306 = vmatpush1.msra.mxu0 %v2140
  %2307 = vmatprep.subr.mxu0 0.0
  %2308 = vmatpush1.msra.mxu0 %v2141
  %2309 = vmatprep.subr.mxu0 0.0
  %2310 = vmatpush1.msra.mxu0 %v2142
  %2311 = vmatprep.subr.mxu0 0.0
  %2312 = vmatpush1.msra.mxu0 %v2143
  %2313 = vmatprep.subr.mxu0 0.0
  %2314 = vmatpush1.msra.mxu0 %v2144
  %2315 = vmatprep.subr.mxu0 0.0
  %2316 = vmatpush1.msra.mxu0 %v2145
  %2317 = vmatprep.subr.mxu0 0.0
  %2318 = vmatpush1.msra.mxu0 %v2146
  %2319 = vmatprep.subr.mxu0 0.0
  %2320 = vmatpush1.msra.mxu0 %v2147
  %2321 = vmatprep.subr.mxu0 0.0
  %2322 = vmatpush1.msra.mxu0 %v2148
  %2323 = vmatprep.subr.mxu0 0.0
  %2324 = vmatpush1.msra.mxu0 %v2149
  %2325 = vmatprep.subr.mxu0 0.0
  %2326 = vmatpush1.msra.mxu0 %v2150
  %2327 = vmatprep.mubr.f32.mxu0 %v1976
  %2328 = vmatmul.mubr.f32.gmra.mrb[0].mxu0 %v1975
  %v2329 = vpop.f32.mrb[0].mxu0
  %v2330 = vadd.f32 0.0, %v2329
  %v2331 = vpop.f32.mrb[0].mxu0
  %2332 = vmatprep.mubr.f32.mxu0 %v1985
  %2333 = vmatmul.mubr.f32.gmra.mrb[0].mxu0 %v1984
  %v2334 = vpop.f32.mrb[0].mxu0
  %v2335 = vadd.f32 0.0, %v2334
  %v2336 = vpop.f32.mrb[0].mxu0
  %2337 = vmatprep.mubr.f32.mxu0 %v1994
  %2338 = vmatmul.mubr.f32.gmra.mrb[0].mxu0 %v1993
  %v2339 = vpop.f32.mrb[0].mxu0
  %v2340 = vadd.f32 0.0, %v2339
  %v2341 = vpop.f32.mrb[0].mxu0
  %2342 = vmatprep.mubr.f32.mxu0 %v2003
  %2343 = vmatmul.mubr.f32.gmra.mrb[0].mxu0 %v2002
  %v2344 = vpop.f32.mrb[0].mxu0
  %v2345 = vadd.f32 0.0, %v2344
  %v2346 = vpop.f32.mrb[0].mxu0
  %2347 = vmatprep.mubr.f32.mxu0 %v2012
  %2348 = vmatmul.mubr.f32.gmra.mrb[0].mxu0 %v2011
  %v2349 = vpop.f32.mrb[0].mxu0
  %v2350 = vadd.f32 0.0, %v2349
  %v2351 = vpop.f32.mrb[0].mxu0
  %2352 = vmatprep.mubr.f32.mxu0 %v2021
  %2353 = vmatmul.mubr.f32.gmra.mrb[0].mxu0 %v2020
  %v2354 = vpop.f32.mrb[0].mxu0
  %v2355 = vadd.f32 0.0, %v2354
  %v2356 = vpop.f32.mrb[0].mxu0
  %2357 = vmatprep.mubr.f32.mxu0 %v2030
  %2358 = vmatmul.mubr.f32.gmra.mrb[0].mxu0 %v2029
  %v2359 = vpop.f32.mrb[0].mxu0
  %v2360 = vadd.f32 0.0, %v2359
  %v2361 = vpop.f32.mrb[0].mxu0
  %2362 = vmatprep.mubr.f32.mxu0 %v2039
  %2363 = vmatmul.mubr.f32.gmra.mrb[0].mxu0 %v2038
  %v2364 = vpop.f32.mrb[0].mxu0
  %v2365 = vadd.f32 0.0, %v2364
  %v2366 = vpop.f32.mrb[0].mxu0
  %2367 = vmatprep.mubr.f32.mxu0 %v2048
  %2368 = vmatmul.mubr.f32.gmra.mrb[0].mxu0 %v2047
  %v2369 = vpop.f32.mrb[0].mxu0
  %v2370 = vadd.f32 0.0, %v2369
  %v2371 = vpop.f32.mrb[0].mxu0
  %2372 = vmatprep.mubr.f32.mxu0 %v2057
  %2373 = vmatmul.mubr.f32.gmra.mrb[0].mxu0 %v2056
  %v2374 = vpop.f32.mrb[0].mxu0
  %v2375 = vadd.f32 0.0, %v2374
  %v2376 = vpop.f32.mrb[0].mxu0
  %2377 = vmatprep.mubr.f32.mxu0 %v2066
  %2378 = vmatmul.mubr.f32.gmra.mrb[0].mxu0 %v2065
  %v2379 = vpop.f32.mrb[0].mxu0
  %v2380 = vadd.f32 0.0, %v2379
  %v2381 = vpop.f32.mrb[0].mxu0
  %2382 = vmatprep.mubr.f32.mxu0 %v2075
  %2383 = vmatmul.mubr.f32.gmra.mrb[0].mxu0 %v2074
  %v2384 = vpop.f32.mrb[0].mxu0
  %v2385 = vadd.f32 0.0, %v2384
  %v2386 = vpop.f32.mrb[0].mxu0
  %2387 = vmatprep.mubr.f32.mxu0 %v2084
  %2388 = vmatmul.mubr.f32.gmra.mrb[0].mxu0 %v2083
  %v2389 = vpop.f32.mrb[0].mxu0
  %v2390 = vadd.f32 0.0, %v2389
  %v2391 = vpop.f32.mrb[0].mxu0
  %2392 = vmatprep.mubr.f32.mxu0 %v2093
  %2393 = vmatmul.mubr.f32.gmra.mrb[0].mxu0 %v2092
  %v2394 = vpop.f32.mrb[0].mxu0
  %v2395 = vadd.f32 0.0, %v2394
  %v2396 = vpop.f32.mrb[0].mxu0
  %2397 = vmatprep.mubr.f32.mxu0 %v2102
  %2398 = vmatmul.mubr.f32.gmra.mrb[0].mxu0 %v2101
  %v2399 = vpop.f32.mrb[0].mxu0
  %v2400 = vadd.f32 0.0, %v2399
  %v2401 = vpop.f32.mrb[0].mxu0
  %2402 = vmatprep.mubr.f32.mxu0 %v2111
  %2403 = vmatmul.mubr.f32.gmra.mrb[0].mxu0 %v2110
  %v2404 = vpop.f32.mrb[0].mxu0
  %v2405 = vadd.f32 0.0, %v2404
  %v2406 = vpop.f32.mrb[0].mxu0
  %2407 = vdwg.mxu0
  %2408 = vmatprep.subr.mxu0 0.0
  %2409 = vmatpush1.msra.mxu0 %v2151
  %2410 = vmatprep.subr.mxu0 0.0
  %2411 = vmatpush1.msra.mxu0 %v2152
  %2412 = vmatprep.subr.mxu0 0.0
  %2413 = vmatpush1.msra.mxu0 %v2153
  %2414 = vmatprep.subr.mxu0 0.0
  %2415 = vmatpush1.msra.mxu0 %v2154
  %2416 = vmatprep.subr.mxu0 0.0
  %2417 = vmatpush1.msra.mxu0 %v2155
  %2418 = vmatprep.subr.mxu0 0.0
  %2419 = vmatpush1.msra.mxu0 %v2156
  %2420 = vmatprep.subr.mxu0 0.0
  %2421 = vmatpush1.msra.mxu0 %v2157
  %2422 = vmatprep.subr.mxu0 0.0
  %2423 = vmatpush1.msra.mxu0 %v2158
  %2424 = vmatprep.subr.mxu0 0.0
  %2425 = vmatpush1.msra.mxu0 %v2159
  %2426 = vmatprep.subr.mxu0 0.0
  %2427 = vmatpush1.msra.mxu0 %v2160
  %2428 = vmatprep.subr.mxu0 0.0
  %2429 = vmatpush1.msra.mxu0 %v2161
  %2430 = vmatprep.subr.mxu0 0.0
  %2431 = vmatpush1.msra.mxu0 %v2162
  %2432 = vmatprep.subr.mxu0 0.0
  %2433 = vmatpush1.msra.mxu0 %v2163
  %2434 = vmatprep.subr.mxu0 0.0
  %2435 = vmatpush1.msra.mxu0 %v2164
  %2436 = vmatprep.subr.mxu0 0.0
  %2437 = vmatpush1.msra.mxu0 %v2165
  %2438 = vmatprep.subr.mxu0 0.0
  %2439 = vmatpush1.msra.mxu0 %v2166
  %2440 = vmatprep.subr.mxu0 0.0
  %2441 = vmatpush1.msra.mxu0 %v2167
  %2442 = vmatprep.subr.mxu0 0.0
  %2443 = vmatpush1.msra.mxu0 %v2168
  %2444 = vmatprep.subr.mxu0 0.0
  %2445 = vmatpush1.msra.mxu0 %v2169
  %2446 = vmatprep.subr.mxu0 0.0
  %2447 = vmatpush1.msra.mxu0 %v2170
  %2448 = vmatprep.subr.mxu0 0.0
  %2449 = vmatpush1.msra.mxu0 %v2171
  %2450 = vmatprep.subr.mxu0 0.0
  %2451 = vmatpush1.msra.mxu0 %v2172
  %2452 = vmatprep.subr.mxu0 0.0
  %2453 = vmatpush1.msra.mxu0 %v2173
  %2454 = vmatprep.subr.mxu0 0.0
  %2455 = vmatpush1.msra.mxu0 %v2174
  %2456 = vmatprep.subr.mxu0 0.0
  %2457 = vmatpush1.msra.mxu0 %v2175
  %2458 = vmatprep.subr.mxu0 0.0
  %2459 = vmatpush1.msra.mxu0 %v2176
  %2460 = vmatprep.subr.mxu0 0.0
  %2461 = vmatpush1.msra.mxu0 %v2177
  %2462 = vmatprep.subr.mxu0 0.0
  %2463 = vmatpush1.msra.mxu0 %v2178
  %2464 = vmatprep.subr.mxu0 0.0
  %2465 = vmatpush1.msra.mxu0 %v2179
  %2466 = vmatprep.subr.mxu0 0.0
  %2467 = vmatpush1.msra.mxu0 %v2180
  %2468 = vmatprep.subr.mxu0 0.0
  %2469 = vmatpush1.msra.mxu0 %v2181
  %2470 = vmatprep.subr.mxu0 0.0
  %2471 = vmatpush1.msra.mxu0 %v2182
  %2472 = vmatprep.mubr.f32.mxu0 %v1978
  %2473 = vmatmul.mubr.f32.gmra.mrb[0].mxu0 %v1977
  %v2474 = vpop.f32.mrb[0].mxu0
  %v2475 = vadd.f32 %v2330, %v2474
  %v2476 = vpop.f32.mrb[0].mxu0
  %2477 = vmatprep.mubr.f32.mxu0 %v1987
  %2478 = vmatmul.mubr.f32.gmra.mrb[0].mxu0 %v1986
  %v2479 = vpop.f32.mrb[0].mxu0
  %v2480 = vadd.f32 %v2335, %v2479
  %v2481 = vpop.f32.mrb[0].mxu0
  %2482 = vmatprep.mubr.f32.mxu0 %v1996
  %2483 = vmatmul.mubr.f32.gmra.mrb[0].mxu0 %v1995
  %v2484 = vpop.f32.mrb[0].mxu0
  %v2485 = vadd.f32 %v2340, %v2484
  %v2486 = vpop.f32.mrb[0].mxu0
  %2487 = vmatprep.mubr.f32.mxu0 %v2005
  %2488 = vmatmul.mubr.f32.gmra.mrb[0].mxu0 %v2004
  %v2489 = vpop.f32.mrb[0].mxu0
  %v2490 = vadd.f32 %v2345, %v2489
  %v2491 = vpop.f32.mrb[0].mxu0
  %2492 = vmatprep.mubr.f32.mxu0 %v2014
  %2493 = vmatmul.mubr.f32.gmra.mrb[0].mxu0 %v2013
  %v2494 = vpop.f32.mrb[0].mxu0
  %v2495 = vadd.f32 %v2350, %v2494
  %v2496 = vpop.f32.mrb[0].mxu0
  %2497 = vmatprep.mubr.f32.mxu0 %v2023
  %2498 = vmatmul.mubr.f32.gmra.mrb[0].mxu0 %v2022
  %v2499 = vpop.f32.mrb[0].mxu0
  %v2500 = vadd.f32 %v2355, %v2499
  %v2501 = vpop.f32.mrb[0].mxu0
  %2502 = vmatprep.mubr.f32.mxu0 %v2032
  %2503 = vmatmul.mubr.f32.gmra.mrb[0].mxu0 %v2031
  %v2504 = vpop.f32.mrb[0].mxu0
  %v2505 = vadd.f32 %v2360, %v2504
  %v2506 = vpop.f32.mrb[0].mxu0
  %2507 = vmatprep.mubr.f32.mxu0 %v2041
  %2508 = vmatmul.mubr.f32.gmra.mrb[0].mxu0 %v2040
  %v2509 = vpop.f32.mrb[0].mxu0
  %v2510 = vadd.f32 %v2365, %v2509
  %v2511 = vpop.f32.mrb[0].mxu0
  %2512 = vmatprep.mubr.f32.mxu0 %v2050
  %2513 = vmatmul.mubr.f32.gmra.mrb[0].mxu0 %v2049
  %v2514 = vpop.f32.mrb[0].mxu0
  %v2515 = vadd.f32 %v2370, %v2514
  %v2516 = vpop.f32.mrb[0].mxu0
  %2517 = vmatprep.mubr.f32.mxu0 %v2059
  %2518 = vmatmul.mubr.f32.gmra.mrb[0].mxu0 %v2058
  %v2519 = vpop.f32.mrb[0].mxu0
  %v2520 = vadd.f32 %v2375, %v2519
  %v2521 = vpop.f32.mrb[0].mxu0
  %2522 = vmatprep.mubr.f32.mxu0 %v2068
  %2523 = vmatmul.mubr.f32.gmra.mrb[0].mxu0 %v2067
  %v2524 = vpop.f32.mrb[0].mxu0
  %v2525 = vadd.f32 %v2380, %v2524
  %v2526 = vpop.f32.mrb[0].mxu0
  %2527 = vmatprep.mubr.f32.mxu0 %v2077
  %2528 = vmatmul.mubr.f32.gmra.mrb[0].mxu0 %v2076
  %v2529 = vpop.f32.mrb[0].mxu0
  %v2530 = vadd.f32 %v2385, %v2529
  %v2531 = vpop.f32.mrb[0].mxu0
  %2532 = vmatprep.mubr.f32.mxu0 %v2086
  %2533 = vmatmul.mubr.f32.gmra.mrb[0].mxu0 %v2085
  %v2534 = vpop.f32.mrb[0].mxu0
  %v2535 = vadd.f32 %v2390, %v2534
  %v2536 = vpop.f32.mrb[0].mxu0
  %2537 = vmatprep.mubr.f32.mxu0 %v2095
  %2538 = vmatmul.mubr.f32.gmra.mrb[0].mxu0 %v2094
  %v2539 = vpop.f32.mrb[0].mxu0
  %v2540 = vadd.f32 %v2395, %v2539
  %v2541 = vpop.f32.mrb[0].mxu0
  %2542 = vmatprep.mubr.f32.mxu0 %v2104
  %2543 = vmatmul.mubr.f32.gmra.mrb[0].mxu0 %v2103
  %v2544 = vpop.f32.mrb[0].mxu0
  %v2545 = vadd.f32 %v2400, %v2544
  %v2546 = vpop.f32.mrb[0].mxu0
  %2547 = vmatprep.mubr.f32.mxu0 %v2113
  %2548 = vmatmul.mubr.f32.gmra.mrb[0].mxu0 %v2112
  %v2549 = vpop.f32.mrb[0].mxu0
  %v2550 = vadd.f32 %v2405, %v2549
  %v2551 = vpop.f32.mrb[0].mxu0
  %2552 = vdwg.mxu0
  %2553 = vmatprep.subr.mxu0 0.0
  %2554 = vmatpush1.msra.mxu0 %v2183
  %2555 = vmatprep.subr.mxu0 0.0
  %2556 = vmatpush1.msra.mxu0 %v2184
  %2557 = vmatprep.subr.mxu0 0.0
  %2558 = vmatpush1.msra.mxu0 %v2185
  %2559 = vmatprep.subr.mxu0 0.0
  %2560 = vmatpush1.msra.mxu0 %v2186
  %2561 = vmatprep.subr.mxu0 0.0
  %2562 = vmatpush1.msra.mxu0 %v2187
  %2563 = vmatprep.subr.mxu0 0.0
  %2564 = vmatpush1.msra.mxu0 %v2188
  %2565 = vmatprep.subr.mxu0 0.0
  %2566 = vmatpush1.msra.mxu0 %v2189
  %2567 = vmatprep.subr.mxu0 0.0
  %2568 = vmatpush1.msra.mxu0 %v2190
  %2569 = vmatprep.subr.mxu0 0.0
  %2570 = vmatpush1.msra.mxu0 %v2191
  %2571 = vmatprep.subr.mxu0 0.0
  %2572 = vmatpush1.msra.mxu0 %v2192
  %2573 = vmatprep.subr.mxu0 0.0
  %2574 = vmatpush1.msra.mxu0 %v2193
  %2575 = vmatprep.subr.mxu0 0.0
  %2576 = vmatpush1.msra.mxu0 %v2194
  %2577 = vmatprep.subr.mxu0 0.0
  %2578 = vmatpush1.msra.mxu0 %v2195
  %2579 = vmatprep.subr.mxu0 0.0
  %2580 = vmatpush1.msra.mxu0 %v2196
  %2581 = vmatprep.subr.mxu0 0.0
  %2582 = vmatpush1.msra.mxu0 %v2197
  %2583 = vmatprep.subr.mxu0 0.0
  %2584 = vmatpush1.msra.mxu0 %v2198
  %2585 = vmatprep.subr.mxu0 0.0
  %2586 = vmatpush1.msra.mxu0 %v2199
  %2587 = vmatprep.subr.mxu0 0.0
  %2588 = vmatpush1.msra.mxu0 %v2200
  %2589 = vmatprep.subr.mxu0 0.0
  %2590 = vmatpush1.msra.mxu0 %v2201
  %2591 = vmatprep.subr.mxu0 0.0
  %2592 = vmatpush1.msra.mxu0 %v2202
  %2593 = vmatprep.subr.mxu0 0.0
  %2594 = vmatpush1.msra.mxu0 %v2203
  %2595 = vmatprep.subr.mxu0 0.0
  %2596 = vmatpush1.msra.mxu0 %v2204
  %2597 = vmatprep.subr.mxu0 0.0
  %2598 = vmatpush1.msra.mxu0 %v2205
  %2599 = vmatprep.subr.mxu0 0.0
  %2600 = vmatpush1.msra.mxu0 %v2206
  %2601 = vmatprep.subr.mxu0 0.0
  %2602 = vmatpush1.msra.mxu0 %v2207
  %2603 = vmatprep.subr.mxu0 0.0
  %2604 = vmatpush1.msra.mxu0 %v2208
  %2605 = vmatprep.subr.mxu0 0.0
  %2606 = vmatpush1.msra.mxu0 %v2209
  %2607 = vmatprep.subr.mxu0 0.0
  %2608 = vmatpush1.msra.mxu0 %v2210
  %2609 = vmatprep.subr.mxu0 0.0
  %2610 = vmatpush1.msra.mxu0 %v2211
  %2611 = vmatprep.subr.mxu0 0.0
  %2612 = vmatpush1.msra.mxu0 %v2212
  %2613 = vmatprep.subr.mxu0 0.0
  %2614 = vmatpush1.msra.mxu0 %v2213
  %2615 = vmatprep.subr.mxu0 0.0
  %2616 = vmatpush1.msra.mxu0 %v2214
  %2617 = vmatprep.mubr.f32.mxu0 %v1980
  %2618 = vmatmul.mubr.f32.gmra.mrb[0].mxu0 %v1979
  %v2619 = vpop.f32.mrb[0].mxu0
  %v2620 = vadd.f32 %v2475, %v2619
  %v2621 = vpop.f32.mrb[0].mxu0
  %2622 = vmatprep.mubr.f32.mxu0 %v1989
  %2623 = vmatmul.mubr.f32.gmra.mrb[0].mxu0 %v1988
  %v2624 = vpop.f32.mrb[0].mxu0
  %v2625 = vadd.f32 %v2480, %v2624
  %v2626 = vpop.f32.mrb[0].mxu0
  %2627 = vmatprep.mubr.f32.mxu0 %v1998
  %2628 = vmatmul.mubr.f32.gmra.mrb[0].mxu0 %v1997
  %v2629 = vpop.f32.mrb[0].mxu0
  %v2630 = vadd.f32 %v2485, %v2629
  %v2631 = vpop.f32.mrb[0].mxu0
  %2632 = vmatprep.mubr.f32.mxu0 %v2007
  %2633 = vmatmul.mubr.f32.gmra.mrb[0].mxu0 %v2006
  %v2634 = vpop.f32.mrb[0].mxu0
  %v2635 = vadd.f32 %v2490, %v2634
  %v2636 = vpop.f32.mrb[0].mxu0
  %2637 = vmatprep.mubr.f32.mxu0 %v2016
  %2638 = vmatmul.mubr.f32.gmra.mrb[0].mxu0 %v2015
  %v2639 = vpop.f32.mrb[0].mxu0
  %v2640 = vadd.f32 %v2495, %v2639
  %v2641 = vpop.f32.mrb[0].mxu0
  %2642 = vmatprep.mubr.f32.mxu0 %v2025
  %2643 = vmatmul.mubr.f32.gmra.mrb[0].mxu0 %v2024
  %v2644 = vpop.f32.mrb[0].mxu0
  %v2645 = vadd.f32 %v2500, %v2644
  %v2646 = vpop.f32.mrb[0].mxu0
  %2647 = vmatprep.mubr.f32.mxu0 %v2034
  %2648 = vmatmul.mubr.f32.gmra.mrb[0].mxu0 %v2033
  %v2649 = vpop.f32.mrb[0].mxu0
  %v2650 = vadd.f32 %v2505, %v2649
  %v2651 = vpop.f32.mrb[0].mxu0
  %2652 = vmatprep.mubr.f32.mxu0 %v2043
  %2653 = vmatmul.mubr.f32.gmra.mrb[0].mxu0 %v2042
  %v2654 = vpop.f32.mrb[0].mxu0
  %v2655 = vadd.f32 %v2510, %v2654
  %v2656 = vpop.f32.mrb[0].mxu0
  %2657 = vmatprep.mubr.f32.mxu0 %v2052
  %2658 = vmatmul.mubr.f32.gmra.mrb[0].mxu0 %v2051
  %v2659 = vpop.f32.mrb[0].mxu0
  %v2660 = vadd.f32 %v2515, %v2659
  %v2661 = vpop.f32.mrb[0].mxu0
  %2662 = vmatprep.mubr.f32.mxu0 %v2061
  %2663 = vmatmul.mubr.f32.gmra.mrb[0].mxu0 %v2060
  %v2664 = vpop.f32.mrb[0].mxu0
  %v2665 = vadd.f32 %v2520, %v2664
  %v2666 = vpop.f32.mrb[0].mxu0
  %2667 = vmatprep.mubr.f32.mxu0 %v2070
  %2668 = vmatmul.mubr.f32.gmra.mrb[0].mxu0 %v2069
  %v2669 = vpop.f32.mrb[0].mxu0
  %v2670 = vadd.f32 %v2525, %v2669
  %v2671 = vpop.f32.mrb[0].mxu0
  %2672 = vmatprep.mubr.f32.mxu0 %v2079
  %2673 = vmatmul.mubr.f32.gmra.mrb[0].mxu0 %v2078
  %v2674 = vpop.f32.mrb[0].mxu0
  %v2675 = vadd.f32 %v2530, %v2674
  %v2676 = vpop.f32.mrb[0].mxu0
  %2677 = vmatprep.mubr.f32.mxu0 %v2088
  %2678 = vmatmul.mubr.f32.gmra.mrb[0].mxu0 %v2087
  %v2679 = vpop.f32.mrb[0].mxu0
  %v2680 = vadd.f32 %v2535, %v2679
  %v2681 = vpop.f32.mrb[0].mxu0
  %2682 = vmatprep.mubr.f32.mxu0 %v2097
  %2683 = vmatmul.mubr.f32.gmra.mrb[0].mxu0 %v2096
  %v2684 = vpop.f32.mrb[0].mxu0
  %v2685 = vadd.f32 %v2540, %v2684
  %v2686 = vpop.f32.mrb[0].mxu0
  %2687 = vmatprep.mubr.f32.mxu0 %v2106
  %2688 = vmatmul.mubr.f32.gmra.mrb[0].mxu0 %v2105
  %v2689 = vpop.f32.mrb[0].mxu0
  %v2690 = vadd.f32 %v2545, %v2689
  %v2691 = vpop.f32.mrb[0].mxu0
  %2692 = vmatprep.mubr.f32.mxu0 %v2115
  %2693 = vmatmul.mubr.f32.gmra.mrb[0].mxu0 %v2114
  %v2694 = vpop.f32.mrb[0].mxu0
  %v2695 = vadd.f32 %v2550, %v2694
  %v2696 = vpop.f32.mrb[0].mxu0
  %2697 = vdwg.mxu0
  %2698 = vmatprep.subr.mxu0 0.0
  %2699 = vmatpush1.msra.mxu0 %v2215
  %2700 = vmatprep.subr.mxu0 0.0
  %2701 = vmatpush1.msra.mxu0 %v2216
  %2702 = vmatprep.subr.mxu0 0.0
  %2703 = vmatpush1.msra.mxu0 %v2217
  %2704 = vmatprep.subr.mxu0 0.0
  %2705 = vmatpush1.msra.mxu0 %v2218
  %2706 = vmatprep.subr.mxu0 0.0
  %2707 = vmatpush1.msra.mxu0 %v2219
  %2708 = vmatprep.subr.mxu0 0.0
  %2709 = vmatpush1.msra.mxu0 %v2220
  %2710 = vmatprep.subr.mxu0 0.0
  %2711 = vmatpush1.msra.mxu0 %v2221
  %2712 = vmatprep.subr.mxu0 0.0
  %2713 = vmatpush1.msra.mxu0 %v2222
  %2714 = vmatprep.subr.mxu0 0.0
  %2715 = vmatpush1.msra.mxu0 %v2223
  %2716 = vmatprep.subr.mxu0 0.0
  %2717 = vmatpush1.msra.mxu0 %v2224
  %2718 = vmatprep.subr.mxu0 0.0
  %2719 = vmatpush1.msra.mxu0 %v2225
  %2720 = vmatprep.subr.mxu0 0.0
  %2721 = vmatpush1.msra.mxu0 %v2226
  %2722 = vmatprep.subr.mxu0 0.0
  %2723 = vmatpush1.msra.mxu0 %v2227
  %2724 = vmatprep.subr.mxu0 0.0
  %2725 = vmatpush1.msra.mxu0 %v2228
  %2726 = vmatprep.subr.mxu0 0.0
  %2727 = vmatpush1.msra.mxu0 %v2229
  %2728 = vmatprep.subr.mxu0 0.0
  %2729 = vmatpush1.msra.mxu0 %v2230
  %2730 = vmatprep.subr.mxu0 0.0
  %2731 = vmatpush1.msra.mxu0 %v2231
  %2732 = vmatprep.subr.mxu0 0.0
  %2733 = vmatpush1.msra.mxu0 %v2232
  %2734 = vmatprep.subr.mxu0 0.0
  %2735 = vmatpush1.msra.mxu0 %v2233
  %2736 = vmatprep.subr.mxu0 0.0
  %2737 = vmatpush1.msra.mxu0 %v2234
  %2738 = vmatprep.subr.mxu0 0.0
  %2739 = vmatpush1.msra.mxu0 %v2235
  %2740 = vmatprep.subr.mxu0 0.0
  %2741 = vmatpush1.msra.mxu0 %v2236
  %2742 = vmatprep.subr.mxu0 0.0
  %2743 = vmatpush1.msra.mxu0 %v2237
  %2744 = vmatprep.subr.mxu0 0.0
  %2745 = vmatpush1.msra.mxu0 %v2238
  %2746 = vmatprep.subr.mxu0 0.0
  %2747 = vmatpush1.msra.mxu0 %v2239
  %2748 = vmatprep.subr.mxu0 0.0
  %2749 = vmatpush1.msra.mxu0 %v2240
  %2750 = vmatprep.subr.mxu0 0.0
  %2751 = vmatpush1.msra.mxu0 %v2241
  %2752 = vmatprep.subr.mxu0 0.0
  %2753 = vmatpush1.msra.mxu0 %v2242
  %2754 = vmatprep.subr.mxu0 0.0
  %2755 = vmatpush1.msra.mxu0 %v2243
  %2756 = vmatprep.subr.mxu0 0.0
  %2757 = vmatpush1.msra.mxu0 %v2244
  %2758 = vmatprep.subr.mxu0 0.0
  %2759 = vmatpush1.msra.mxu0 %v2245
  %2760 = vmatprep.subr.mxu0 0.0
  %2761 = vmatpush1.msra.mxu0 %v2246
  %2762 = vmatprep.mubr.f32.mxu0 %v1982
  %2763 = vmatmul.mubr.f32.gmra.mrb[0].mxu0 %v1981
  %v2764 = vpop.f32.mrb[0].mxu0
  %v2765 = vadd.f32 %v2620, %v2764
  %v2766 = vpop.f32.mrb[0].mxu0
  %2767 = vmatprep.mubr.f32.mxu0 %v1991
  %2768 = vmatmul.mubr.f32.gmra.mrb[0].mxu0 %v1990
  %v2769 = vpop.f32.mrb[0].mxu0
  %v2770 = vadd.f32 %v2625, %v2769
  %v2771 = vpop.f32.mrb[0].mxu0
  %2772 = vmatprep.mubr.f32.mxu0 %v2000
  %2773 = vmatmul.mubr.f32.gmra.mrb[0].mxu0 %v1999
  %v2774 = vpop.f32.mrb[0].mxu0
  %v2775 = vadd.f32 %v2630, %v2774
  %v2776 = vpop.f32.mrb[0].mxu0
  %2777 = vmatprep.mubr.f32.mxu0 %v2009
  %2778 = vmatmul.mubr.f32.gmra.mrb[0].mxu0 %v2008
  %v2779 = vpop.f32.mrb[0].mxu0
  %v2780 = vadd.f32 %v2635, %v2779
  %v2781 = vpop.f32.mrb[0].mxu0
  %2782 = vmatprep.mubr.f32.mxu0 %v2018
  %2783 = vmatmul.mubr.f32.gmra.mrb[0].mxu0 %v2017
  %v2784 = vpop.f32.mrb[0].mxu0
  %v2785 = vadd.f32 %v2640, %v2784
  %v2786 = vpop.f32.mrb[0].mxu0
  %2787 = vmatprep.mubr.f32.mxu0 %v2027
  %2788 = vmatmul.mubr.f32.gmra.mrb[0].mxu0 %v2026
  %v2789 = vpop.f32.mrb[0].mxu0
  %v2790 = vadd.f32 %v2645, %v2789
  %v2791 = vpop.f32.mrb[0].mxu0
  %2792 = vmatprep.mubr.f32.mxu0 %v2036
  %2793 = vmatmul.mubr.f32.gmra.mrb[0].mxu0 %v2035
  %v2794 = vpop.f32.mrb[0].mxu0
  %v2795 = vadd.f32 %v2650, %v2794
  %v2796 = vpop.f32.mrb[0].mxu0
  %2797 = vmatprep.mubr.f32.mxu0 %v2045
  %2798 = vmatmul.mubr.f32.gmra.mrb[0].mxu0 %v2044
  %v2799 = vpop.f32.mrb[0].mxu0
  %v2800 = vadd.f32 %v2655, %v2799
  %v2801 = vpop.f32.mrb[0].mxu0
  %2802 = vmatprep.mubr.f32.mxu0 %v2054
  %2803 = vmatmul.mubr.f32.gmra.mrb[0].mxu0 %v2053
  %v2804 = vpop.f32.mrb[0].mxu0
  %v2805 = vadd.f32 %v2660, %v2804
  %v2806 = vpop.f32.mrb[0].mxu0
  %2807 = vmatprep.mubr.f32.mxu0 %v2063
  %2808 = vmatmul.mubr.f32.gmra.mrb[0].mxu0 %v2062
  %v2809 = vpop.f32.mrb[0].mxu0
  %v2810 = vadd.f32 %v2665, %v2809
  %v2811 = vpop.f32.mrb[0].mxu0
  %2812 = vmatprep.mubr.f32.mxu0 %v2072
  %2813 = vmatmul.mubr.f32.gmra.mrb[0].mxu0 %v2071
  %v2814 = vpop.f32.mrb[0].mxu0
  %v2815 = vadd.f32 %v2670, %v2814
  %v2816 = vpop.f32.mrb[0].mxu0
  %2817 = vmatprep.mubr.f32.mxu0 %v2081
  %2818 = vmatmul.mubr.f32.gmra.mrb[0].mxu0 %v2080
  %v2819 = vpop.f32.mrb[0].mxu0
  %v2820 = vadd.f32 %v2675, %v2819
  %v2821 = vpop.f32.mrb[0].mxu0
  %2822 = vmatprep.mubr.f32.mxu0 %v2090
  %2823 = vmatmul.mubr.f32.gmra.mrb[0].mxu0 %v2089
  %v2824 = vpop.f32.mrb[0].mxu0
  %v2825 = vadd.f32 %v2680, %v2824
  %v2826 = vpop.f32.mrb[0].mxu0
  %2827 = vmatprep.mubr.f32.mxu0 %v2099
  %2828 = vmatmul.mubr.f32.gmra.mrb[0].mxu0 %v2098
  %v2829 = vpop.f32.mrb[0].mxu0
  %v2830 = vadd.f32 %v2685, %v2829
  %v2831 = vpop.f32.mrb[0].mxu0
  %2832 = vmatprep.mubr.f32.mxu0 %v2108
  %2833 = vmatmul.mubr.f32.gmra.mrb[0].mxu0 %v2107
  %v2834 = vpop.f32.mrb[0].mxu0
  %v2835 = vadd.f32 %v2690, %v2834
  %v2836 = vpop.f32.mrb[0].mxu0
  %2837 = vmatprep.mubr.f32.mxu0 %v2117
  %2838 = vmatmul.mubr.f32.gmra.mrb[0].mxu0 %v2116
  %v2839 = vpop.f32.mrb[0].mxu0
  %v2840 = vadd.f32 %v2695, %v2839
  %v2841 = vpop.f32.mrb[0].mxu0
  %2842 = vdwg.mxu0
  %2843 = vmatprep.subr.mxu0 0.0
  %2844 = vmatpush1.msra.mxu0 %v2247
  %2845 = vmatprep.subr.mxu0 0.0
  %2846 = vmatpush1.msra.mxu0 %v2248
  %2847 = vmatprep.subr.mxu0 0.0
  %2848 = vmatpush1.msra.mxu0 %v2249
  %2849 = vmatprep.subr.mxu0 0.0
  %2850 = vmatpush1.msra.mxu0 %v2250
  %2851 = vmatprep.subr.mxu0 0.0
  %2852 = vmatpush1.msra.mxu0 %v2251
  %2853 = vmatprep.subr.mxu0 0.0
  %2854 = vmatpush1.msra.mxu0 %v2252
  %2855 = vmatprep.subr.mxu0 0.0
  %2856 = vmatpush1.msra.mxu0 %v2253
  %2857 = vmatprep.subr.mxu0 0.0
  %2858 = vmatpush1.msra.mxu0 %v2254
  %2859 = vmatprep.subr.mxu0 0.0
  %2860 = vmatpush1.msra.mxu0 %v2255
  %2861 = vmatprep.subr.mxu0 0.0
  %2862 = vmatpush1.msra.mxu0 %v2256
  %2863 = vmatprep.subr.mxu0 0.0
  %2864 = vmatpush1.msra.mxu0 %v2257
  %2865 = vmatprep.subr.mxu0 0.0
  %2866 = vmatpush1.msra.mxu0 %v2258
  %2867 = vmatprep.subr.mxu0 0.0
  %2868 = vmatpush1.msra.mxu0 %v2259
  %2869 = vmatprep.subr.mxu0 0.0
  %2870 = vmatpush1.msra.mxu0 %v2260
  %2871 = vmatprep.subr.mxu0 0.0
  %2872 = vmatpush1.msra.mxu0 %v2261
  %2873 = vmatprep.subr.mxu0 0.0
  %2874 = vmatpush1.msra.mxu0 %v2262
  %2875 = vmatprep.subr.mxu0 0.0
  %2876 = vmatpush1.msra.mxu0 0.0
  %2877 = vmatprep.subr.mxu0 0.0
  %2878 = vmatpush1.msra.mxu0 0.0
  %2879 = vmatprep.subr.mxu0 0.0
  %2880 = vmatpush1.msra.mxu0 0.0
  %2881 = vmatprep.subr.mxu0 0.0
  %2882 = vmatpush1.msra.mxu0 0.0
  %2883 = vmatprep.subr.mxu0 0.0
  %2884 = vmatpush1.msra.mxu0 0.0
  %2885 = vmatprep.subr.mxu0 0.0
  %2886 = vmatpush1.msra.mxu0 0.0
  %2887 = vmatprep.subr.mxu0 0.0
  %2888 = vmatpush1.msra.mxu0 0.0
  %2889 = vmatprep.subr.mxu0 0.0
  %2890 = vmatpush1.msra.mxu0 0.0
  %2891 = vmatprep.subr.mxu0 0.0
  %2892 = vmatpush1.msra.mxu0 0.0
  %2893 = vmatprep.subr.mxu0 0.0
  %2894 = vmatpush1.msra.mxu0 0.0
  %2895 = vmatprep.subr.mxu0 0.0
  %2896 = vmatpush1.msra.mxu0 0.0
  %2897 = vmatprep.subr.mxu0 0.0
  %2898 = vmatpush1.msra.mxu0 0.0
  %2899 = vmatprep.subr.mxu0 0.0
  %2900 = vmatpush1.msra.mxu0 0.0
  %2901 = vmatprep.subr.mxu0 0.0
  %2902 = vmatpush1.msra.mxu0 0.0
  %2903 = vmatprep.subr.mxu0 0.0
  %2904 = vmatpush1.msra.mxu0 0.0
  %2905 = vmatprep.subr.mxu0 0.0
  %2906 = vmatpush1.msra.mxu0 0.0
  %2907 = vmatprep.mubr.f32.mxu0 0.0
  %2908 = vmatmul.mubr.f32.gmra.mrb[0].mxu0 %v1983
  %v2909 = vpop.f32.mrb[0].mxu0
  %v2910 = vadd.f32 %v2765, %v2909
  %v2911 = vpop.f32.mrb[0].mxu0
  %2912 = vmatprep.mubr.f32.mxu0 0.0
  %2913 = vmatmul.mubr.f32.gmra.mrb[0].mxu0 %v1992
  %v2914 = vpop.f32.mrb[0].mxu0
  %v2915 = vadd.f32 %v2770, %v2914
  %v2916 = vpop.f32.mrb[0].mxu0
  %2917 = vmatprep.mubr.f32.mxu0 0.0
  %2918 = vmatmul.mubr.f32.gmra.mrb[0].mxu0 %v2001
  %v2919 = vpop.f32.mrb[0].mxu0
  %v2920 = vadd.f32 %v2775, %v2919
  %v2921 = vpop.f32.mrb[0].mxu0
  %2922 = vmatprep.mubr.f32.mxu0 0.0
  %2923 = vmatmul.mubr.f32.gmra.mrb[0].mxu0 %v2010
  %v2924 = vpop.f32.mrb[0].mxu0
  %v2925 = vadd.f32 %v2780, %v2924
  %v2926 = vpop.f32.mrb[0].mxu0
  %2927 = vmatprep.mubr.f32.mxu0 0.0
  %2928 = vmatmul.mubr.f32.gmra.mrb[0].mxu0 %v2019
  %v2929 = vpop.f32.mrb[0].mxu0
  %v2930 = vadd.f32 %v2785, %v2929
  %v2931 = vpop.f32.mrb[0].mxu0
  %2932 = vmatprep.mubr.f32.mxu0 0.0
  %2933 = vmatmul.mubr.f32.gmra.mrb[0].mxu0 %v2028
  %v2934 = vpop.f32.mrb[0].mxu0
  %v2935 = vadd.f32 %v2790, %v2934
  %v2936 = vpop.f32.mrb[0].mxu0
  %2937 = vmatprep.mubr.f32.mxu0 0.0
  %2938 = vmatmul.mubr.f32.gmra.mrb[0].mxu0 %v2037
  %v2939 = vpop.f32.mrb[0].mxu0
  %v2940 = vadd.f32 %v2795, %v2939
  %v2941 = vpop.f32.mrb[0].mxu0
  %2942 = vmatprep.mubr.f32.mxu0 0.0
  %2943 = vmatmul.mubr.f32.gmra.mrb[0].mxu0 %v2046
  %v2944 = vpop.f32.mrb[0].mxu0
  %v2945 = vadd.f32 %v2800, %v2944
  %v2946 = vpop.f32.mrb[0].mxu0
  %2947 = vmatprep.mubr.f32.mxu0 0.0
  %2948 = vmatmul.mubr.f32.gmra.mrb[0].mxu0 %v2055
  %v2949 = vpop.f32.mrb[0].mxu0
  %v2950 = vadd.f32 %v2805, %v2949
  %v2951 = vpop.f32.mrb[0].mxu0
  %2952 = vmatprep.mubr.f32.mxu0 0.0
  %2953 = vmatmul.mubr.f32.gmra.mrb[0].mxu0 %v2064
  %v2954 = vpop.f32.mrb[0].mxu0
  %v2955 = vadd.f32 %v2810, %v2954
  %v2956 = vpop.f32.mrb[0].mxu0
  %2957 = vmatprep.mubr.f32.mxu0 0.0
  %2958 = vmatmul.mubr.f32.gmra.mrb[0].mxu0 %v2073
  %v2959 = vpop.f32.mrb[0].mxu0
  %v2960 = vadd.f32 %v2815, %v2959
  %v2961 = vpop.f32.mrb[0].mxu0
  %2962 = vmatprep.mubr.f32.mxu0 0.0
  %2963 = vmatmul.mubr.f32.gmra.mrb[0].mxu0 %v2082
  %v2964 = vpop.f32.mrb[0].mxu0
  %v2965 = vadd.f32 %v2820, %v2964
  %v2966 = vpop.f32.mrb[0].mxu0
  %2967 = vmatprep.mubr.f32.mxu0 0.0
  %2968 = vmatmul.mubr.f32.gmra.mrb[0].mxu0 %v2091
  %v2969 = vpop.f32.mrb[0].mxu0
  %v2970 = vadd.f32 %v2825, %v2969
  %v2971 = vpop.f32.mrb[0].mxu0
  %2972 = vmatprep.mubr.f32.mxu0 0.0
  %2973 = vmatmul.mubr.f32.gmra.mrb[0].mxu0 %v2100
  %v2974 = vpop.f32.mrb[0].mxu0
  %v2975 = vadd.f32 %v2830, %v2974
  %v2976 = vpop.f32.mrb[0].mxu0
  %2977 = vmatprep.mubr.f32.mxu0 0.0
  %2978 = vmatmul.mubr.f32.gmra.mrb[0].mxu0 %v2109
  %v2979 = vpop.f32.mrb[0].mxu0
  %v2980 = vadd.f32 %v2835, %v2979
  %v2981 = vpop.f32.mrb[0].mxu0
  %2982 = vmatprep.mubr.f32.mxu0 0.0
  %2983 = vmatmul.mubr.f32.gmra.mrb[0].mxu0 %v2118
  %v2984 = vpop.f32.mrb[0].mxu0
  %v2985 = vadd.f32 %v2840, %v2984
  %v2986 = vpop.f32.mrb[0].mxu0
  %2987 = vdwg.mxu0
  %v2988 = vadd.f32 %v2910, %v2915
  %v2989 = vadd.f32 %v2988, %v2920
  %v2990 = vadd.f32 %v2989, %v2925
  %v2991 = vadd.f32 %v2990, %v2930
  %v2992 = vadd.f32 %v2991, %v2935
  %v2993 = vadd.f32 %v2992, %v2940
  %v2994 = vadd.f32 %v2993, %v2945
  %v2995 = vadd.f32 %v2994, %v2950
  %v2996 = vadd.f32 %v2995, %v2955
  %v2997 = vadd.f32 %v2996, %v2960
  %v2998 = vadd.f32 %v2997, %v2965
  %v2999 = vadd.f32 %v2998, %v2970
  %v3000 = vadd.f32 %v2999, %v2975
  %v3001 = vadd.f32 %v3000, %v2980
  %v3002 = vadd.f32 %v3001, %v2985
  %v3003 = vrot.slane %v3002, 4
  %v3004 = vadd.f32 %v3002, %v3003
  %v3005 = vrot.slane %v3004, 2
  %v3006 = vadd.f32 %v3004, %v3005
  %v3007 = vrot.slane %v3006, 1
  %v3008 = vadd.f32 %v3006, %v3007
  %v3009 = vmul.f32 %v2910, %v2910
  %v3010 = vmul.f32 %v2915, %v2915
  %v3011 = vmul.f32 %v2920, %v2920
  %v3012 = vmul.f32 %v2925, %v2925
  %v3013 = vmul.f32 %v2930, %v2930
  %v3014 = vmul.f32 %v2935, %v2935
  %v3015 = vmul.f32 %v2940, %v2940
  %v3016 = vmul.f32 %v2945, %v2945
  %v3017 = vmul.f32 %v2950, %v2950
  %v3018 = vmul.f32 %v2955, %v2955
  %v3019 = vmul.f32 %v2960, %v2960
  %v3020 = vmul.f32 %v2965, %v2965
  %v3021 = vmul.f32 %v2970, %v2970
  %v3022 = vmul.f32 %v2975, %v2975
  %v3023 = vmul.f32 %v2980, %v2980
  %v3024 = vmul.f32 %v2985, %v2985
  %v3025 = vadd.f32 %v3009, %v3010
  %v3026 = vadd.f32 %v3025, %v3011
  %v3027 = vadd.f32 %v3026, %v3012
  %v3028 = vadd.f32 %v3027, %v3013
  %v3029 = vadd.f32 %v3028, %v3014
  %v3030 = vadd.f32 %v3029, %v3015
  %v3031 = vadd.f32 %v3030, %v3016
  %v3032 = vadd.f32 %v3031, %v3017
  %v3033 = vadd.f32 %v3032, %v3018
  %v3034 = vadd.f32 %v3033, %v3019
  %v3035 = vadd.f32 %v3034, %v3020
  %v3036 = vadd.f32 %v3035, %v3021
  %v3037 = vadd.f32 %v3036, %v3022
  %v3038 = vadd.f32 %v3037, %v3023
  %v3039 = vadd.f32 %v3038, %v3024
  %v3040 = vrot.slane %v3039, 4
  %v3041 = vadd.f32 %v3039, %v3040
  %v3042 = vrot.slane %v3041, 2
  %v3043 = vadd.f32 %v3041, %v3042
  %v3044 = vrot.slane %v3043, 1
  %v3045 = vadd.f32 %v3043, %v3044
  %v3046 = vmul.f32 %v3008, 0.0078125
  %v3047 = vmul.f32 %v3045, 0.0078125
  %v3048 = vmul.f32 %v3046, %v3046
  %v3049 = vsub.f32 %v3047, %v3048
  %v3050 = vmax.f32 %v3049, 0.0
  %v3051 = vld [vmem:[%s5] sm:$0x1]
  %v3052 = vadd.f32 %v3050, 1e-05
  %v3053 = vrsqrt.pop %v3052
  %v3054 = vmul.f32 %v3051, %v3053
  %v3055 = vld [vmem:[%s6] sm:$0x1]
  %v3056 = vmul.f32 %v3046, %v3054
  %v3057 = vsub.f32 %v3055, %v3056
  %v3059 = vlaneseq
  %v3060 = vshrl.u32 %v3059, 7
  %v3061 = vsub.s32 0, %v3060
  %v3062 = vrot.slane %v3054, %v3061
  %v3064 = vmul.f32 %v2910, %v3062
  %v3065 = vmul.f32 %v2915, %v3062
  %v3066 = vmul.f32 %v2920, %v3062
  %v3067 = vmul.f32 %v2925, %v3062
  %v3068 = vmul.f32 %v2930, %v3062
  %v3069 = vmul.f32 %v2935, %v3062
  %v3070 = vmul.f32 %v2940, %v3062
  %v3071 = vmul.f32 %v2945, %v3062
  %v3072 = vmul.f32 %v2950, %v3062
  %v3073 = vmul.f32 %v2955, %v3062
  %v3074 = vmul.f32 %v2960, %v3062
  %v3075 = vmul.f32 %v2965, %v3062
  %v3076 = vmul.f32 %v2970, %v3062
  %v3077 = vmul.f32 %v2975, %v3062
  %v3078 = vmul.f32 %v2980, %v3062
  %v3079 = vmul.f32 %v2985, %v3062
  %v3081 = vlaneseq
  %v3082 = vshrl.u32 %v3081, 7
  %v3083 = vsub.s32 0, %v3082
  %v3084 = vrot.slane %v3057, %v3083
  %v3086 = vadd.f32 %v3064, %v3084
  %v3087 = vadd.f32 %v3065, %v3084
  %v3088 = vadd.f32 %v3066, %v3084
  %v3089 = vadd.f32 %v3067, %v3084
  %v3090 = vadd.f32 %v3068, %v3084
  %v3091 = vadd.f32 %v3069, %v3084
  %v3092 = vadd.f32 %v3070, %v3084
  %v3093 = vadd.f32 %v3071, %v3084
  %v3094 = vadd.f32 %v3072, %v3084
  %v3095 = vadd.f32 %v3073, %v3084
  %v3096 = vadd.f32 %v3074, %v3084
  %v3097 = vadd.f32 %v3075, %v3084
  %v3098 = vadd.f32 %v3076, %v3084
  %v3099 = vadd.f32 %v3077, %v3084
  %v3100 = vadd.f32 %v3078, %v3084
  %v3101 = vadd.f32 %v3079, %v3084
  %v3102 = vmax.f32 %v3086, 0.0
  %v3103 = vmax.f32 %v3087, 0.0
  %v3104 = vmax.f32 %v3088, 0.0
  %v3105 = vmax.f32 %v3089, 0.0
  %v3106 = vmax.f32 %v3090, 0.0
  %v3107 = vmax.f32 %v3091, 0.0
  %v3108 = vmax.f32 %v3092, 0.0
  %v3109 = vmax.f32 %v3093, 0.0
  %v3110 = vmax.f32 %v3094, 0.0
  %v3111 = vmax.f32 %v3095, 0.0
  %v3112 = vmax.f32 %v3096, 0.0
  %v3113 = vmax.f32 %v3097, 0.0
  %v3114 = vmax.f32 %v3098, 0.0
  %v3115 = vmax.f32 %v3099, 0.0
  %v3116 = vmax.f32 %v3100, 0.0
  %v3117 = vmax.f32 %v3101, 0.0
  %3118 = vst [vmem:[%s7] sm:$0xff] %v3102
  %3119 = vst [vmem:[%s7 + $0x8] sm:$0xff] %v3103
  %3120 = vst [vmem:[%s7 + $0x10] sm:$0xff] %v3104
  %3121 = vst [vmem:[%s7 + $0x18] sm:$0xff] %v3105
  %3122 = vst [vmem:[%s7 + $0x20] sm:$0xff] %v3106
  %3123 = vst [vmem:[%s7 + $0x28] sm:$0xff] %v3107
  %3124 = vst [vmem:[%s7 + $0x30] sm:$0xff] %v3108
  %3125 = vst [vmem:[%s7 + $0x38] sm:$0xff] %v3109
  %3126 = vst [vmem:[%s7 + $0x40] sm:$0xff] %v3110
  %3127 = vst [vmem:[%s7 + $0x48] sm:$0xff] %v3111
  %3128 = vst [vmem:[%s7 + $0x50] sm:$0xff] %v3112
  %3129 = vst [vmem:[%s7 + $0x58] sm:$0xff] %v3113
  %3130 = vst [vmem:[%s7 + $0x60] sm:$0xff] %v3114
  %3131 = vst [vmem:[%s7 + $0x68] sm:$0xff] %v3115
  %3132 = vst [vmem:[%s7 + $0x70] sm:$0xff] %v3116
  %3133 = vst [vmem:[%s7 + $0x78] sm:$0xff] %v3117
  // Predicated region
  $region30: #{down_block.1} parent=0 // pred_check
    _
  $region31: #{down_block.1} parent=0 // pred_check_branch
    %3135 = sbr.rel (0) target = $region33
  $region32: #{down_block.1} parent=0 // pred_region
    _
  $region33: #{down_block.1} parent=0 // pred_fallthru
    _
  // Predicated region
  $region34: #{down_block.1} parent=0 // pred_check
    _
  $region35: #{down_block.1} parent=0 // pred_check_branch
    %3137 = sbr.rel (0) target = $region37
  $region36: #{down_block.1} parent=0 // pred_region
    _
  $region37: #{down_block.1} parent=0 // pred_fallthru
    _

</llo_original>
